<compile_context>
chip_gen: v7x
topology: tpu7x:2x2x1
jax: 0.10.0
libtpu: 0.0.40
codegen_flags: <defaults>
</compile_context>

<pallas_src>
import math
from functools import partial

import jax
import jax.numpy as jnp
from jax import lax
from jax.experimental import pallas as pl
from jax.experimental.pallas import tpu as pltpu

CH = 32      # conv channels (fixed by the module)
HID = 40     # LSTM hidden size (fixed by the module)
HP = 128     # hidden padded to a full lane width so gate slices are lane-aligned
FC1 = 128    # classifier hidden width (fixed by the module)


# ----------------------------------------------------------------------------
# geometry helpers (faithful to the PyTorch module)
# ----------------------------------------------------------------------------
def getpad(in_size, kernel_size, stride, label="same"):
    if label == "same":
        out_size = math.ceil(in_size / stride)
        padding = math.ceil(((out_size - 1) * stride + kernel_size - in_size) / 2)
    elif label == "valid":
        out_size = math.ceil((in_size - kernel_size + 1) / stride)
        padding = math.ceil(((out_size - 1) * stride + kernel_size - in_size) / 2)
    return padding, out_size


def model_geometry(in_size):
    """Faithful port of BinConvLSTM.__init__ size arithmetic."""
    L0 = in_size // 2
    pad1, o1 = getpad(L0, 8, 2, "same")
    o1 //= 2
    pad2, o2 = getpad(o1, 4, 2, "same")
    o2 //= 2
    pad3, _ = getpad(o2 * 2, 4, 1, "same")
    lstm_in = (o2 * 2 - 4 + 2 * pad3) // 1 + 1
    # actual Conv1d / MaxPool1d output lengths (floor arithmetic as in PyTorch)
    L1 = (L0 + 2 * pad1 - 8) // 2 + 1
    P1 = L1 // 2
    L2 = (P1 + 2 * pad2 - 4) // 2 + 1
    P2 = L2 // 2
    L3 = (2 * P2 + 2 * pad3 - 4) // 1 + 1
    assert L3 == lstm_in and L1 % 4 == 0 and L2 % 2 == 0, "unsupported geometry"
    return dict(L0=L0, pad1=pad1, pad2=pad2, pad3=pad3,
                L1=L1, P1=P1, L2=L2, P2=P2, L3=L3)


# ----------------------------------------------------------------------------
# parameters: PyTorch layouts, then a one-time repack into kernel layouts
# ----------------------------------------------------------------------------
def make_torch_params(key, in_chs, lstm_in, hidden, num_classes):
    def nk():                              # never-exhausting key splitter
        nonlocal key
        key, sub = jax.random.split(key)
        return sub

    def conv_p(cin, cout, ksz):
        return dict(
            w=0.1 * jax.random.normal(nk(), (cout, cin, ksz), jnp.float32),
            b=0.05 * jax.random.normal(nk(), (cout,), jnp.float32),
            gamma=1.0 + 0.1 * jax.random.normal(nk(), (cout,), jnp.float32),
            beta=0.05 * jax.random.normal(nk(), (cout,), jnp.float32),
            mean=0.05 * jax.random.normal(nk(), (cout,), jnp.float32),
            var=1.0 + 0.1 * jnp.abs(jax.random.normal(nk(), (cout,), jnp.float32)),
        )

    H = hidden
    return dict(
        conv1=conv_p(in_chs, CH, 8),
        conv2=conv_p(CH, CH, 4),
        conv3=conv_p(CH, CH, 4),
        # nn.LSTM parameters, PyTorch gate order (i, f, g, o)
        w_ih=0.1 * jax.random.normal(nk(), (4 * H, lstm_in), jnp.float32),
        w_hh=0.1 * jax.random.normal(nk(), (4 * H, H), jnp.float32),
        b_ih=0.05 * jax.random.normal(nk(), (4 * H,), jnp.float32),
        b_hh=0.05 * jax.random.normal(nk(), (4 * H,), jnp.float32),
        fc1_w=0.05 * jax.random.normal(nk(), (FC1, CH * H), jnp.float32),
        fc1_b=0.05 * jax.random.normal(nk(), (FC1,), jnp.float32),
        fc2_w=0.05 * jax.random.normal(nk(), (num_classes, FC1), jnp.float32),
        fc2_b=0.05 * jax.random.normal(nk(), (num_classes,), jnp.float32),
    )


def prepare_kernel_params(tp, hidden, num_classes):
    """One-time host-side repack of torch-layout weights into kernel layouts."""
    H = hidden

    def conv_affine(cp):
        # Conv -> ReLU -> BatchNorm1d(eval): y = scale * relu(conv + b) + shift
        scale = cp["gamma"] / jnp.sqrt(cp["var"] + 1e-5)
        shift = cp["beta"] - cp["mean"] * scale
        return jnp.stack([cp["b"], scale, shift]).astype(jnp.float32)    # (3, CH)

    def conv_w_flat(w):
        # (Cout, Cin, K) -> (K*Cin, Cout); rows ordered tap-major then channel,
        # matching the in-kernel shifted-slice concatenation.
        cout, cin, k = w.shape
        return (jnp.transpose(w, (2, 1, 0))
                .reshape(k * cin, cout).astype(jnp.bfloat16))

    def pad_gates(w):                      # (rows, 4H) -> (rows, 4*HP), zero pad
        out = jnp.zeros((w.shape[0], 4 * HP), jnp.float32)
        for g in range(4):
            out = out.at[:, g * HP:g * HP + H].set(w[:, g * H:(g + 1) * H])
        return out

    # LSTM: 4 gates fused along the last dim, hidden padded 40 -> 128 lanes.
    # Input-weight rows are permuted even-positions-first to match the
    # parity-split conv3 outputs produced inside the kernel.
    wx = pad_gates(tp["w_ih"].T)                                    # (L3, 4*HP)
    wxp = jnp.concatenate([wx[0::2], wx[1::2]], axis=0).astype(jnp.bfloat16)
    wh = (jnp.zeros((HP, 4 * HP), jnp.float32)
          .at[:H, :].set(pad_gates(tp["w_hh"].T))).astype(jnp.bfloat16)
    bl = pad_gates((tp["b_ih"] + tp["b_hh"])[None, :])              # (1, 4*HP) f32

    # classifier: fc1 kept per-channel (CH, H, 128) -> no dead padded rows,
    # fc2 class dim padded to a full 128-lane output (sliced back on the host).
    w1c = tp["fc1_w"].T.reshape(CH, H, FC1).astype(jnp.bfloat16)
    b1 = tp["fc1_b"][None, :].astype(jnp.float32)                   # (1, 128)
    w2p = (jnp.zeros((FC1, 128), jnp.float32)
           .at[:, :num_classes].set(tp["fc2_w"].T)).astype(jnp.bfloat16)
    b2 = (jnp.zeros((1, 128), jnp.float32)
          .at[:, :num_classes].set(tp["fc2_b"][None, :]))

    return dict(
        w1f=conv_w_flat(tp["conv1"]["w"]), a1=conv_affine(tp["conv1"]),
        w2f=conv_w_flat(tp["conv2"]["w"]), a2=conv_affine(tp["conv2"]),
        w3f=conv_w_flat(tp["conv3"]["w"]), a3=conv_affine(tp["conv3"]),
        wxp=wxp, wh=wh, bl=bl, w1c=w1c, b1=b1, w2p=w2p, b2=b2,
    )


# ----------------------------------------------------------------------------
# single fused kernel: conv1 -> pool -> conv2 -> pool -> crosscat -> conv3
#                      -> LSTM -> classifier
# ----------------------------------------------------------------------------
def conv_lstm_classifier_pallas(xg1, kp, geo, batch):
    L1, P1, L2, P2, L3 = geo["L1"], geo["P1"], geo["L2"], geo["P2"], geo["L3"]
    pad2, pad3 = geo["pad2"], geo["pad3"]
    n_even, n_odd = (L3 + 1) // 2, L3 // 2
    B, n2b = batch, 2 * batch
    rows2 = (P1 + 2 * pad2) // 2            # conv2 padded length, regrouped by 2
    rows3 = (2 * P2 + 2 * pad3) // 2        # conv3 padded length, regrouped by 2
    K1, K2 = 8, 4
    bf16, f32 = jnp.bfloat16, jnp.float32

    def kernel(xg1_ref, w1f_ref, a1_ref, w2f_ref, a2_ref, w3f_ref, a3_ref,
               wxp_ref, bl_ref, wh_ref, w1c_ref, b1_ref, w2p_ref, b2_ref,
               out_ref):

        def mm(x, w_bf16):               # (..., K) @ (K, N) on the MXU, f32 acc
            lead = x.shape[:-1]
            y = jnp.dot(x.reshape(-1, x.shape[-1]).astype(bf16), w_bf16,
                        preferred_element_type=f32)
            return y.reshape(lead + (w_bf16.shape[-1],))

        def conv_epilogue(y, aff):       # Conv -> ReLU -> BatchNorm1d(eval), f32
            return jnp.maximum(y + aff[0:1, :], 0.0) * aff[1:2, :] + aff[2:3, :]

        def pad_rows(x, front, back):    # zero pad along the length (row) axis
            parts = []
            if front:
                parts.append(jnp.zeros((x.shape[0], front, x.shape[2]), x.dtype))
            parts.append(x)
            if back:
                parts.append(jnp.zeros((x.shape[0], back, x.shape[2]), x.dtype))
            return jnp.concatenate(parts, axis=1) if len(parts) > 1 else x

        # ---- conv1 (k=8, s=2), both feature halves stacked on the batch axis;
        #      all 4 stride-groups fused into ONE K = 4*2*Cin MXU dot.
        xg1v = xg1_ref[...]
        xcat1 = jnp.concatenate([xg1v[:, q:q + L1, :] for q in range(K1 // 2)],
                                axis=-1)
        z1 = conv_epilogue(mm(xcat1, w1f_ref[...]), a1_ref[...])   # (2B, L1, CH)

        # fused MaxPool1d(2,2), produced parity-split so the stride-2 regrouped
        # conv2 input can be assembled with pure concatenation (no scratch).
        z1v = z1.reshape(n2b * (L1 // 4), 4, CH)
        p1e = jnp.maximum(z1v[:, 0, :], z1v[:, 1, :]).reshape(n2b, L1 // 4, CH)
        p1o = jnp.maximum(z1v[:, 2, :], z1v[:, 3, :]).reshape(n2b, L1 // 4, CH)

        # ---- conv2 input: zero pad + regroup by stride 2, built in registers
        he = P1 // 2
        if pad2 % 2 == 1:
            col0 = pad_rows(p1o, (pad2 + 1) // 2, rows2 - he - (pad2 + 1) // 2)
            col1 = pad_rows(p1e, (pad2 - 1) // 2, rows2 - he - (pad2 - 1) // 2)
        else:
            col0 = pad_rows(p1e, pad2 // 2, rows2 - he - pad2 // 2)
            col1 = pad_rows(p1o, pad2 // 2, rows2 - he - pad2 // 2)
        x2g = jnp.concatenate([col0, col1], axis=-1)               # (2B,rows2,2CH)

        # ---- conv2 (k=4, s=2): ONE K = 4*CH dot + ReLU + BN + MaxPool1d(2,2)
        xcat2 = jnp.concatenate([x2g[:, q:q + L2, :] for q in range(K2 // 2)],
                                axis=-1)
        z2 = conv_epilogue(mm(xcat2, w2f_ref[...]), a2_ref[...])   # (2B, L2, CH)
        z2v = z2.reshape(n2b * (L2 // 2), 2, CH)
        p2 = jnp.maximum(z2v[:, 0, :], z2v[:, 1, :]).reshape(n2b, L2 // 2, CH)

        # ---- crosscat (interleave the two branches) + conv3 zero pad, built as
        #      a parity-regrouped register value (no VMEM scratch round trip)
        if pad3 % 2 == 0:
            col0 = pad_rows(p2[0:B], pad3 // 2, rows3 - P2 - pad3 // 2)
            col1 = pad_rows(p2[B:n2b], pad3 // 2, rows3 - P2 - pad3 // 2)
        else:
            col0 = pad_rows(p2[B:n2b], (pad3 + 1) // 2,
                            rows3 - P2 - (pad3 + 1) // 2)
            col1 = pad_rows(p2[0:B], (pad3 - 1) // 2,
                            rows3 - P2 - (pad3 - 1) // 2)
        x3g = jnp.concatenate([col0, col1], axis=-1)               # (B,rows3,2CH)

        # ---- conv3 (k=4, s=1): even/odd output positions stacked along M and
        #      all 4 taps fused into ONE K = 4*CH dot, + ReLU + BN.
        xce = jnp.concatenate([x3g[:, 0:n_even, :], x3g[:, 1:1 + n_even, :]],
                              axis=-1).reshape(B * n_even, 4 * CH)
        xco = jnp.concatenate([x3g[:, 0:n_odd, CH:2 * CH],
                               x3g[:, 1:1 + n_odd, :],
                               x3g[:, 2:2 + n_odd, 0:CH]],
                              axis=-1).reshape(B * n_odd, 4 * CH)
        z3 = conv_epilogue(mm(jnp.concatenate([xce, xco], axis=0), w3f_ref[...]),
                           a3_ref[...])                            # (B*L3, CH)
        z3e = z3[0:B * n_even].reshape(B, n_even, CH)
        z3o = z3[B * n_even:].reshape(B, n_odd, CH)

        # ---- LSTM input projection hoisted out of the recurrence: one dot for
        #      ALL time steps (rows = (t, channel), K = L3, parity-permuted).
        xT = jnp.concatenate(
            [jnp.concatenate([z3e[t].T, z3o[t].T], axis=1) for t in range(B)],
            axis=0)                                                # (B*CH, L3)
        xproj = mm(xT, wxp_ref[...]) + bl_ref[...]                 # (B*CH, 4*HP)

        # ---- LSTM recurrence: nn.LSTM(batch_first=False) reads conv3_out
        #      (B, 32, L3) as (seq=B, batch=32, input=L3); gates i,f,g,o fused
        #      on lane-aligned 128-wide slices; only h @ wh is serial.
        wh = wh_ref[...]
        h = jnp.zeros((CH, HP), f32)
        c = jnp.zeros((CH, HP), f32)
        hs = []
        for t in range(B):                  # static, tiny sequence loop
            gates = xproj[t * CH:(t + 1) * CH, :] + mm(h, wh)
            i_g = jax.nn.sigmoid(gates[:, 0 * HP:1 * HP])
            f_g = jax.nn.sigmoid(gates[:, 1 * HP:2 * HP])
            g_g = jnp.tanh(gates[:, 2 * HP:3 * HP])
            o_g = jax.nn.sigmoid(gates[:, 3 * HP:4 * HP])
            c = f_g * c + i_g * g_g
            h = o_g * jnp.tanh(c)
            hs.append(h[:, 0:HID])                                 # (CH, 40)

        # ---- classifier fused in-kernel: Dropout(eval) -> Flatten -> Linear ->
        #      ReLU -> Linear.  fc1 contracts over (channel, hidden) as a
        #      per-channel batched matmul + channel reduction, so the dead
        #      40->128 hidden padding is never streamed.
        hc = jnp.stack(hs, axis=1)                                 # (CH, B, 40)
        y1 = lax.dot_general(hc.astype(bf16), w1c_ref[...],
                             dimension_numbers=(((2,), (1,)), ((0,), (0,))),
                             preferred_element_type=f32)           # (CH, B, 128)
        y1 = jnp.maximum(jnp.sum(y1, axis=0) + b1_ref[...], 0.0)   # (B, 128)
        out_ref[...] = mm(y1, w2p_ref[...]) + b2_ref[...]          # (B, 128)

    vmem = pl.BlockSpec(memory_space=pltpu.MemorySpace.VMEM)
    # TODO(synk): gridless single-core launch; a ("parallel",) grid over the
    #             stacked 2B conv batch (v7x megacore) is left out at batch=2.
    return pl.pallas_call(
        kernel,
        out_shape=jax.ShapeDtypeStruct((B, 128), jnp.float32),
        in_specs=[vmem] * 14,
        out_specs=vmem,
    )(xg1, kp["w1f"], kp["a1"], kp["w2f"], kp["a2"], kp["w3f"], kp["a3"],
      kp["wxp"], kp["bl"], kp["wh"], kp["w1c"], kp["b1"], kp["w2p"], kp["b2"])


# ----------------------------------------------------------------------------
# full forward
# ----------------------------------------------------------------------------
def bin_conv_lstm_forward(x, kp, geo, num_classes):
    B, cin, _ = x.shape
    L0, pad1 = geo["L0"], geo["pad1"]
    # split the feature axis into two halves and stack them on the batch axis so
    # conv1/conv2 run ONCE over both branches; stride-2 regroup for conv1.
    xb = jnp.concatenate([x[:, :, :L0], x[:, :, L0:2 * L0]], axis=0)  # (2B,Cin,L0)
    xb = jnp.transpose(xb, (0, 2, 1))                                 # (2B,L0,Cin)
    lp1 = L0 + 2 * pad1
    extra = lp1 % 2
    xp = jnp.pad(xb, ((0, 0), (pad1, pad1 + extra), (0, 0)))
    xg1 = xp.reshape(2 * B, (lp1 + extra) // 2, 2 * cin)     # stride-2 regrouped

    logits = conv_lstm_classifier_pallas(xg1, kp, geo, B)    # (B, 128) padded
    return logits[:, :num_classes]


if __name__ == "__main__":
    batch, in_chs, in_size = 2, 4, 128
    num_classes, hidden = 5, HID

    key = jax.random.PRNGKey(0)
    kx, kw = jax.random.split(key)
    x = jax.random.normal(kx, (batch, in_chs, in_size), jnp.float32)

    geo = model_geometry(in_size)
    torch_params = make_torch_params(kw, in_chs, geo["L3"], hidden, num_classes)
    kparams = prepare_kernel_params(torch_params, hidden, num_classes)

    fwd = jax.jit(partial(bin_conv_lstm_forward, geo=geo, num_classes=num_classes))
    out = jax.block_until_ready(fwd(x, kparams))
    assert out.shape == (batch, num_classes), out.shape
    print("KERNEL_OK")
</pallas_src>

<mosaic_0001>
module attributes {stable_mosaic.version = 11 : i64} {
  func.func @kernel(%arg0: memref<4x35x8xf32, #tpu.memory_space<vmem>>, %arg1: memref<32x32xbf16, #tpu.memory_space<vmem>>, %arg2: memref<3x32xf32, #tpu.memory_space<vmem>>, %arg3: memref<128x32xbf16, #tpu.memory_space<vmem>>, %arg4: memref<3x32xf32, #tpu.memory_space<vmem>>, %arg5: memref<128x32xbf16, #tpu.memory_space<vmem>>, %arg6: memref<3x32xf32, #tpu.memory_space<vmem>>, %arg7: memref<9x512xbf16, #tpu.memory_space<vmem>>, %arg8: memref<1x512xf32, #tpu.memory_space<vmem>>, %arg9: memref<128x512xbf16, #tpu.memory_space<vmem>>, %arg10: memref<32x40x128xbf16, #tpu.memory_space<vmem>>, %arg11: memref<1x128xf32, #tpu.memory_space<vmem>>, %arg12: memref<128x128xbf16, #tpu.memory_space<vmem>>, %arg13: memref<1x128xf32, #tpu.memory_space<vmem>>, %arg14: memref<2x128xf32, #tpu.memory_space<vmem>>) attributes {dimension_semantics = [], scalar_prefetch = 0 : i64, scratch_operands = 0 : i64, tpu.core_type = #tpu.core_type<tc>} {
    %c0 = arith.constant 0 : index
    %c0_0 = arith.constant 0 : index
    %c0_1 = arith.constant 0 : index
    %0 = vector.load %arg0[%c0, %c0_0, %c0_1] : memref<4x35x8xf32, #tpu.memory_space<vmem>>, vector<4x35x8xf32>
    %1 = vector.extract_strided_slice %0 {offsets = [0, 0, 0], sizes = [4, 32, 8], strides = [1, 1, 1]} : vector<4x35x8xf32> to vector<4x32x8xf32>
    %2 = vector.extract_strided_slice %0 {offsets = [0, 1, 0], sizes = [4, 32, 8], strides = [1, 1, 1]} : vector<4x35x8xf32> to vector<4x32x8xf32>
    %3 = vector.extract_strided_slice %0 {offsets = [0, 2, 0], sizes = [4, 32, 8], strides = [1, 1, 1]} : vector<4x35x8xf32> to vector<4x32x8xf32>
    %4 = vector.extract_strided_slice %0 {offsets = [0, 3, 0], sizes = [4, 32, 8], strides = [1, 1, 1]} : vector<4x35x8xf32> to vector<4x32x8xf32>
    %5 = tpu.concatenate %1, %2, %3, %4 in 2 : vector<4x32x8xf32>, vector<4x32x8xf32>, vector<4x32x8xf32>, vector<4x32x8xf32> -> vector<4x32x32xf32>
    %c0_2 = arith.constant 0 : index
    %c0_3 = arith.constant 0 : index
    %6 = vector.load %arg1[%c0_2, %c0_3] : memref<32x32xbf16, #tpu.memory_space<vmem>>, vector<32x32xbf16>
    %7 = vector.shape_cast %5 : vector<4x32x32xf32> to vector<128x32xf32>
    %8 = arith.truncf %7 : vector<128x32xf32> to vector<128x32xbf16>
    %cst = arith.constant dense<0.000000e+00> : vector<128x32xf32>
    %9 = tpu.matmul %8, %6, %cst {dimension_numbers = #tpu.dot_dimension_numbers<[1], [0], [0], [1], [0, 0, 1, 1], [], []>} : vector<128x32xbf16>, vector<32x32xbf16>, vector<128x32xf32> -> vector<128x32xf32>
    %10 = vector.shape_cast %9 : vector<128x32xf32> to vector<4x32x32xf32>
    %c0_4 = arith.constant 0 : index
    %c0_5 = arith.constant 0 : index
    %11 = vector.load %arg2[%c0_4, %c0_5] : memref<3x32xf32, #tpu.memory_space<vmem>>, vector<3x32xf32>
    %12 = vector.extract_strided_slice %11 {offsets = [0, 0], sizes = [1, 32], strides = [1, 1]} : vector<3x32xf32> to vector<1x32xf32>
    %13 = vector.shape_cast %12 : vector<1x32xf32> to vector<1x1x32xf32>
    %14 = vector.broadcast %13 : vector<1x1x32xf32> to vector<4x32x32xf32>
    %15 = arith.addf %10, %14 : vector<4x32x32xf32>
    %cst_6 = arith.constant 0.000000e+00 : f32
    %16 = vector.broadcast %cst_6 : f32 to vector<4x32x32xf32>
    %17 = arith.maximumf %15, %16 : vector<4x32x32xf32>
    %18 = vector.extract_strided_slice %11 {offsets = [1, 0], sizes = [1, 32], strides = [1, 1]} : vector<3x32xf32> to vector<1x32xf32>
    %19 = vector.shape_cast %18 : vector<1x32xf32> to vector<1x1x32xf32>
    %20 = vector.broadcast %19 : vector<1x1x32xf32> to vector<4x32x32xf32>
    %21 = arith.mulf %17, %20 : vector<4x32x32xf32>
    %22 = vector.extract_strided_slice %11 {offsets = [2, 0], sizes = [1, 32], strides = [1, 1]} : vector<3x32xf32> to vector<1x32xf32>
    %23 = vector.shape_cast %22 : vector<1x32xf32> to vector<1x1x32xf32>
    %24 = vector.broadcast %23 : vector<1x1x32xf32> to vector<4x32x32xf32>
    %25 = arith.addf %21, %24 : vector<4x32x32xf32>
    %26 = vector.shape_cast %25 : vector<4x32x32xf32> to vector<32x4x32xf32>
    %27 = vector.extract_strided_slice %26 {offsets = [0, 0, 0], sizes = [32, 1, 32], strides = [1, 1, 1]} : vector<32x4x32xf32> to vector<32x1x32xf32>
    %28 = vector.shape_cast %27 : vector<32x1x32xf32> to vector<32x32xf32>
    %29 = vector.extract_strided_slice %26 {offsets = [0, 1, 0], sizes = [32, 1, 32], strides = [1, 1, 1]} : vector<32x4x32xf32> to vector<32x1x32xf32>
    %30 = vector.shape_cast %29 : vector<32x1x32xf32> to vector<32x32xf32>
    %31 = arith.maximumf %28, %30 : vector<32x32xf32>
    %32 = vector.shape_cast %31 : vector<32x32xf32> to vector<4x8x32xf32>
    %33 = vector.extract_strided_slice %26 {offsets = [0, 2, 0], sizes = [32, 1, 32], strides = [1, 1, 1]} : vector<32x4x32xf32> to vector<32x1x32xf32>
    %34 = vector.shape_cast %33 : vector<32x1x32xf32> to vector<32x32xf32>
    %35 = vector.extract_strided_slice %26 {offsets = [0, 3, 0], sizes = [32, 1, 32], strides = [1, 1, 1]} : vector<32x4x32xf32> to vector<32x1x32xf32>
    %36 = vector.shape_cast %35 : vector<32x1x32xf32> to vector<32x32xf32>
    %37 = arith.maximumf %34, %36 : vector<32x32xf32>
    %38 = vector.shape_cast %37 : vector<32x32xf32> to vector<4x8x32xf32>
    %cst_7 = arith.constant 0.000000e+00 : f32
    %39 = vector.broadcast %cst_7 : f32 to vector<4x1x32xf32>
    %40 = tpu.concatenate %39, %38 in 1 : vector<4x1x32xf32>, vector<4x8x32xf32> -> vector<4x9x32xf32>
    %cst_8 = arith.constant 0.000000e+00 : f32
    %41 = vector.broadcast %cst_8 : f32 to vector<4x1x32xf32>
    %42 = tpu.concatenate %32, %41 in 1 : vector<4x8x32xf32>, vector<4x1x32xf32> -> vector<4x9x32xf32>
    %43 = tpu.concatenate %40, %42 in 2 : vector<4x9x32xf32>, vector<4x9x32xf32> -> vector<4x9x64xf32>
    %44 = vector.extract_strided_slice %43 {offsets = [0, 0, 0], sizes = [4, 8, 64], strides = [1, 1, 1]} : vector<4x9x64xf32> to vector<4x8x64xf32>
    %45 = vector.extract_strided_slice %43 {offsets = [0, 1, 0], sizes = [4, 8, 64], strides = [1, 1, 1]} : vector<4x9x64xf32> to vector<4x8x64xf32>
    %46 = tpu.concatenate %44, %45 in 2 : vector<4x8x64xf32>, vector<4x8x64xf32> -> vector<4x8x128xf32>
    %c0_9 = arith.constant 0 : index
    %c0_10 = arith.constant 0 : index
    %47 = vector.load %arg3[%c0_9, %c0_10] : memref<128x32xbf16, #tpu.memory_space<vmem>>, vector<128x32xbf16>
    %48 = vector.shape_cast %46 : vector<4x8x128xf32> to vector<32x128xf32>
    %49 = arith.truncf %48 : vector<32x128xf32> to vector<32x128xbf16>
    %cst_11 = arith.constant dense<0.000000e+00> : vector<32x32xf32>
    %50 = tpu.matmul %49, %47, %cst_11 {dimension_numbers = #tpu.dot_dimension_numbers<[1], [0], [0], [1], [0, 0, 1, 1], [], []>} : vector<32x128xbf16>, vector<128x32xbf16>, vector<32x32xf32> -> vector<32x32xf32>
    %51 = vector.shape_cast %50 : vector<32x32xf32> to vector<4x8x32xf32>
    %c0_12 = arith.constant 0 : index
    %c0_13 = arith.constant 0 : index
    %52 = vector.load %arg4[%c0_12, %c0_13] : memref<3x32xf32, #tpu.memory_space<vmem>>, vector<3x32xf32>
    %53 = vector.extract_strided_slice %52 {offsets = [0, 0], sizes = [1, 32], strides = [1, 1]} : vector<3x32xf32> to vector<1x32xf32>
    %54 = vector.shape_cast %53 : vector<1x32xf32> to vector<1x1x32xf32>
    %55 = vector.broadcast %54 : vector<1x1x32xf32> to vector<4x8x32xf32>
    %56 = arith.addf %51, %55 : vector<4x8x32xf32>
    %cst_14 = arith.constant 0.000000e+00 : f32
    %57 = vector.broadcast %cst_14 : f32 to vector<4x8x32xf32>
    %58 = arith.maximumf %56, %57 : vector<4x8x32xf32>
    %59 = vector.extract_strided_slice %52 {offsets = [1, 0], sizes = [1, 32], strides = [1, 1]} : vector<3x32xf32> to vector<1x32xf32>
    %60 = vector.shape_cast %59 : vector<1x32xf32> to vector<1x1x32xf32>
    %61 = vector.broadcast %60 : vector<1x1x32xf32> to vector<4x8x32xf32>
    %62 = arith.mulf %58, %61 : vector<4x8x32xf32>
    %63 = vector.extract_strided_slice %52 {offsets = [2, 0], sizes = [1, 32], strides = [1, 1]} : vector<3x32xf32> to vector<1x32xf32>
    %64 = vector.shape_cast %63 : vector<1x32xf32> to vector<1x1x32xf32>
    %65 = vector.broadcast %64 : vector<1x1x32xf32> to vector<4x8x32xf32>
    %66 = arith.addf %62, %65 : vector<4x8x32xf32>
    %67 = vector.shape_cast %66 : vector<4x8x32xf32> to vector<16x2x32xf32>
    %68 = vector.extract_strided_slice %67 {offsets = [0, 0, 0], sizes = [16, 1, 32], strides = [1, 1, 1]} : vector<16x2x32xf32> to vector<16x1x32xf32>
    %69 = vector.shape_cast %68 : vector<16x1x32xf32> to vector<16x32xf32>
    %70 = vector.extract_strided_slice %67 {offsets = [0, 1, 0], sizes = [16, 1, 32], strides = [1, 1, 1]} : vector<16x2x32xf32> to vector<16x1x32xf32>
    %71 = vector.shape_cast %70 : vector<16x1x32xf32> to vector<16x32xf32>
    %72 = arith.maximumf %69, %71 : vector<16x32xf32>
    %73 = vector.shape_cast %72 : vector<16x32xf32> to vector<4x4x32xf32>
    %74 = vector.extract_strided_slice %73 {offsets = [0, 0, 0], sizes = [2, 4, 32], strides = [1, 1, 1]} : vector<4x4x32xf32> to vector<2x4x32xf32>
    %cst_15 = arith.constant 0.000000e+00 : f32
    %75 = vector.broadcast %cst_15 : f32 to vector<2x1x32xf32>
    %cst_16 = arith.constant 0.000000e+00 : f32
    %76 = vector.broadcast %cst_16 : f32 to vector<2x1x32xf32>
    %77 = tpu.concatenate %75, %74, %76 in 1 : vector<2x1x32xf32>, vector<2x4x32xf32>, vector<2x1x32xf32> -> vector<2x6x32xf32>
    %78 = vector.extract_strided_slice %73 {offsets = [2, 0, 0], sizes = [2, 4, 32], strides = [1, 1, 1]} : vector<4x4x32xf32> to vector<2x4x32xf32>
    %cst_17 = arith.constant 0.000000e+00 : f32
    %79 = vector.broadcast %cst_17 : f32 to vector<2x1x32xf32>
    %cst_18 = arith.constant 0.000000e+00 : f32
    %80 = vector.broadcast %cst_18 : f32 to vector<2x1x32xf32>
    %81 = tpu.concatenate %79, %78, %80 in 1 : vector<2x1x32xf32>, vector<2x4x32xf32>, vector<2x1x32xf32> -> vector<2x6x32xf32>
    %82 = tpu.concatenate %77, %81 in 2 : vector<2x6x32xf32>, vector<2x6x32xf32> -> vector<2x6x64xf32>
    %83 = vector.extract_strided_slice %82 {offsets = [0, 0, 0], sizes = [2, 5, 64], strides = [1, 1, 1]} : vector<2x6x64xf32> to vector<2x5x64xf32>
    %84 = vector.extract_strided_slice %82 {offsets = [0, 1, 0], sizes = [2, 5, 64], strides = [1, 1, 1]} : vector<2x6x64xf32> to vector<2x5x64xf32>
    %85 = tpu.concatenate %83, %84 in 2 : vector<2x5x64xf32>, vector<2x5x64xf32> -> vector<2x5x128xf32>
    %86 = vector.shape_cast %85 : vector<2x5x128xf32> to vector<10x128xf32>
    %87 = vector.extract_strided_slice %82 {offsets = [0, 0, 32], sizes = [2, 4, 32], strides = [1, 1, 1]} : vector<2x6x64xf32> to vector<2x4x32xf32>
    %88 = vector.extract_strided_slice %82 {offsets = [0, 1, 0], sizes = [2, 4, 64], strides = [1, 1, 1]} : vector<2x6x64xf32> to vector<2x4x64xf32>
    %89 = vector.extract_strided_slice %82 {offsets = [0, 2, 0], sizes = [2, 4, 32], strides = [1, 1, 1]} : vector<2x6x64xf32> to vector<2x4x32xf32>
    %90 = tpu.concatenate %87, %88, %89 in 2 : vector<2x4x32xf32>, vector<2x4x64xf32>, vector<2x4x32xf32> -> vector<2x4x128xf32>
    %91 = vector.shape_cast %90 : vector<2x4x128xf32> to vector<8x128xf32>
    %92 = tpu.concatenate %86, %91 in 0 : vector<10x128xf32>, vector<8x128xf32> -> vector<18x128xf32>
    %c0_19 = arith.constant 0 : index
    %c0_20 = arith.constant 0 : index
    %93 = vector.load %arg5[%c0_19, %c0_20] : memref<128x32xbf16, #tpu.memory_space<vmem>>, vector<128x32xbf16>
    %94 = arith.truncf %92 : vector<18x128xf32> to vector<18x128xbf16>
    %cst_21 = arith.constant dense<0.000000e+00> : vector<18x32xf32>
    %95 = tpu.matmul %94, %93, %cst_21 {dimension_numbers = #tpu.dot_dimension_numbers<[1], [0], [0], [1], [0, 0, 1, 1], [], []>} : vector<18x128xbf16>, vector<128x32xbf16>, vector<18x32xf32> -> vector<18x32xf32>
    %c0_22 = arith.constant 0 : index
    %c0_23 = arith.constant 0 : index
    %96 = vector.load %arg6[%c0_22, %c0_23] : memref<3x32xf32, #tpu.memory_space<vmem>>, vector<3x32xf32>
    %97 = vector.extract_strided_slice %96 {offsets = [0, 0], sizes = [1, 32], strides = [1, 1]} : vector<3x32xf32> to vector<1x32xf32>
    %98 = vector.broadcast %97 : vector<1x32xf32> to vector<18x32xf32>
    %99 = arith.addf %95, %98 : vector<18x32xf32>
    %cst_24 = arith.constant 0.000000e+00 : f32
    %100 = vector.broadcast %cst_24 : f32 to vector<18x32xf32>
    %101 = arith.maximumf %99, %100 : vector<18x32xf32>
    %102 = vector.extract_strided_slice %96 {offsets = [1, 0], sizes = [1, 32], strides = [1, 1]} : vector<3x32xf32> to vector<1x32xf32>
    %103 = vector.broadcast %102 : vector<1x32xf32> to vector<18x32xf32>
    %104 = arith.mulf %101, %103 : vector<18x32xf32>
    %105 = vector.extract_strided_slice %96 {offsets = [2, 0], sizes = [1, 32], strides = [1, 1]} : vector<3x32xf32> to vector<1x32xf32>
    %106 = vector.broadcast %105 : vector<1x32xf32> to vector<18x32xf32>
    %107 = arith.addf %104, %106 : vector<18x32xf32>
    %108 = vector.extract_strided_slice %107 {offsets = [0, 0], sizes = [10, 32], strides = [1, 1]} : vector<18x32xf32> to vector<10x32xf32>
    %109 = vector.shape_cast %108 : vector<10x32xf32> to vector<2x5x32xf32>
    %110 = vector.extract_strided_slice %107 {offsets = [10, 0], sizes = [8, 32], strides = [1, 1]} : vector<18x32xf32> to vector<8x32xf32>
    %111 = vector.shape_cast %110 : vector<8x32xf32> to vector<2x4x32xf32>
    %112 = vector.extract_strided_slice %109 {offsets = [0, 0, 0], sizes = [1, 5, 32], strides = [1, 1, 1]} : vector<2x5x32xf32> to vector<1x5x32xf32>
    %113 = vector.shape_cast %112 : vector<1x5x32xf32> to vector<5x32xf32>
    %114 = tpu.transpose %113, [1, 0] : vector<5x32xf32> -> vector<32x5xf32>
    %115 = vector.extract_strided_slice %111 {offsets = [0, 0, 0], sizes = [1, 4, 32], strides = [1, 1, 1]} : vector<2x4x32xf32> to vector<1x4x32xf32>
    %116 = vector.shape_cast %115 : vector<1x4x32xf32> to vector<4x32xf32>
    %117 = tpu.transpose %116, [1, 0] : vector<4x32xf32> -> vector<32x4xf32>
    %118 = tpu.concatenate %114, %117 in 1 : vector<32x5xf32>, vector<32x4xf32> -> vector<32x9xf32>
    %119 = vector.extract_strided_slice %109 {offsets = [1, 0, 0], sizes = [1, 5, 32], strides = [1, 1, 1]} : vector<2x5x32xf32> to vector<1x5x32xf32>
    %120 = vector.shape_cast %119 : vector<1x5x32xf32> to vector<5x32xf32>
    %121 = tpu.transpose %120, [1, 0] : vector<5x32xf32> -> vector<32x5xf32>
    %122 = vector.extract_strided_slice %111 {offsets = [1, 0, 0], sizes = [1, 4, 32], strides = [1, 1, 1]} : vector<2x4x32xf32> to vector<1x4x32xf32>
    %123 = vector.shape_cast %122 : vector<1x4x32xf32> to vector<4x32xf32>
    %124 = tpu.transpose %123, [1, 0] : vector<4x32xf32> -> vector<32x4xf32>
    %125 = tpu.concatenate %121, %124 in 1 : vector<32x5xf32>, vector<32x4xf32> -> vector<32x9xf32>
    %126 = tpu.concatenate %118, %125 in 0 : vector<32x9xf32>, vector<32x9xf32> -> vector<64x9xf32>
    %c0_25 = arith.constant 0 : index
    %c0_26 = arith.constant 0 : index
    %127 = vector.load %arg7[%c0_25, %c0_26] : memref<9x512xbf16, #tpu.memory_space<vmem>>, vector<9x512xbf16>
    %128 = arith.truncf %126 : vector<64x9xf32> to vector<64x9xbf16>
    %cst_27 = arith.constant dense<0.000000e+00> : vector<64x512xf32>
    %129 = tpu.matmul %128, %127, %cst_27 {dimension_numbers = #tpu.dot_dimension_numbers<[1], [0], [0], [1], [0, 0, 1, 1], [], []>} : vector<64x9xbf16>, vector<9x512xbf16>, vector<64x512xf32> -> vector<64x512xf32>
    %c0_28 = arith.constant 0 : index
    %c0_29 = arith.constant 0 : index
    %130 = vector.load %arg8[%c0_28, %c0_29] : memref<1x512xf32, #tpu.memory_space<vmem>>, vector<1x512xf32>
    %131 = vector.broadcast %130 : vector<1x512xf32> to vector<64x512xf32>
    %132 = arith.addf %129, %131 : vector<64x512xf32>
    %c0_30 = arith.constant 0 : index
    %c0_31 = arith.constant 0 : index
    %133 = vector.load %arg9[%c0_30, %c0_31] : memref<128x512xbf16, #tpu.memory_space<vmem>>, vector<128x512xbf16>
    %cst_32 = arith.constant 0.000000e+00 : f32
    %134 = vector.broadcast %cst_32 : f32 to vector<32x128xf32>
    %cst_33 = arith.constant 0.000000e+00 : f32
    %135 = vector.broadcast %cst_33 : f32 to vector<32x128xf32>
    %136 = vector.extract_strided_slice %132 {offsets = [0, 0], sizes = [32, 512], strides = [1, 1]} : vector<64x512xf32> to vector<32x512xf32>
    %137 = arith.truncf %134 : vector<32x128xf32> to vector<32x128xbf16>
    %cst_34 = arith.constant dense<0.000000e+00> : vector<32x512xf32>
    %138 = tpu.matmul %137, %133, %cst_34 {dimension_numbers = #tpu.dot_dimension_numbers<[1], [0], [0], [1], [0, 0, 1, 1], [], []>} : vector<32x128xbf16>, vector<128x512xbf16>, vector<32x512xf32> -> vector<32x512xf32>
    %139 = arith.addf %136, %138 : vector<32x512xf32>
    %140 = vector.extract_strided_slice %139 {offsets = [0, 0], sizes = [32, 128], strides = [1, 1]} : vector<32x512xf32> to vector<32x128xf32>
    %141 = arith.negf %140 : vector<32x128xf32>
    %142 = math.exp %141 : vector<32x128xf32>
    %cst_35 = arith.constant 1.000000e+00 : f32
    %143 = vector.broadcast %cst_35 : f32 to vector<32x128xf32>
    %144 = arith.addf %143, %142 : vector<32x128xf32>
    %145 = arith.divf %143, %144 : vector<32x128xf32>
    %146 = vector.extract_strided_slice %139 {offsets = [0, 128], sizes = [32, 128], strides = [1, 1]} : vector<32x512xf32> to vector<32x128xf32>
    %147 = arith.negf %146 : vector<32x128xf32>
    %148 = math.exp %147 : vector<32x128xf32>
    %cst_36 = arith.constant 1.000000e+00 : f32
    %149 = vector.broadcast %cst_36 : f32 to vector<32x128xf32>
    %150 = arith.addf %149, %148 : vector<32x128xf32>
    %151 = arith.divf %149, %150 : vector<32x128xf32>
    %152 = vector.extract_strided_slice %139 {offsets = [0, 256], sizes = [32, 128], strides = [1, 1]} : vector<32x512xf32> to vector<32x128xf32>
    %153 = math.tanh %152 : vector<32x128xf32>
    %154 = vector.extract_strided_slice %139 {offsets = [0, 384], sizes = [32, 128], strides = [1, 1]} : vector<32x512xf32> to vector<32x128xf32>
    %155 = arith.negf %154 : vector<32x128xf32>
    %156 = math.exp %155 : vector<32x128xf32>
    %cst_37 = arith.constant 1.000000e+00 : f32
    %157 = vector.broadcast %cst_37 : f32 to vector<32x128xf32>
    %158 = arith.addf %157, %156 : vector<32x128xf32>
    %159 = arith.divf %157, %158 : vector<32x128xf32>
    %160 = arith.mulf %151, %135 : vector<32x128xf32>
    %161 = arith.mulf %145, %153 : vector<32x128xf32>
    %162 = arith.addf %160, %161 : vector<32x128xf32>
    %163 = math.tanh %162 : vector<32x128xf32>
    %164 = arith.mulf %159, %163 : vector<32x128xf32>
    %165 = vector.extract_strided_slice %164 {offsets = [0, 0], sizes = [32, 40], strides = [1, 1]} : vector<32x128xf32> to vector<32x40xf32>
    %166 = vector.extract_strided_slice %132 {offsets = [32, 0], sizes = [32, 512], strides = [1, 1]} : vector<64x512xf32> to vector<32x512xf32>
    %167 = arith.truncf %164 : vector<32x128xf32> to vector<32x128xbf16>
    %cst_38 = arith.constant dense<0.000000e+00> : vector<32x512xf32>
    %168 = tpu.matmul %167, %133, %cst_38 {dimension_numbers = #tpu.dot_dimension_numbers<[1], [0], [0], [1], [0, 0, 1, 1], [], []>} : vector<32x128xbf16>, vector<128x512xbf16>, vector<32x512xf32> -> vector<32x512xf32>
    %169 = arith.addf %166, %168 : vector<32x512xf32>
    %170 = vector.extract_strided_slice %169 {offsets = [0, 0], sizes = [32, 128], strides = [1, 1]} : vector<32x512xf32> to vector<32x128xf32>
    %171 = arith.negf %170 : vector<32x128xf32>
    %172 = math.exp %171 : vector<32x128xf32>
    %cst_39 = arith.constant 1.000000e+00 : f32
    %173 = vector.broadcast %cst_39 : f32 to vector<32x128xf32>
    %174 = arith.addf %173, %172 : vector<32x128xf32>
    %175 = arith.divf %173, %174 : vector<32x128xf32>
    %176 = vector.extract_strided_slice %169 {offsets = [0, 128], sizes = [32, 128], strides = [1, 1]} : vector<32x512xf32> to vector<32x128xf32>
    %177 = arith.negf %176 : vector<32x128xf32>
    %178 = math.exp %177 : vector<32x128xf32>
    %cst_40 = arith.constant 1.000000e+00 : f32
    %179 = vector.broadcast %cst_40 : f32 to vector<32x128xf32>
    %180 = arith.addf %179, %178 : vector<32x128xf32>
    %181 = arith.divf %179, %180 : vector<32x128xf32>
    %182 = vector.extract_strided_slice %169 {offsets = [0, 256], sizes = [32, 128], strides = [1, 1]} : vector<32x512xf32> to vector<32x128xf32>
    %183 = math.tanh %182 : vector<32x128xf32>
    %184 = vector.extract_strided_slice %169 {offsets = [0, 384], sizes = [32, 128], strides = [1, 1]} : vector<32x512xf32> to vector<32x128xf32>
    %185 = arith.negf %184 : vector<32x128xf32>
    %186 = math.exp %185 : vector<32x128xf32>
    %cst_41 = arith.constant 1.000000e+00 : f32
    %187 = vector.broadcast %cst_41 : f32 to vector<32x128xf32>
    %188 = arith.addf %187, %186 : vector<32x128xf32>
    %189 = arith.divf %187, %188 : vector<32x128xf32>
    %190 = arith.mulf %181, %162 : vector<32x128xf32>
    %191 = arith.mulf %175, %183 : vector<32x128xf32>
    %192 = arith.addf %190, %191 : vector<32x128xf32>
    %193 = math.tanh %192 : vector<32x128xf32>
    %194 = arith.mulf %189, %193 : vector<32x128xf32>
    %195 = vector.extract_strided_slice %194 {offsets = [0, 0], sizes = [32, 40], strides = [1, 1]} : vector<32x128xf32> to vector<32x40xf32>
    %196 = vector.shape_cast %165 : vector<32x40xf32> to vector<32x1x40xf32>
    %197 = vector.shape_cast %195 : vector<32x40xf32> to vector<32x1x40xf32>
    %198 = tpu.concatenate %196, %197 in 1 : vector<32x1x40xf32>, vector<32x1x40xf32> -> vector<32x2x40xf32>
    %199 = arith.truncf %198 : vector<32x2x40xf32> to vector<32x2x40xbf16>
    %c0_42 = arith.constant 0 : index
    %c0_43 = arith.constant 0 : index
    %c0_44 = arith.constant 0 : index
    %200 = vector.load %arg10[%c0_42, %c0_43, %c0_44] : memref<32x40x128xbf16, #tpu.memory_space<vmem>>, vector<32x40x128xbf16>
    %cst_45 = arith.constant dense<0.000000e+00> : vector<32x2x128xf32>
    %201 = tpu.matmul %199, %200, %cst_45 {dimension_numbers = #tpu.dot_dimension_numbers<[2], [1], [1], [2], [0, 0, 0, 1, 1, 2], [0], [0]>} : vector<32x2x40xbf16>, vector<32x40x128xbf16>, vector<32x2x128xf32> -> vector<32x2x128xf32>
    %cst_46 = arith.constant dense<0.000000e+00> : vector<2x128xf32>
    %202 = vector.multi_reduction <add>, %201, %cst_46 [0] : vector<32x2x128xf32> to vector<2x128xf32>
    %c0_47 = arith.constant 0 : index
    %c0_48 = arith.constant 0 : index
    %203 = vector.load %arg11[%c0_47, %c0_48] : memref<1x128xf32, #tpu.memory_space<vmem>>, vector<1x128xf32>
    %204 = vector.broadcast %203 : vector<1x128xf32> to vector<2x128xf32>
    %205 = arith.addf %202, %204 : vector<2x128xf32>
    %cst_49 = arith.constant 0.000000e+00 : f32
    %206 = vector.broadcast %cst_49 : f32 to vector<2x128xf32>
    %207 = arith.maximumf %205, %206 : vector<2x128xf32>
    %c0_50 = arith.constant 0 : index
    %c0_51 = arith.constant 0 : index
    %208 = vector.load %arg12[%c0_50, %c0_51] : memref<128x128xbf16, #tpu.memory_space<vmem>>, vector<128x128xbf16>
    %209 = arith.truncf %207 : vector<2x128xf32> to vector<2x128xbf16>
    %cst_52 = arith.constant dense<0.000000e+00> : vector<2x128xf32>
    %210 = tpu.matmul %209, %208, %cst_52 {dimension_numbers = #tpu.dot_dimension_numbers<[1], [0], [0], [1], [0, 0, 1, 1], [], []>} : vector<2x128xbf16>, vector<128x128xbf16>, vector<2x128xf32> -> vector<2x128xf32>
    %c0_53 = arith.constant 0 : index
    %c0_54 = arith.constant 0 : index
    %211 = vector.load %arg13[%c0_53, %c0_54] : memref<1x128xf32, #tpu.memory_space<vmem>>, vector<1x128xf32>
    %212 = vector.broadcast %211 : vector<1x128xf32> to vector<2x128xf32>
    %213 = arith.addf %210, %212 : vector<2x128xf32>
    %c0_55 = arith.constant 0 : index
    %c0_56 = arith.constant 0 : index
    %214 = vector.load %arg14[%c0_55, %c0_56] : memref<2x128xf32, #tpu.memory_space<vmem>>, vector<2x128xf32>
    tpu.vector_store %arg14[%c0_55, %c0_56], %213 {strides = array<i32>} : memref<2x128xf32, #tpu.memory_space<vmem>>, vector<2x128xf32>,
    return
  }
}

</mosaic_0001>

<llo_original>
// kernel: bin_conv_lstm_forward.1
$region0: #{bin_conv_lstm_forward.1}
  #allocation0 [shape = 'u32[]', space=smem, size = 0x4, offset = 0x4, fixed_abs, tag = 'smem constant byte address 0x4 - core index']
  #allocation1 [shape = 'u32[144,128]{1,0:T(1,128)}', space=vmem, size = 0x12000, scoped, tag = 'internal scratch']
  %s0 = inlined_call_operand.vmem [shape: f32[4,35,8], index: 0, kind: input, shape index: {}]
  %s1 = inlined_call_operand.vmem [shape: bf16[32,32], index: 1, kind: input, shape index: {}]
  %s2 = inlined_call_operand.vmem [shape: f32[3,32], index: 2, kind: input, shape index: {}]
  %s3 = inlined_call_operand.vmem [shape: bf16[128,32], index: 3, kind: input, shape index: {}]
  %s4 = inlined_call_operand.vmem [shape: f32[3,32], index: 4, kind: input, shape index: {}]
  %s5 = inlined_call_operand.vmem [shape: bf16[128,32], index: 5, kind: input, shape index: {}]
  %s6 = inlined_call_operand.vmem [shape: f32[3,32], index: 6, kind: input, shape index: {}]
  %s7 = inlined_call_operand.vmem [shape: bf16[9,512], index: 7, kind: input, shape index: {}]
  %s8 = inlined_call_operand.vmem [shape: f32[1,512], index: 8, kind: input, shape index: {}]
  %s9 = inlined_call_operand.vmem [shape: bf16[128,512], index: 9, kind: input, shape index: {}]
  %s10 = inlined_call_operand.vmem [shape: bf16[32,40,128], index: 10, kind: input, shape index: {}]
  %s11 = inlined_call_operand.vmem [shape: f32[1,128], index: 11, kind: input, shape index: {}]
  %s12 = inlined_call_operand.vmem [shape: bf16[128,128], index: 12, kind: input, shape index: {}]
  %s13 = inlined_call_operand.vmem [shape: f32[1,128], index: 13, kind: input, shape index: {}]
  %s14 = inlined_call_operand.hbm [shape: f32[2,128], index: 14, kind: output, shape index: {}]
  %s15 = sld [smem:[#allocation0]]
  $region66: #{bin_conv_lstm_forward.1} parent=0
    _
  %s17 = ssub.s32 1, %s15
  %s18 = scalar_select 0, %s17, %s15
  $region1: #{bin_conv_lstm_forward.1} parent=0
    #allocation2 [shape = 'u8[1024]{0}', space=vmem, size = 0x400, scoped, tag = 'output window, operand 0, single buffered']
    #allocation3 [shape = 's32[1]{0}', space=sflag, size = 0x4, scoped, tag = 'scoped memory for bin_conv_lstm_forward.1']
    %19 = vsyncpa [#allocation3], 0
    // Predicated region
    $region2: #{bin_conv_lstm_forward.1} parent=1 // pred_check
      _
    $region3: #{bin_conv_lstm_forward.1} parent=1 // pred_check_branch
      %21 = sbr.rel (0) target = $region5
    $region4: #{bin_conv_lstm_forward.1} parent=1 // pred_region
      _
    $region5: #{bin_conv_lstm_forward.1} parent=1 // pred_fallthru
      _
    // Predicated region
    $region6: #{bin_conv_lstm_forward.1} parent=1 // pred_check
      _
    $region7: #{bin_conv_lstm_forward.1} parent=1 // pred_check_branch
      %23 = sbr.rel (0) target = $region9
    $region8: #{bin_conv_lstm_forward.1} parent=1 // pred_region
      _
    $region9: #{bin_conv_lstm_forward.1} parent=1 // pred_fallthru
      _
    // Predicated region
    $region10: #{bin_conv_lstm_forward.1} parent=1 // pred_check
      _
    $region11: #{bin_conv_lstm_forward.1} parent=1 // pred_check_branch
      %25 = sbr.rel (0) target = $region13
    $region12: #{bin_conv_lstm_forward.1} parent=1 // pred_region
      _
    $region13: #{bin_conv_lstm_forward.1} parent=1 // pred_fallthru
      _
    // Predicated region
    $region14: #{bin_conv_lstm_forward.1} parent=1 // pred_check
      _
    $region15: #{bin_conv_lstm_forward.1} parent=1 // pred_check_branch
      %27 = sbr.rel (0) target = $region17
    $region16: #{bin_conv_lstm_forward.1} parent=1 // pred_region
      _
    $region17: #{bin_conv_lstm_forward.1} parent=1 // pred_fallthru
      _
    // Predicated region
    $region18: #{bin_conv_lstm_forward.1} parent=1 // pred_check
      _
    $region19: #{bin_conv_lstm_forward.1} parent=1 // pred_check_branch
      %29 = sbr.rel (0) target = $region21
    $region20: #{bin_conv_lstm_forward.1} parent=1 // pred_region
      _
    $region21: #{bin_conv_lstm_forward.1} parent=1 // pred_fallthru
      _
    // Predicated region
    $region22: #{bin_conv_lstm_forward.1} parent=1 // pred_check
      _
    $region23: #{bin_conv_lstm_forward.1} parent=1 // pred_check_branch
      %31 = sbr.rel (0) target = $region25
    $region24: #{bin_conv_lstm_forward.1} parent=1 // pred_region
      _
    $region25: #{bin_conv_lstm_forward.1} parent=1 // pred_fallthru
      _
    // Predicated region
    $region26: #{bin_conv_lstm_forward.1} parent=1 // pred_check
      _
    $region27: #{bin_conv_lstm_forward.1} parent=1 // pred_check_branch
      %33 = sbr.rel (0) target = $region29
    $region28: #{bin_conv_lstm_forward.1} parent=1 // pred_region
      _
    $region29: #{bin_conv_lstm_forward.1} parent=1 // pred_fallthru
      _
    // Predicated region
    $region30: #{bin_conv_lstm_forward.1} parent=1 // pred_check
      _
    $region31: #{bin_conv_lstm_forward.1} parent=1 // pred_check_branch
      %35 = sbr.rel (0) target = $region33
    $region32: #{bin_conv_lstm_forward.1} parent=1 // pred_region
      _
    $region33: #{bin_conv_lstm_forward.1} parent=1 // pred_fallthru
      _
    // Predicated region
    $region34: #{bin_conv_lstm_forward.1} parent=1 // pred_check
      _
    $region35: #{bin_conv_lstm_forward.1} parent=1 // pred_check_branch
      %37 = sbr.rel (0) target = $region37
    $region36: #{bin_conv_lstm_forward.1} parent=1 // pred_region
      _
    $region37: #{bin_conv_lstm_forward.1} parent=1 // pred_fallthru
      _
    // Predicated region
    $region38: #{bin_conv_lstm_forward.1} parent=1 // pred_check
      _
    $region39: #{bin_conv_lstm_forward.1} parent=1 // pred_check_branch
      %39 = sbr.rel (0) target = $region41
    $region40: #{bin_conv_lstm_forward.1} parent=1 // pred_region
      _
    $region41: #{bin_conv_lstm_forward.1} parent=1 // pred_fallthru
      _
    // Predicated region
    $region42: #{bin_conv_lstm_forward.1} parent=1 // pred_check
      _
    $region43: #{bin_conv_lstm_forward.1} parent=1 // pred_check_branch
      %41 = sbr.rel (0) target = $region45
    $region44: #{bin_conv_lstm_forward.1} parent=1 // pred_region
      _
    $region45: #{bin_conv_lstm_forward.1} parent=1 // pred_fallthru
      _
    // Predicated region
    $region46: #{bin_conv_lstm_forward.1} parent=1 // pred_check
      _
    $region47: #{bin_conv_lstm_forward.1} parent=1 // pred_check_branch
      %43 = sbr.rel (0) target = $region49
    $region48: #{bin_conv_lstm_forward.1} parent=1 // pred_region
      _
    $region49: #{bin_conv_lstm_forward.1} parent=1 // pred_fallthru
      _
    // Predicated region
    $region50: #{bin_conv_lstm_forward.1} parent=1 // pred_check
      _
    $region51: #{bin_conv_lstm_forward.1} parent=1 // pred_check_branch
      %45 = sbr.rel (0) target = $region53
    $region52: #{bin_conv_lstm_forward.1} parent=1 // pred_region
      _
    $region53: #{bin_conv_lstm_forward.1} parent=1 // pred_fallthru
      _
    // Predicated region
    $region54: #{bin_conv_lstm_forward.1} parent=1 // pred_check
      _
    $region55: #{bin_conv_lstm_forward.1} parent=1 // pred_check_branch
      %47 = sbr.rel (0) target = $region57
    $region56: #{bin_conv_lstm_forward.1} parent=1 // pred_region
      _
    $region57: #{bin_conv_lstm_forward.1} parent=1 // pred_fallthru
      _
    %v49 = vld [vmem:[%s0] sm:$0xff]
    %v50 = vld [vmem:[%s0 + $0x8] sm:$0xff]
    %v51 = vld [vmem:[%s0 + $0x10] sm:$0xff]
    %v52 = vld [vmem:[%s0 + $0x18] sm:$0xff]
    %v53 = vld [vmem:[%s0 + $0x20] sm:$0x7]
    %v54 = vld [vmem:[%s0 + $0x28] sm:$0xff]
    %v55 = vld [vmem:[%s0 + $0x30] sm:$0xff]
    %v56 = vld [vmem:[%s0 + $0x38] sm:$0xff]
    %v57 = vld [vmem:[%s0 + $0x40] sm:$0xff]
    %v58 = vld [vmem:[%s0 + $0x48] sm:$0x7]
    %v59 = vld [vmem:[%s0 + $0x50] sm:$0xff]
    %v60 = vld [vmem:[%s0 + $0x58] sm:$0xff]
    %v61 = vld [vmem:[%s0 + $0x60] sm:$0xff]
    %v62 = vld [vmem:[%s0 + $0x68] sm:$0xff]
    %v63 = vld [vmem:[%s0 + $0x70] sm:$0x7]
    %v64 = vld [vmem:[%s0 + $0x78] sm:$0xff]
    %v65 = vld [vmem:[%s0 + $0x80] sm:$0xff]
    %v66 = vld [vmem:[%s0 + $0x88] sm:$0xff]
    %v67 = vld [vmem:[%s0 + $0x90] sm:$0xff]
    %v68 = vld [vmem:[%s0 + $0x98] sm:$0x7]
    %vm89 = vcmask 1046528
    %v90 = vrot.slane %v49, 1
    %v91 = vrot.slane %v50, 1
    %v92 = vsel %vm89, %v90, %v91
    %v93 = vrot.slane %v51, 1
    %v94 = vsel %vm89, %v91, %v93
    %v95 = vrot.slane %v52, 1
    %v96 = vsel %vm89, %v93, %v95
    %v97 = vrot.slane %v53, 1
    %v98 = vsel %vm89, %v95, %v97
    %v99 = vrot.slane %v54, 1
    %v100 = vrot.slane %v55, 1
    %v101 = vsel %vm89, %v99, %v100
    %v102 = vrot.slane %v56, 1
    %v103 = vsel %vm89, %v100, %v102
    %v104 = vrot.slane %v57, 1
    %v105 = vsel %vm89, %v102, %v104
    %v106 = vrot.slane %v58, 1
    %v107 = vsel %vm89, %v104, %v106
    %v108 = vrot.slane %v59, 1
    %v109 = vrot.slane %v60, 1
    %v110 = vsel %vm89, %v108, %v109
    %v111 = vrot.slane %v61, 1
    %v112 = vsel %vm89, %v109, %v111
    %v113 = vrot.slane %v62, 1
    %v114 = vsel %vm89, %v111, %v113
    %v115 = vrot.slane %v63, 1
    %v116 = vsel %vm89, %v113, %v115
    %v117 = vrot.slane %v64, 1
    %v118 = vrot.slane %v65, 1
    %v119 = vsel %vm89, %v117, %v118
    %v120 = vrot.slane %v66, 1
    %v121 = vsel %vm89, %v118, %v120
    %v122 = vrot.slane %v67, 1
    %v123 = vsel %vm89, %v120, %v122
    %v124 = vrot.slane %v68, 1
    %v125 = vsel %vm89, %v122, %v124
    %126 = vrot.lane.b32.xlu0 %v92, 8
    %v127 = vpop.permute.xlu0 %126
    %128 = vrot.lane.b32.xlu0 %v94, 8
    %v129 = vpop.permute.xlu0 %128
    %130 = vrot.lane.b32.xlu0 %v96, 8
    %v131 = vpop.permute.xlu0 %130
    %132 = vrot.lane.b32.xlu0 %v98, 8
    %v133 = vpop.permute.xlu0 %132
    %134 = vrot.lane.b32.xlu0 %v101, 8
    %v135 = vpop.permute.xlu0 %134
    %136 = vrot.lane.b32.xlu0 %v103, 8
    %v137 = vpop.permute.xlu0 %136
    %138 = vrot.lane.b32.xlu0 %v105, 8
    %v139 = vpop.permute.xlu0 %138
    %140 = vrot.lane.b32.xlu0 %v107, 8
    %v141 = vpop.permute.xlu0 %140
    %142 = vrot.lane.b32.xlu0 %v110, 8
    %v143 = vpop.permute.xlu0 %142
    %144 = vrot.lane.b32.xlu0 %v112, 8
    %v145 = vpop.permute.xlu0 %144
    %146 = vrot.lane.b32.xlu0 %v114, 8
    %v147 = vpop.permute.xlu0 %146
    %148 = vrot.lane.b32.xlu0 %v116, 8
    %v149 = vpop.permute.xlu0 %148
    %150 = vrot.lane.b32.xlu0 %v119, 8
    %v151 = vpop.permute.xlu0 %150
    %152 = vrot.lane.b32.xlu0 %v121, 8
    %v153 = vpop.permute.xlu0 %152
    %154 = vrot.lane.b32.xlu0 %v123, 8
    %v155 = vpop.permute.xlu0 %154
    %156 = vrot.lane.b32.xlu0 %v125, 8
    %v157 = vpop.permute.xlu0 %156
    %vm174 = vcmask 1045504
    %v175 = vrot.slane %v49, 2
    %v176 = vrot.slane %v50, 2
    %v177 = vsel %vm174, %v175, %v176
    %v178 = vrot.slane %v51, 2
    %v179 = vsel %vm174, %v176, %v178
    %v180 = vrot.slane %v52, 2
    %v181 = vsel %vm174, %v178, %v180
    %v182 = vrot.slane %v53, 2
    %v183 = vsel %vm174, %v180, %v182
    %v184 = vrot.slane %v54, 2
    %v185 = vrot.slane %v55, 2
    %v186 = vsel %vm174, %v184, %v185
    %v187 = vrot.slane %v56, 2
    %v188 = vsel %vm174, %v185, %v187
    %v189 = vrot.slane %v57, 2
    %v190 = vsel %vm174, %v187, %v189
    %v191 = vrot.slane %v58, 2
    %v192 = vsel %vm174, %v189, %v191
    %v193 = vrot.slane %v59, 2
    %v194 = vrot.slane %v60, 2
    %v195 = vsel %vm174, %v193, %v194
    %v196 = vrot.slane %v61, 2
    %v197 = vsel %vm174, %v194, %v196
    %v198 = vrot.slane %v62, 2
    %v199 = vsel %vm174, %v196, %v198
    %v200 = vrot.slane %v63, 2
    %v201 = vsel %vm174, %v198, %v200
    %v202 = vrot.slane %v64, 2
    %v203 = vrot.slane %v65, 2
    %v204 = vsel %vm174, %v202, %v203
    %v205 = vrot.slane %v66, 2
    %v206 = vsel %vm174, %v203, %v205
    %v207 = vrot.slane %v67, 2
    %v208 = vsel %vm174, %v205, %v207
    %v209 = vrot.slane %v68, 2
    %v210 = vsel %vm174, %v207, %v209
    %211 = vrot.lane.b32.xlu0 %v177, 16
    %v212 = vpop.permute.xlu0 %211
    %213 = vrot.lane.b32.xlu0 %v179, 16
    %v214 = vpop.permute.xlu0 %213
    %215 = vrot.lane.b32.xlu0 %v181, 16
    %v216 = vpop.permute.xlu0 %215
    %217 = vrot.lane.b32.xlu0 %v183, 16
    %v218 = vpop.permute.xlu0 %217
    %219 = vrot.lane.b32.xlu0 %v186, 16
    %v220 = vpop.permute.xlu0 %219
    %221 = vrot.lane.b32.xlu0 %v188, 16
    %v222 = vpop.permute.xlu0 %221
    %223 = vrot.lane.b32.xlu0 %v190, 16
    %v224 = vpop.permute.xlu0 %223
    %225 = vrot.lane.b32.xlu0 %v192, 16
    %v226 = vpop.permute.xlu0 %225
    %227 = vrot.lane.b32.xlu0 %v195, 16
    %v228 = vpop.permute.xlu0 %227
    %229 = vrot.lane.b32.xlu0 %v197, 16
    %v230 = vpop.permute.xlu0 %229
    %231 = vrot.lane.b32.xlu0 %v199, 16
    %v232 = vpop.permute.xlu0 %231
    %233 = vrot.lane.b32.xlu0 %v201, 16
    %v234 = vpop.permute.xlu0 %233
    %235 = vrot.lane.b32.xlu0 %v204, 16
    %v236 = vpop.permute.xlu0 %235
    %237 = vrot.lane.b32.xlu0 %v206, 16
    %v238 = vpop.permute.xlu0 %237
    %239 = vrot.lane.b32.xlu0 %v208, 16
    %v240 = vpop.permute.xlu0 %239
    %241 = vrot.lane.b32.xlu0 %v210, 16
    %v242 = vpop.permute.xlu0 %241
    %vm259 = vcmask 1044480
    %v260 = vrot.slane %v49, 3
    %v261 = vrot.slane %v50, 3
    %v262 = vsel %vm259, %v260, %v261
    %v263 = vrot.slane %v51, 3
    %v264 = vsel %vm259, %v261, %v263
    %v265 = vrot.slane %v52, 3
    %v266 = vsel %vm259, %v263, %v265
    %v267 = vrot.slane %v53, 3
    %v268 = vsel %vm259, %v265, %v267
    %v269 = vrot.slane %v54, 3
    %v270 = vrot.slane %v55, 3
    %v271 = vsel %vm259, %v269, %v270
    %v272 = vrot.slane %v56, 3
    %v273 = vsel %vm259, %v270, %v272
    %v274 = vrot.slane %v57, 3
    %v275 = vsel %vm259, %v272, %v274
    %v276 = vrot.slane %v58, 3
    %v277 = vsel %vm259, %v274, %v276
    %v278 = vrot.slane %v59, 3
    %v279 = vrot.slane %v60, 3
    %v280 = vsel %vm259, %v278, %v279
    %v281 = vrot.slane %v61, 3
    %v282 = vsel %vm259, %v279, %v281
    %v283 = vrot.slane %v62, 3
    %v284 = vsel %vm259, %v281, %v283
    %v285 = vrot.slane %v63, 3
    %v286 = vsel %vm259, %v283, %v285
    %v287 = vrot.slane %v64, 3
    %v288 = vrot.slane %v65, 3
    %v289 = vsel %vm259, %v287, %v288
    %v290 = vrot.slane %v66, 3
    %v291 = vsel %vm259, %v288, %v290
    %v292 = vrot.slane %v67, 3
    %v293 = vsel %vm259, %v290, %v292
    %v294 = vrot.slane %v68, 3
    %v295 = vsel %vm259, %v292, %v294
    %296 = vrot.lane.b32.xlu0 %v262, 24
    %v297 = vpop.permute.xlu0 %296
    %298 = vrot.lane.b32.xlu0 %v264, 24
    %v299 = vpop.permute.xlu0 %298
    %300 = vrot.lane.b32.xlu0 %v266, 24
    %v301 = vpop.permute.xlu0 %300
    %302 = vrot.lane.b32.xlu0 %v268, 24
    %v303 = vpop.permute.xlu0 %302
    %304 = vrot.lane.b32.xlu0 %v271, 24
    %v305 = vpop.permute.xlu0 %304
    %306 = vrot.lane.b32.xlu0 %v273, 24
    %v307 = vpop.permute.xlu0 %306
    %308 = vrot.lane.b32.xlu0 %v275, 24
    %v309 = vpop.permute.xlu0 %308
    %310 = vrot.lane.b32.xlu0 %v277, 24
    %v311 = vpop.permute.xlu0 %310
    %312 = vrot.lane.b32.xlu0 %v280, 24
    %v313 = vpop.permute.xlu0 %312
    %314 = vrot.lane.b32.xlu0 %v282, 24
    %v315 = vpop.permute.xlu0 %314
    %316 = vrot.lane.b32.xlu0 %v284, 24
    %v317 = vpop.permute.xlu0 %316
    %318 = vrot.lane.b32.xlu0 %v286, 24
    %v319 = vpop.permute.xlu0 %318
    %320 = vrot.lane.b32.xlu0 %v289, 24
    %v321 = vpop.permute.xlu0 %320
    %322 = vrot.lane.b32.xlu0 %v291, 24
    %v323 = vpop.permute.xlu0 %322
    %324 = vrot.lane.b32.xlu0 %v293, 24
    %v325 = vpop.permute.xlu0 %324
    %326 = vrot.lane.b32.xlu0 %v295, 24
    %v327 = vpop.permute.xlu0 %326
    %vm344 = vcmask 64512
    %v345 = vsel %vm344, %v49, %v127
    %v346 = vsel %vm344, %v50, %v129
    %v347 = vsel %vm344, %v51, %v131
    %v348 = vsel %vm344, %v52, %v133
    %v349 = vsel %vm344, %v54, %v135
    %v350 = vsel %vm344, %v55, %v137
    %v351 = vsel %vm344, %v56, %v139
    %v352 = vsel %vm344, %v57, %v141
    %v353 = vsel %vm344, %v59, %v143
    %v354 = vsel %vm344, %v60, %v145
    %v355 = vsel %vm344, %v61, %v147
    %v356 = vsel %vm344, %v62, %v149
    %v357 = vsel %vm344, %v64, %v151
    %v358 = vsel %vm344, %v65, %v153
    %v359 = vsel %vm344, %v66, %v155
    %v360 = vsel %vm344, %v67, %v157
    %vm361 = vcmask 130048
    %v362 = vsel %vm361, %v345, %v212
    %v363 = vsel %vm361, %v346, %v214
    %v364 = vsel %vm361, %v347, %v216
    %v365 = vsel %vm361, %v348, %v218
    %v366 = vsel %vm361, %v349, %v220
    %v367 = vsel %vm361, %v350, %v222
    %v368 = vsel %vm361, %v351, %v224
    %v369 = vsel %vm361, %v352, %v226
    %v370 = vsel %vm361, %v353, %v228
    %v371 = vsel %vm361, %v354, %v230
    %v372 = vsel %vm361, %v355, %v232
    %v373 = vsel %vm361, %v356, %v234
    %v374 = vsel %vm361, %v357, %v236
    %v375 = vsel %vm361, %v358, %v238
    %v376 = vsel %vm361, %v359, %v240
    %v377 = vsel %vm361, %v360, %v242
    %vm378 = vcmask 195584
    %v379 = vsel %vm378, %v362, %v297
    %v380 = vsel %vm378, %v363, %v299
    %v381 = vsel %vm378, %v364, %v301
    %v382 = vsel %vm378, %v365, %v303
    %v383 = vsel %vm378, %v366, %v305
    %v384 = vsel %vm378, %v367, %v307
    %v385 = vsel %vm378, %v368, %v309
    %v386 = vsel %vm378, %v369, %v311
    %v387 = vsel %vm378, %v370, %v313
    %v388 = vsel %vm378, %v371, %v315
    %v389 = vsel %vm378, %v372, %v317
    %v390 = vsel %vm378, %v373, %v319
    %v391 = vsel %vm378, %v374, %v321
    %v392 = vsel %vm378, %v375, %v323
    %v393 = vsel %vm378, %v376, %v325
    %v394 = vsel %vm378, %v377, %v327
    %v395 = vld [vmem:[%s1] sm:$0xf]
    %v396 = vld [vmem:[%s1 + $0x4] sm:$0xf]
    %v397 = vld [vmem:[%s1 + $0x8] sm:$0xf]
    %v398 = vld [vmem:[%s1 + $0xc] sm:$0xf]
    %v399 = vpack.c.bf16 %v380, %v379
    %v400 = vpack.c.bf16 %v382, %v381
    %v401 = vpack.c.bf16 %v384, %v383
    %v402 = vpack.c.bf16 %v386, %v385
    %v403 = vpack.c.bf16 %v388, %v387
    %v404 = vpack.c.bf16 %v390, %v389
    %v405 = vpack.c.bf16 %v392, %v391
    %v406 = vpack.c.bf16 %v394, %v393
    %v411 = vunpack.c.l.b16 %v395
    %v412 = vunpack.c.l.b16 %v396
    %v413 = vunpack.c.l.b16 %v397
    %v414 = vunpack.c.l.b16 %v398
    %v415 = vpack.c.b16 %v412, %v411
    %v416 = vpack.c.b16 %v414, %v413
    %vm419 = vcmask 261120
    %v421 = vsel %vm419, %v399, 0
    %v424 = vsel %vm419, %v400, 0
    %v427 = vsel %vm419, %v401, 0
    %v430 = vsel %vm419, %v402, 0
    %v433 = vsel %vm419, %v403, 0
    %v436 = vsel %vm419, %v404, 0
    %v439 = vsel %vm419, %v405, 0
    %v442 = vsel %vm419, %v406, 0
    %444 = vmatprep.subr.bf16.mxu0 0
    %445 = vmatpush1.bf16.msra.mxu0 %v415
    %446 = vmatprep.subr.bf16.mxu0 0
    %447 = vmatpush1.bf16.msra.mxu0 %v416
    %448 = vmatprep.subr.bf16.mxu0 0
    %449 = vmatpush1.bf16.msra.mxu0 0
    %450 = vmatprep.subr.bf16.mxu0 0
    %451 = vmatpush1.bf16.msra.mxu0 0
    %452 = vmatprep.subr.bf16.mxu0 0
    %453 = vmatpush1.bf16.msra.mxu0 0
    %454 = vmatprep.subr.bf16.mxu0 0
    %455 = vmatpush1.bf16.msra.mxu0 0
    %456 = vmatprep.subr.bf16.mxu0 0
    %457 = vmatpush1.bf16.msra.mxu0 0
    %458 = vmatprep.subr.bf16.mxu0 0
    %459 = vmatpush1.bf16.msra.mxu0 0
    %460 = vmatprep.subr.bf16.mxu0 0
    %461 = vmatpush1.bf16.msra.mxu0 0
    %462 = vmatprep.subr.bf16.mxu0 0
    %463 = vmatpush1.bf16.msra.mxu0 0
    %464 = vmatprep.subr.bf16.mxu0 0
    %465 = vmatpush1.bf16.msra.mxu0 0
    %466 = vmatprep.subr.bf16.mxu0 0
    %467 = vmatpush1.bf16.msra.mxu0 0
    %468 = vmatprep.subr.bf16.mxu0 0
    %469 = vmatpush1.bf16.msra.mxu0 0
    %470 = vmatprep.subr.bf16.mxu0 0
    %471 = vmatpush1.bf16.msra.mxu0 0
    %472 = vmatprep.subr.bf16.mxu0 0
    %473 = vmatpush1.bf16.msra.mxu0 0
    %474 = vmatprep.subr.bf16.mxu0 0
    %475 = vmatpush1.bf16.msra.mxu0 0
    %476 = vmatprep.mubr.bf16.mxu0 0
    %477 = vmatmul.mubr.bf16.gmra.mrb[0].mxu0 %v421
    %v478 = vpop.f32.mrb[0].mxu0
    %v479 = vadd.f32 0.0, %v478
    %v480 = vpop.f32.mrb[0].mxu0
    %v481 = vpop.f32.mrb[0].mxu0
    %v482 = vadd.f32 0.0, %v481
    %v483 = vpop.f32.mrb[0].mxu0
    %484 = vmatprep.mubr.bf16.mxu0 0
    %485 = vmatmul.mubr.bf16.gmra.mrb[0].mxu0 %v424
    %v486 = vpop.f32.mrb[0].mxu0
    %v487 = vadd.f32 0.0, %v486
    %v488 = vpop.f32.mrb[0].mxu0
    %v489 = vpop.f32.mrb[0].mxu0
    %v490 = vadd.f32 0.0, %v489
    %v491 = vpop.f32.mrb[0].mxu0
    %492 = vmatprep.mubr.bf16.mxu0 0
    %493 = vmatmul.mubr.bf16.gmra.mrb[0].mxu0 %v427
    %v494 = vpop.f32.mrb[0].mxu0
    %v495 = vadd.f32 0.0, %v494
    %v496 = vpop.f32.mrb[0].mxu0
    %v497 = vpop.f32.mrb[0].mxu0
    %v498 = vadd.f32 0.0, %v497
    %v499 = vpop.f32.mrb[0].mxu0
    %500 = vmatprep.mubr.bf16.mxu0 0
    %501 = vmatmul.mubr.bf16.gmra.mrb[0].mxu0 %v430
    %v502 = vpop.f32.mrb[0].mxu0
    %v503 = vadd.f32 0.0, %v502
    %v504 = vpop.f32.mrb[0].mxu0
    %v505 = vpop.f32.mrb[0].mxu0
    %v506 = vadd.f32 0.0, %v505
    %v507 = vpop.f32.mrb[0].mxu0
    %508 = vmatprep.mubr.bf16.mxu0 0
    %509 = vmatmul.mubr.bf16.gmra.mrb[0].mxu0 %v433
    %v510 = vpop.f32.mrb[0].mxu0
    %v511 = vadd.f32 0.0, %v510
    %v512 = vpop.f32.mrb[0].mxu0
    %v513 = vpop.f32.mrb[0].mxu0
    %v514 = vadd.f32 0.0, %v513
    %v515 = vpop.f32.mrb[0].mxu0
    %516 = vmatprep.mubr.bf16.mxu0 0
    %517 = vmatmul.mubr.bf16.gmra.mrb[0].mxu0 %v436
    %v518 = vpop.f32.mrb[0].mxu0
    %v519 = vadd.f32 0.0, %v518
    %v520 = vpop.f32.mrb[0].mxu0
    %v521 = vpop.f32.mrb[0].mxu0
    %v522 = vadd.f32 0.0, %v521
    %v523 = vpop.f32.mrb[0].mxu0
    %524 = vmatprep.mubr.bf16.mxu0 0
    %525 = vmatmul.mubr.bf16.gmra.mrb[0].mxu0 %v439
    %v526 = vpop.f32.mrb[0].mxu0
    %v527 = vadd.f32 0.0, %v526
    %v528 = vpop.f32.mrb[0].mxu0
    %v529 = vpop.f32.mrb[0].mxu0
    %v530 = vadd.f32 0.0, %v529
    %v531 = vpop.f32.mrb[0].mxu0
    %532 = vmatprep.mubr.bf16.mxu0 0
    %533 = vmatmul.mubr.bf16.gmra.mrb[0].mxu0 %v442
    %v534 = vpop.f32.mrb[0].mxu0
    %v535 = vadd.f32 0.0, %v534
    %v536 = vpop.f32.mrb[0].mxu0
    %v537 = vpop.f32.mrb[0].mxu0
    %v538 = vadd.f32 0.0, %v537
    %v539 = vpop.f32.mrb[0].mxu0
    %540 = vdwg.mxu0
    %v541 = vld [vmem:[%s2] sm:$0x7]
    %v542 = vlaneseq
    %v543 = vshrl.u32 %v542, 7
    %v544 = vsub.s32 0, %v543
    %v545 = vrot.slane %v541, %v544
    %v546 = vadd.f32 %v479, %v545
    %v547 = vadd.f32 %v482, %v545
    %v548 = vadd.f32 %v487, %v545
    %v549 = vadd.f32 %v490, %v545
    %v550 = vadd.f32 %v495, %v545
    %v551 = vadd.f32 %v498, %v545
    %v552 = vadd.f32 %v503, %v545
    %v553 = vadd.f32 %v506, %v545
    %v554 = vadd.f32 %v511, %v545
    %v555 = vadd.f32 %v514, %v545
    %v556 = vadd.f32 %v519, %v545
    %v557 = vadd.f32 %v522, %v545
    %v558 = vadd.f32 %v527, %v545
    %v559 = vadd.f32 %v530, %v545
    %v560 = vadd.f32 %v535, %v545
    %v561 = vadd.f32 %v538, %v545
    %v562 = vmax.f32 %v546, 0.0
    %v563 = vmax.f32 %v547, 0.0
    %v564 = vmax.f32 %v548, 0.0
    %v565 = vmax.f32 %v549, 0.0
    %v566 = vmax.f32 %v550, 0.0
    %v567 = vmax.f32 %v551, 0.0
    %v568 = vmax.f32 %v552, 0.0
    %v569 = vmax.f32 %v553, 0.0
    %v570 = vmax.f32 %v554, 0.0
    %v571 = vmax.f32 %v555, 0.0
    %v572 = vmax.f32 %v556, 0.0
    %v573 = vmax.f32 %v557, 0.0
    %v574 = vmax.f32 %v558, 0.0
    %v575 = vmax.f32 %v559, 0.0
    %v576 = vmax.f32 %v560, 0.0
    %v577 = vmax.f32 %v561, 0.0
    %v578 = vlaneseq
    %v579 = vshrl.u32 %v578, 7
    %v580 = vsub.s32 1, %v579
    %v581 = vrot.slane %v541, %v580
    %v582 = vmul.f32 %v562, %v581
    %v583 = vmul.f32 %v563, %v581
    %v584 = vmul.f32 %v564, %v581
    %v585 = vmul.f32 %v565, %v581
    %v586 = vmul.f32 %v566, %v581
    %v587 = vmul.f32 %v567, %v581
    %v588 = vmul.f32 %v568, %v581
    %v589 = vmul.f32 %v569, %v581
    %v590 = vmul.f32 %v570, %v581
    %v591 = vmul.f32 %v571, %v581
    %v592 = vmul.f32 %v572, %v581
    %v593 = vmul.f32 %v573, %v581
    %v594 = vmul.f32 %v574, %v581
    %v595 = vmul.f32 %v575, %v581
    %v596 = vmul.f32 %v576, %v581
    %v597 = vmul.f32 %v577, %v581
    %v598 = vlaneseq
    %v599 = vshrl.u32 %v598, 7
    %v600 = vsub.s32 2, %v599
    %v601 = vrot.slane %v541, %v600
    %v602 = vadd.f32 %v582, %v601
    %v603 = vadd.f32 %v583, %v601
    %v604 = vadd.f32 %v584, %v601
    %v605 = vadd.f32 %v585, %v601
    %v606 = vadd.f32 %v586, %v601
    %v607 = vadd.f32 %v587, %v601
    %v608 = vadd.f32 %v588, %v601
    %v609 = vadd.f32 %v589, %v601
    %v610 = vadd.f32 %v590, %v601
    %v611 = vadd.f32 %v591, %v601
    %v612 = vadd.f32 %v592, %v601
    %v613 = vadd.f32 %v593, %v601
    %v614 = vadd.f32 %v594, %v601
    %v615 = vadd.f32 %v595, %v601
    %v616 = vadd.f32 %v596, %v601
    %v617 = vadd.f32 %v597, %v601
    %v634 = vcombine.high %v602, %v602
    %v635 = vcombine.high %v603, %v603
    %v636 = vcombine.high %v604, %v604
    %v637 = vcombine.high %v605, %v605
    %v638 = vcombine.high %v606, %v606
    %v639 = vcombine.high %v607, %v607
    %v640 = vcombine.high %v608, %v608
    %v641 = vcombine.high %v609, %v609
    %v642 = vcombine.high %v610, %v610
    %v643 = vcombine.high %v611, %v611
    %v644 = vcombine.high %v612, %v612
    %v645 = vcombine.high %v613, %v613
    %v646 = vcombine.high %v614, %v614
    %v647 = vcombine.high %v615, %v615
    %v648 = vcombine.high %v616, %v616
    %v649 = vcombine.high %v617, %v617
    %v666 = vrot.slane %v602, 5
    %v667 = vrot.slane %v666, 4
    %v668 = vrot.slane %v634, 5
    %v669 = vrot.slane %v668, 4
    %v670 = vrot.slane %v603, 5
    %v671 = vrot.slane %v670, 4
    %v672 = vrot.slane %v635, 5
    %v673 = vrot.slane %v672, 4
    %v674 = vrot.slane %v604, 5
    %v675 = vrot.slane %v674, 4
    %v676 = vrot.slane %v636, 5
    %v677 = vrot.slane %v676, 4
    %v678 = vrot.slane %v605, 5
    %v679 = vrot.slane %v678, 4
    %v680 = vrot.slane %v637, 5
    %v681 = vrot.slane %v680, 4
    %v682 = vrot.slane %v606, 5
    %v683 = vrot.slane %v682, 4
    %v684 = vrot.slane %v638, 5
    %v685 = vrot.slane %v684, 4
    %v686 = vrot.slane %v607, 5
    %v687 = vrot.slane %v686, 4
    %v688 = vrot.slane %v639, 5
    %v689 = vrot.slane %v688, 4
    %v690 = vrot.slane %v608, 5
    %v691 = vrot.slane %v690, 4
    %v692 = vrot.slane %v640, 5
    %v693 = vrot.slane %v692, 4
    %v694 = vrot.slane %v609, 5
    %v695 = vrot.slane %v694, 4
    %v696 = vrot.slane %v641, 5
    %v697 = vrot.slane %v696, 4
    %v698 = vrot.slane %v610, 5
    %v699 = vrot.slane %v698, 4
    %v700 = vrot.slane %v642, 5
    %v701 = vrot.slane %v700, 4
    %v702 = vrot.slane %v611, 5
    %v703 = vrot.slane %v702, 4
    %v704 = vrot.slane %v643, 5
    %v705 = vrot.slane %v704, 4
    %v706 = vrot.slane %v612, 5
    %v707 = vrot.slane %v706, 4
    %v708 = vrot.slane %v644, 5
    %v709 = vrot.slane %v708, 4
    %v710 = vrot.slane %v613, 5
    %v711 = vrot.slane %v710, 4
    %v712 = vrot.slane %v645, 5
    %v713 = vrot.slane %v712, 4
    %v714 = vrot.slane %v614, 5
    %v715 = vrot.slane %v714, 4
    %v716 = vrot.slane %v646, 5
    %v717 = vrot.slane %v716, 4
    %v718 = vrot.slane %v615, 5
    %v719 = vrot.slane %v718, 4
    %v720 = vrot.slane %v647, 5
    %v721 = vrot.slane %v720, 4
    %v722 = vrot.slane %v616, 5
    %v723 = vrot.slane %v722, 4
    %v724 = vrot.slane %v648, 5
    %v725 = vrot.slane %v724, 4
    %v726 = vrot.slane %v617, 5
    %v727 = vrot.slane %v726, 4
    %v728 = vrot.slane %v649, 5
    %v729 = vrot.slane %v728, 4
    %v762 = vmax.f32 %v602, %v667
    %v763 = vmax.f32 %v634, %v669
    %v764 = vmax.f32 %v603, %v671
    %v765 = vmax.f32 %v635, %v673
    %v766 = vmax.f32 %v604, %v675
    %v767 = vmax.f32 %v636, %v677
    %v768 = vmax.f32 %v605, %v679
    %v769 = vmax.f32 %v637, %v681
    %v770 = vmax.f32 %v606, %v683
    %v771 = vmax.f32 %v638, %v685
    %v772 = vmax.f32 %v607, %v687
    %v773 = vmax.f32 %v639, %v689
    %v774 = vmax.f32 %v608, %v691
    %v775 = vmax.f32 %v640, %v693
    %v776 = vmax.f32 %v609, %v695
    %v777 = vmax.f32 %v641, %v697
    %v778 = vmax.f32 %v610, %v699
    %v779 = vmax.f32 %v642, %v701
    %v780 = vmax.f32 %v611, %v703
    %v781 = vmax.f32 %v643, %v705
    %v782 = vmax.f32 %v612, %v707
    %v783 = vmax.f32 %v644, %v709
    %v784 = vmax.f32 %v613, %v711
    %v785 = vmax.f32 %v645, %v713
    %v786 = vmax.f32 %v614, %v715
    %v787 = vmax.f32 %v646, %v717
    %v788 = vmax.f32 %v615, %v719
    %v789 = vmax.f32 %v647, %v721
    %v790 = vmax.f32 %v616, %v723
    %v791 = vmax.f32 %v648, %v725
    %v792 = vmax.f32 %v617, %v727
    %v793 = vmax.f32 %v649, %v729
    %v826 = vlaneseq
    %v827 = vshrl.u32 %v826, 7
    %v828 = vsub.s32 2, %v827
    %v829 = vrot.slane %v762, %v828
    %v830 = vlaneseq
    %v831 = vshrl.u32 %v830, 7
    %v832 = vsub.s32 2, %v831
    %v833 = vrot.slane %v763, %v832
    %v834 = vlaneseq
    %v835 = vshrl.u32 %v834, 7
    %v836 = vsub.s32 2, %v835
    %v837 = vrot.slane %v764, %v836
    %v838 = vlaneseq
    %v839 = vshrl.u32 %v838, 7
    %v840 = vsub.s32 2, %v839
    %v841 = vrot.slane %v765, %v840
    %v842 = vlaneseq
    %v843 = vshrl.u32 %v842, 7
    %v844 = vsub.s32 2, %v843
    %v845 = vrot.slane %v766, %v844
    %v846 = vlaneseq
    %v847 = vshrl.u32 %v846, 7
    %v848 = vsub.s32 2, %v847
    %v849 = vrot.slane %v767, %v848
    %v850 = vlaneseq
    %v851 = vshrl.u32 %v850, 7
    %v852 = vsub.s32 2, %v851
    %v853 = vrot.slane %v768, %v852
    %v854 = vlaneseq
    %v855 = vshrl.u32 %v854, 7
    %v856 = vsub.s32 2, %v855
    %v857 = vrot.slane %v769, %v856
    %v858 = vlaneseq
    %v859 = vshrl.u32 %v858, 7
    %v860 = vsub.s32 2, %v859
    %v861 = vrot.slane %v770, %v860
    %v862 = vlaneseq
    %v863 = vshrl.u32 %v862, 7
    %v864 = vsub.s32 2, %v863
    %v865 = vrot.slane %v771, %v864
    %v866 = vlaneseq
    %v867 = vshrl.u32 %v866, 7
    %v868 = vsub.s32 2, %v867
    %v869 = vrot.slane %v772, %v868
    %v870 = vlaneseq
    %v871 = vshrl.u32 %v870, 7
    %v872 = vsub.s32 2, %v871
    %v873 = vrot.slane %v773, %v872
    %v874 = vlaneseq
    %v875 = vshrl.u32 %v874, 7
    %v876 = vsub.s32 2, %v875
    %v877 = vrot.slane %v774, %v876
    %v878 = vlaneseq
    %v879 = vshrl.u32 %v878, 7
    %v880 = vsub.s32 2, %v879
    %v881 = vrot.slane %v775, %v880
    %v882 = vlaneseq
    %v883 = vshrl.u32 %v882, 7
    %v884 = vsub.s32 2, %v883
    %v885 = vrot.slane %v776, %v884
    %v886 = vlaneseq
    %v887 = vshrl.u32 %v886, 7
    %v888 = vsub.s32 2, %v887
    %v889 = vrot.slane %v777, %v888
    %v890 = vlaneseq
    %v891 = vshrl.u32 %v890, 7
    %v892 = vsub.s32 2, %v891
    %v893 = vrot.slane %v778, %v892
    %v894 = vlaneseq
    %v895 = vshrl.u32 %v894, 7
    %v896 = vsub.s32 2, %v895
    %v897 = vrot.slane %v779, %v896
    %v898 = vlaneseq
    %v899 = vshrl.u32 %v898, 7
    %v900 = vsub.s32 2, %v899
    %v901 = vrot.slane %v780, %v900
    %v902 = vlaneseq
    %v903 = vshrl.u32 %v902, 7
    %v904 = vsub.s32 2, %v903
    %v905 = vrot.slane %v781, %v904
    %v906 = vlaneseq
    %v907 = vshrl.u32 %v906, 7
    %v908 = vsub.s32 2, %v907
    %v909 = vrot.slane %v782, %v908
    %v910 = vlaneseq
    %v911 = vshrl.u32 %v910, 7
    %v912 = vsub.s32 2, %v911
    %v913 = vrot.slane %v783, %v912
    %v914 = vlaneseq
    %v915 = vshrl.u32 %v914, 7
    %v916 = vsub.s32 2, %v915
    %v917 = vrot.slane %v784, %v916
    %v918 = vlaneseq
    %v919 = vshrl.u32 %v918, 7
    %v920 = vsub.s32 2, %v919
    %v921 = vrot.slane %v785, %v920
    %v922 = vlaneseq
    %v923 = vshrl.u32 %v922, 7
    %v924 = vsub.s32 2, %v923
    %v925 = vrot.slane %v786, %v924
    %v926 = vlaneseq
    %v927 = vshrl.u32 %v926, 7
    %v928 = vsub.s32 2, %v927
    %v929 = vrot.slane %v787, %v928
    %v930 = vlaneseq
    %v931 = vshrl.u32 %v930, 7
    %v932 = vsub.s32 2, %v931
    %v933 = vrot.slane %v788, %v932
    %v934 = vlaneseq
    %v935 = vshrl.u32 %v934, 7
    %v936 = vsub.s32 2, %v935
    %v937 = vrot.slane %v789, %v936
    %v938 = vlaneseq
    %v939 = vshrl.u32 %v938, 7
    %v940 = vsub.s32 2, %v939
    %v941 = vrot.slane %v790, %v940
    %v942 = vlaneseq
    %v943 = vshrl.u32 %v942, 7
    %v944 = vsub.s32 2, %v943
    %v945 = vrot.slane %v791, %v944
    %v946 = vlaneseq
    %v947 = vshrl.u32 %v946, 7
    %v948 = vsub.s32 2, %v947
    %v949 = vrot.slane %v792, %v948
    %v950 = vlaneseq
    %v951 = vshrl.u32 %v950, 7
    %v952 = vsub.s32 2, %v951
    %v953 = vrot.slane %v793, %v952
    %vm954 = vcmask 1042434
    %v955 = vsel %vm954, %v833, %v829
    %vm956 = vcmask 1043459
    %v957 = vsel %vm956, %v837, %v955
    %vm958 = vcmask 1044484
    %v959 = vsel %vm958, %v841, %v957
    %vm960 = vcmask 1045509
    %v961 = vsel %vm960, %v845, %v959
    %vm962 = vcmask 1046534
    %v963 = vsel %vm962, %v849, %v961
    %vm964 = vcmask 1047559
    %v965 = vsel %vm964, %v853, %v963
    %v966 = vsel %vm954, %v865, %v861
    %v967 = vsel %vm956, %v869, %v966
    %v968 = vsel %vm958, %v873, %v967
    %v969 = vsel %vm960, %v877, %v968
    %v970 = vsel %vm962, %v881, %v969
    %v971 = vsel %vm964, %v885, %v970
    %v972 = vsel %vm954, %v897, %v893
    %v973 = vsel %vm956, %v901, %v972
    %v974 = vsel %vm958, %v905, %v973
    %v975 = vsel %vm960, %v909, %v974
    %v976 = vsel %vm962, %v913, %v975
    %v977 = vsel %vm964, %v917, %v976
    %v978 = vsel %vm954, %v929, %v925
    %v979 = vsel %vm956, %v933, %v978
    %v980 = vsel %vm958, %v937, %v979
    %v981 = vsel %vm960, %v941, %v980
    %v982 = vsel %vm962, %v945, %v981
    %v983 = vsel %vm964, %v949, %v982
    %vm992 = vcmask 1040384
    %v993 = vsel %vm992, 0.0, %v965
    %v994 = vsel %vm992, 0.0, %v971
    %v995 = vsel %vm992, 0.0, %v977
    %v996 = vsel %vm992, 0.0, %v983
    %v997 = vlaneseq
    %v998 = vshrl.u32 %v997, 7
    %v999 = vsub.s32 0, %v998
    %v1000 = vrot.slane %v762, %v999
    %v1001 = vlaneseq
    %v1002 = vshrl.u32 %v1001, 7
    %v1003 = vsub.s32 0, %v1002
    %v1004 = vrot.slane %v763, %v1003
    %v1005 = vlaneseq
    %v1006 = vshrl.u32 %v1005, 7
    %v1007 = vsub.s32 0, %v1006
    %v1008 = vrot.slane %v764, %v1007
    %v1009 = vlaneseq
    %v1010 = vshrl.u32 %v1009, 7
    %v1011 = vsub.s32 0, %v1010
    %v1012 = vrot.slane %v765, %v1011
    %v1013 = vlaneseq
    %v1014 = vshrl.u32 %v1013, 7
    %v1015 = vsub.s32 0, %v1014
    %v1016 = vrot.slane %v766, %v1015
    %v1017 = vlaneseq
    %v1018 = vshrl.u32 %v1017, 7
    %v1019 = vsub.s32 0, %v1018
    %v1020 = vrot.slane %v767, %v1019
    %v1021 = vlaneseq
    %v1022 = vshrl.u32 %v1021, 7
    %v1023 = vsub.s32 0, %v1022
    %v1024 = vrot.slane %v768, %v1023
    %v1025 = vlaneseq
    %v1026 = vshrl.u32 %v1025, 7
    %v1027 = vsub.s32 0, %v1026
    %v1028 = vrot.slane %v769, %v1027
    %v1029 = vlaneseq
    %v1030 = vshrl.u32 %v1029, 7
    %v1031 = vsub.s32 0, %v1030
    %v1032 = vrot.slane %v770, %v1031
    %v1033 = vlaneseq
    %v1034 = vshrl.u32 %v1033, 7
    %v1035 = vsub.s32 0, %v1034
    %v1036 = vrot.slane %v771, %v1035
    %v1037 = vlaneseq
    %v1038 = vshrl.u32 %v1037, 7
    %v1039 = vsub.s32 0, %v1038
    %v1040 = vrot.slane %v772, %v1039
    %v1041 = vlaneseq
    %v1042 = vshrl.u32 %v1041, 7
    %v1043 = vsub.s32 0, %v1042
    %v1044 = vrot.slane %v773, %v1043
    %v1045 = vlaneseq
    %v1046 = vshrl.u32 %v1045, 7
    %v1047 = vsub.s32 0, %v1046
    %v1048 = vrot.slane %v774, %v1047
    %v1049 = vlaneseq
    %v1050 = vshrl.u32 %v1049, 7
    %v1051 = vsub.s32 0, %v1050
    %v1052 = vrot.slane %v775, %v1051
    %v1053 = vlaneseq
    %v1054 = vshrl.u32 %v1053, 7
    %v1055 = vsub.s32 0, %v1054
    %v1056 = vrot.slane %v776, %v1055
    %v1057 = vlaneseq
    %v1058 = vshrl.u32 %v1057, 7
    %v1059 = vsub.s32 0, %v1058
    %v1060 = vrot.slane %v777, %v1059
    %v1061 = vlaneseq
    %v1062 = vshrl.u32 %v1061, 7
    %v1063 = vsub.s32 0, %v1062
    %v1064 = vrot.slane %v778, %v1063
    %v1065 = vlaneseq
    %v1066 = vshrl.u32 %v1065, 7
    %v1067 = vsub.s32 0, %v1066
    %v1068 = vrot.slane %v779, %v1067
    %v1069 = vlaneseq
    %v1070 = vshrl.u32 %v1069, 7
    %v1071 = vsub.s32 0, %v1070
    %v1072 = vrot.slane %v780, %v1071
    %v1073 = vlaneseq
    %v1074 = vshrl.u32 %v1073, 7
    %v1075 = vsub.s32 0, %v1074
    %v1076 = vrot.slane %v781, %v1075
    %v1077 = vlaneseq
    %v1078 = vshrl.u32 %v1077, 7
    %v1079 = vsub.s32 0, %v1078
    %v1080 = vrot.slane %v782, %v1079
    %v1081 = vlaneseq
    %v1082 = vshrl.u32 %v1081, 7
    %v1083 = vsub.s32 0, %v1082
    %v1084 = vrot.slane %v783, %v1083
    %v1085 = vlaneseq
    %v1086 = vshrl.u32 %v1085, 7
    %v1087 = vsub.s32 0, %v1086
    %v1088 = vrot.slane %v784, %v1087
    %v1089 = vlaneseq
    %v1090 = vshrl.u32 %v1089, 7
    %v1091 = vsub.s32 0, %v1090
    %v1092 = vrot.slane %v785, %v1091
    %v1093 = vlaneseq
    %v1094 = vshrl.u32 %v1093, 7
    %v1095 = vsub.s32 0, %v1094
    %v1096 = vrot.slane %v786, %v1095
    %v1097 = vlaneseq
    %v1098 = vshrl.u32 %v1097, 7
    %v1099 = vsub.s32 0, %v1098
    %v1100 = vrot.slane %v787, %v1099
    %v1101 = vlaneseq
    %v1102 = vshrl.u32 %v1101, 7
    %v1103 = vsub.s32 0, %v1102
    %v1104 = vrot.slane %v788, %v1103
    %v1105 = vlaneseq
    %v1106 = vshrl.u32 %v1105, 7
    %v1107 = vsub.s32 0, %v1106
    %v1108 = vrot.slane %v789, %v1107
    %v1109 = vlaneseq
    %v1110 = vshrl.u32 %v1109, 7
    %v1111 = vsub.s32 0, %v1110
    %v1112 = vrot.slane %v790, %v1111
    %v1113 = vlaneseq
    %v1114 = vshrl.u32 %v1113, 7
    %v1115 = vsub.s32 0, %v1114
    %v1116 = vrot.slane %v791, %v1115
    %v1117 = vlaneseq
    %v1118 = vshrl.u32 %v1117, 7
    %v1119 = vsub.s32 0, %v1118
    %v1120 = vrot.slane %v792, %v1119
    %v1121 = vlaneseq
    %v1122 = vshrl.u32 %v1121, 7
    %v1123 = vsub.s32 0, %v1122
    %v1124 = vrot.slane %v793, %v1123
    %vm1125 = vcmask 1041409
    %v1126 = vsel %vm1125, %v1004, %v1000
    %v1127 = vsel %vm954, %v1008, %v1126
    %v1128 = vsel %vm956, %v1012, %v1127
    %v1129 = vsel %vm958, %v1016, %v1128
    %v1130 = vsel %vm960, %v1020, %v1129
    %v1131 = vsel %vm962, %v1024, %v1130
    %v1132 = vsel %vm964, %v1028, %v1131
    %v1133 = vsel %vm1125, %v1036, %v1032
    %v1134 = vsel %vm954, %v1040, %v1133
    %v1135 = vsel %vm956, %v1044, %v1134
    %v1136 = vsel %vm958, %v1048, %v1135
    %v1137 = vsel %vm960, %v1052, %v1136
    %v1138 = vsel %vm962, %v1056, %v1137
    %v1139 = vsel %vm964, %v1060, %v1138
    %v1140 = vsel %vm1125, %v1068, %v1064
    %v1141 = vsel %vm954, %v1072, %v1140
    %v1142 = vsel %vm956, %v1076, %v1141
    %v1143 = vsel %vm958, %v1080, %v1142
    %v1144 = vsel %vm960, %v1084, %v1143
    %v1145 = vsel %vm962, %v1088, %v1144
    %v1146 = vsel %vm964, %v1092, %v1145
    %v1147 = vsel %vm1125, %v1100, %v1096
    %v1148 = vsel %vm954, %v1104, %v1147
    %v1149 = vsel %vm956, %v1108, %v1148
    %v1150 = vsel %vm958, %v1112, %v1149
    %v1151 = vsel %vm960, %v1116, %v1150
    %v1152 = vsel %vm962, %v1120, %v1151
    %v1153 = vsel %vm964, %v1124, %v1152
    %1155 = vrot.lane.b32.xlu0 %v1132, 32
    %v1156 = vpop.permute.xlu0 %1155
    %1157 = vrot.lane.b32.xlu0 0.0, 32
    %v1158 = vpop.permute.xlu0 %1157
    %1159 = vrot.lane.b32.xlu0 %v1139, 32
    %v1160 = vpop.permute.xlu0 %1159
    %1161 = vrot.lane.b32.xlu0 %v1146, 32
    %v1162 = vpop.permute.xlu0 %1161
    %1163 = vrot.lane.b32.xlu0 %v1153, 32
    %v1164 = vpop.permute.xlu0 %1163
    %v1170 = vsel %vm419, %v993, %v1156
    %v1171 = vsel %vm419, %v857, %v1158
    %v1172 = vsel %vm419, %v994, %v1160
    %v1173 = vsel %vm419, %v889, %v1158
    %v1174 = vsel %vm419, %v995, %v1162
    %v1175 = vsel %vm419, %v921, %v1158
    %v1176 = vsel %vm419, %v996, %v1164
    %v1177 = vsel %vm419, %v953, %v1158
    %v1186 = vrot.slane %v1170, 1
    %v1187 = vrot.slane %v1171, 1
    %v1188 = vsel %vm89, %v1186, %v1187
    %v1189 = vrot.slane %v1172, 1
    %v1190 = vrot.slane %v1173, 1
    %v1191 = vsel %vm89, %v1189, %v1190
    %v1192 = vrot.slane %v1174, 1
    %v1193 = vrot.slane %v1175, 1
    %v1194 = vsel %vm89, %v1192, %v1193
    %v1195 = vrot.slane %v1176, 1
    %v1196 = vrot.slane %v1177, 1
    %v1197 = vsel %vm89, %v1195, %v1196
    %1198 = vrot.lane.b32.xlu0 %v1188, 64
    %v1199 = vpop.permute.xlu0 %1198
    %1200 = vrot.lane.b32.xlu0 %v1191, 64
    %v1201 = vpop.permute.xlu0 %1200
    %1202 = vrot.lane.b32.xlu0 %v1194, 64
    %v1203 = vpop.permute.xlu0 %1202
    %1204 = vrot.lane.b32.xlu0 %v1197, 64
    %v1205 = vpop.permute.xlu0 %1204
    %vm1210 = vcmask 523264
    %v1211 = vsel %vm1210, %v1170, %v1199
    %v1212 = vsel %vm1210, %v1172, %v1201
    %v1213 = vsel %vm1210, %v1174, %v1203
    %v1214 = vsel %vm1210, %v1176, %v1205
    %v1215 = vld [vmem:[%s3] sm:$0xf]
    %v1216 = vld [vmem:[%s3 + $0x4] sm:$0xf]
    %v1217 = vld [vmem:[%s3 + $0x8] sm:$0xf]
    %v1218 = vld [vmem:[%s3 + $0xc] sm:$0xf]
    %v1219 = vld [vmem:[%s3 + $0x10] sm:$0xf]
    %v1220 = vld [vmem:[%s3 + $0x14] sm:$0xf]
    %v1221 = vld [vmem:[%s3 + $0x18] sm:$0xf]
    %v1222 = vld [vmem:[%s3 + $0x1c] sm:$0xf]
    %v1223 = vld [vmem:[%s3 + $0x20] sm:$0xf]
    %v1224 = vld [vmem:[%s3 + $0x24] sm:$0xf]
    %v1225 = vld [vmem:[%s3 + $0x28] sm:$0xf]
    %v1226 = vld [vmem:[%s3 + $0x2c] sm:$0xf]
    %v1227 = vld [vmem:[%s3 + $0x30] sm:$0xf]
    %v1228 = vld [vmem:[%s3 + $0x34] sm:$0xf]
    %v1229 = vld [vmem:[%s3 + $0x38] sm:$0xf]
    %v1230 = vld [vmem:[%s3 + $0x3c] sm:$0xf]
    %v1231 = vpack.c.bf16 %v1212, %v1211
    %v1232 = vpack.c.bf16 %v1214, %v1213
    %v1249 = vunpack.c.l.b16 %v1215
    %v1250 = vunpack.c.l.b16 %v1216
    %v1251 = vunpack.c.l.b16 %v1217
    %v1252 = vunpack.c.l.b16 %v1218
    %v1253 = vunpack.c.l.b16 %v1219
    %v1254 = vunpack.c.l.b16 %v1220
    %v1255 = vunpack.c.l.b16 %v1221
    %v1256 = vunpack.c.l.b16 %v1222
    %v1257 = vunpack.c.l.b16 %v1223
    %v1258 = vunpack.c.l.b16 %v1224
    %v1259 = vunpack.c.l.b16 %v1225
    %v1260 = vunpack.c.l.b16 %v1226
    %v1261 = vunpack.c.l.b16 %v1227
    %v1262 = vunpack.c.l.b16 %v1228
    %v1263 = vunpack.c.l.b16 %v1229
    %v1264 = vunpack.c.l.b16 %v1230
    %v1265 = vpack.c.b16 %v1250, %v1249
    %v1266 = vpack.c.b16 %v1252, %v1251
    %v1267 = vpack.c.b16 %v1254, %v1253
    %v1268 = vpack.c.b16 %v1256, %v1255
    %v1269 = vpack.c.b16 %v1258, %v1257
    %v1270 = vpack.c.b16 %v1260, %v1259
    %v1271 = vpack.c.b16 %v1262, %v1261
    %v1272 = vpack.c.b16 %v1264, %v1263
    %1281 = vmatprep.subr.bf16.mxu0 0
    %1282 = vmatpush1.bf16.msra.mxu0 %v1265
    %1283 = vmatprep.subr.bf16.mxu0 0
    %1284 = vmatpush1.bf16.msra.mxu0 %v1266
    %1285 = vmatprep.subr.bf16.mxu0 0
    %1286 = vmatpush1.bf16.msra.mxu0 %v1267
    %1287 = vmatprep.subr.bf16.mxu0 0
    %1288 = vmatpush1.bf16.msra.mxu0 %v1268
    %1289 = vmatprep.subr.bf16.mxu0 0
    %1290 = vmatpush1.bf16.msra.mxu0 %v1269
    %1291 = vmatprep.subr.bf16.mxu0 0
    %1292 = vmatpush1.bf16.msra.mxu0 %v1270
    %1293 = vmatprep.subr.bf16.mxu0 0
    %1294 = vmatpush1.bf16.msra.mxu0 %v1271
    %1295 = vmatprep.subr.bf16.mxu0 0
    %1296 = vmatpush1.bf16.msra.mxu0 %v1272
    %1297 = vmatprep.subr.bf16.mxu0 0
    %1298 = vmatpush1.bf16.msra.mxu0 0
    %1299 = vmatprep.subr.bf16.mxu0 0
    %1300 = vmatpush1.bf16.msra.mxu0 0
    %1301 = vmatprep.subr.bf16.mxu0 0
    %1302 = vmatpush1.bf16.msra.mxu0 0
    %1303 = vmatprep.subr.bf16.mxu0 0
    %1304 = vmatpush1.bf16.msra.mxu0 0
    %1305 = vmatprep.subr.bf16.mxu0 0
    %1306 = vmatpush1.bf16.msra.mxu0 0
    %1307 = vmatprep.subr.bf16.mxu0 0
    %1308 = vmatpush1.bf16.msra.mxu0 0
    %1309 = vmatprep.subr.bf16.mxu0 0
    %1310 = vmatpush1.bf16.msra.mxu0 0
    %1311 = vmatprep.subr.bf16.mxu0 0
    %1312 = vmatpush1.bf16.msra.mxu0 0
    %1313 = vmatprep.mubr.bf16.mxu0 0
    %1314 = vmatmul.mubr.bf16.gmra.mrb[0].mxu0 %v1231
    %v1315 = vpop.f32.mrb[0].mxu0
    %v1316 = vadd.f32 0.0, %v1315
    %v1317 = vpop.f32.mrb[0].mxu0
    %v1318 = vpop.f32.mrb[0].mxu0
    %v1319 = vadd.f32 0.0, %v1318
    %v1320 = vpop.f32.mrb[0].mxu0
    %1321 = vmatprep.mubr.bf16.mxu0 0
    %1322 = vmatmul.mubr.bf16.gmra.mrb[0].mxu0 %v1232
    %v1323 = vpop.f32.mrb[0].mxu0
    %v1324 = vadd.f32 0.0, %v1323
    %v1325 = vpop.f32.mrb[0].mxu0
    %v1326 = vpop.f32.mrb[0].mxu0
    %v1327 = vadd.f32 0.0, %v1326
    %v1328 = vpop.f32.mrb[0].mxu0
    %1329 = vdwg.mxu0
    %v1330 = vld [vmem:[%s4] sm:$0x7]
    %v1331 = vlaneseq
    %v1332 = vshrl.u32 %v1331, 7
    %v1333 = vsub.s32 0, %v1332
    %v1334 = vrot.slane %v1330, %v1333
    %v1335 = vadd.f32 %v1316, %v1334
    %v1336 = vadd.f32 %v1319, %v1334
    %v1337 = vadd.f32 %v1324, %v1334
    %v1338 = vadd.f32 %v1327, %v1334
    %v1339 = vmax.f32 %v1335, 0.0
    %v1340 = vmax.f32 %v1336, 0.0
    %v1341 = vmax.f32 %v1337, 0.0
    %v1342 = vmax.f32 %v1338, 0.0
    %v1343 = vlaneseq
    %v1344 = vshrl.u32 %v1343, 7
    %v1345 = vsub.s32 1, %v1344
    %v1346 = vrot.slane %v1330, %v1345
    %v1347 = vmul.f32 %v1339, %v1346
    %v1348 = vmul.f32 %v1340, %v1346
    %v1349 = vmul.f32 %v1341, %v1346
    %v1350 = vmul.f32 %v1342, %v1346
    %v1351 = vlaneseq
    %v1352 = vshrl.u32 %v1351, 7
    %v1353 = vsub.s32 2, %v1352
    %v1354 = vrot.slane %v1330, %v1353
    %v1355 = vadd.f32 %v1347, %v1354
    %v1356 = vadd.f32 %v1348, %v1354
    %v1357 = vadd.f32 %v1349, %v1354
    %v1358 = vadd.f32 %v1350, %v1354
    %v1363 = vcombine.high %v1355, %v1355
    %v1365 = vunpack.c.l.s4 1983009808
    %v1366 = vunpack.c.0.s8 %v1365
    %v1367 = vlaneseq
    %v1368 = vshrl.u32 %v1367, 7
    %v1369 = vsub.s32 %v1366, %v1368
    %v1370 = vrot.slane %v1355, %v1369
    %v1372 = vunpack.c.l.s4 1983009808
    %v1373 = vunpack.c.0.s8 %v1372
    %v1374 = vlaneseq
    %v1375 = vshrl.u32 %v1374, 7
    %v1376 = vsub.s32 %v1373, %v1375
    %v1377 = vrot.slane %v1363, %v1376
    %v1378 = vcombine.high %v1370, %v1370
    %v1379 = vcombine.high %v1377, %v1377
    %v1380 = vcombine.high %v1356, %v1356
    %v1382 = vunpack.c.l.s4 1983009808
    %v1383 = vunpack.c.0.s8 %v1382
    %v1384 = vlaneseq
    %v1385 = vshrl.u32 %v1384, 7
    %v1386 = vsub.s32 %v1383, %v1385
    %v1387 = vrot.slane %v1356, %v1386
    %v1389 = vunpack.c.l.s4 1983009808
    %v1390 = vunpack.c.0.s8 %v1389
    %v1391 = vlaneseq
    %v1392 = vshrl.u32 %v1391, 7
    %v1393 = vsub.s32 %v1390, %v1392
    %v1394 = vrot.slane %v1380, %v1393
    %v1395 = vcombine.high %v1387, %v1387
    %v1396 = vcombine.high %v1394, %v1394
    %v1397 = vcombine.high %v1357, %v1357
    %v1399 = vunpack.c.l.s4 1983009808
    %v1400 = vunpack.c.0.s8 %v1399
    %v1401 = vlaneseq
    %v1402 = vshrl.u32 %v1401, 7
    %v1403 = vsub.s32 %v1400, %v1402
    %v1404 = vrot.slane %v1357, %v1403
    %v1406 = vunpack.c.l.s4 1983009808
    %v1407 = vunpack.c.0.s8 %v1406
    %v1408 = vlaneseq
    %v1409 = vshrl.u32 %v1408, 7
    %v1410 = vsub.s32 %v1407, %v1409
    %v1411 = vrot.slane %v1397, %v1410
    %v1412 = vcombine.high %v1404, %v1404
    %v1413 = vcombine.high %v1411, %v1411
    %v1414 = vcombine.high %v1358, %v1358
    %v1416 = vunpack.c.l.s4 1983009808
    %v1417 = vunpack.c.0.s8 %v1416
    %v1418 = vlaneseq
    %v1419 = vshrl.u32 %v1418, 7
    %v1420 = vsub.s32 %v1417, %v1419
    %v1421 = vrot.slane %v1358, %v1420
    %v1423 = vunpack.c.l.s4 1983009808
    %v1424 = vunpack.c.0.s8 %v1423
    %v1425 = vlaneseq
    %v1426 = vshrl.u32 %v1425, 7
    %v1427 = vsub.s32 %v1424, %v1426
    %v1428 = vrot.slane %v1414, %v1427
    %v1429 = vcombine.high %v1421, %v1421
    %v1430 = vcombine.high %v1428, %v1428
    %v1447 = vrot.slane %v1370, 7
    %v1448 = vrot.slane %v1447, 2
    %v1449 = vrot.slane %v1378, 7
    %v1450 = vrot.slane %v1449, 2
    %v1451 = vrot.slane %v1377, 7
    %v1452 = vrot.slane %v1451, 2
    %v1453 = vrot.slane %v1379, 7
    %v1454 = vrot.slane %v1453, 2
    %v1455 = vrot.slane %v1387, 7
    %v1456 = vrot.slane %v1455, 2
    %v1457 = vrot.slane %v1395, 7
    %v1458 = vrot.slane %v1457, 2
    %v1459 = vrot.slane %v1394, 7
    %v1460 = vrot.slane %v1459, 2
    %v1461 = vrot.slane %v1396, 7
    %v1462 = vrot.slane %v1461, 2
    %v1463 = vrot.slane %v1404, 7
    %v1464 = vrot.slane %v1463, 2
    %v1465 = vrot.slane %v1412, 7
    %v1466 = vrot.slane %v1465, 2
    %v1467 = vrot.slane %v1411, 7
    %v1468 = vrot.slane %v1467, 2
    %v1469 = vrot.slane %v1413, 7
    %v1470 = vrot.slane %v1469, 2
    %v1471 = vrot.slane %v1421, 7
    %v1472 = vrot.slane %v1471, 2
    %v1473 = vrot.slane %v1429, 7
    %v1474 = vrot.slane %v1473, 2
    %v1475 = vrot.slane %v1428, 7
    %v1476 = vrot.slane %v1475, 2
    %v1477 = vrot.slane %v1430, 7
    %v1478 = vrot.slane %v1477, 2
    %v1495 = vmax.f32 %v1370, %v1448
    %v1496 = vmax.f32 %v1378, %v1450
    %v1497 = vmax.f32 %v1377, %v1452
    %v1498 = vmax.f32 %v1379, %v1454
    %v1499 = vmax.f32 %v1387, %v1456
    %v1500 = vmax.f32 %v1395, %v1458
    %v1501 = vmax.f32 %v1394, %v1460
    %v1502 = vmax.f32 %v1396, %v1462
    %v1503 = vmax.f32 %v1404, %v1464
    %v1504 = vmax.f32 %v1412, %v1466
    %v1505 = vmax.f32 %v1411, %v1468
    %v1506 = vmax.f32 %v1413, %v1470
    %v1507 = vmax.f32 %v1421, %v1472
    %v1508 = vmax.f32 %v1429, %v1474
    %v1509 = vmax.f32 %v1428, %v1476
    %v1510 = vmax.f32 %v1430, %v1478
    %v1519 = vlaneseq
    %v1520 = vshrl.u32 %v1519, 7
    %v1521 = vsub.s32 0, %v1520
    %v1522 = vrot.slane %v1495, %v1521
    %v1523 = vlaneseq
    %v1524 = vshrl.u32 %v1523, 7
    %v1525 = vsub.s32 0, %v1524
    %v1526 = vrot.slane %v1496, %v1525
    %v1527 = vlaneseq
    %v1528 = vshrl.u32 %v1527, 7
    %v1529 = vsub.s32 0, %v1528
    %v1530 = vrot.slane %v1497, %v1529
    %v1531 = vlaneseq
    %v1532 = vshrl.u32 %v1531, 7
    %v1533 = vsub.s32 0, %v1532
    %v1534 = vrot.slane %v1498, %v1533
    %v1535 = vlaneseq
    %v1536 = vshrl.u32 %v1535, 7
    %v1537 = vsub.s32 0, %v1536
    %v1538 = vrot.slane %v1499, %v1537
    %v1539 = vlaneseq
    %v1540 = vshrl.u32 %v1539, 7
    %v1541 = vsub.s32 0, %v1540
    %v1542 = vrot.slane %v1500, %v1541
    %v1543 = vlaneseq
    %v1544 = vshrl.u32 %v1543, 7
    %v1545 = vsub.s32 0, %v1544
    %v1546 = vrot.slane %v1501, %v1545
    %v1547 = vlaneseq
    %v1548 = vshrl.u32 %v1547, 7
    %v1549 = vsub.s32 0, %v1548
    %v1550 = vrot.slane %v1502, %v1549
    %v1551 = vsel %vm954, %v1526, %v1522
    %v1552 = vsel %vm956, %v1530, %v1551
    %v1553 = vsel %vm958, %v1534, %v1552
    %v1554 = vsel %vm954, %v1542, %v1538
    %v1555 = vsel %vm956, %v1546, %v1554
    %v1556 = vsel %vm958, %v1550, %v1555
    %v1559 = vsel %vm992, 0.0, %v1553
    %v1560 = vsel %vm992, 0.0, %v1556
    %v1561 = vsel %vm259, %v1559, 0.0
    %v1562 = vsel %vm259, %v1560, 0.0
    %v1571 = vlaneseq
    %v1572 = vshrl.u32 %v1571, 7
    %v1573 = vsub.s32 0, %v1572
    %v1574 = vrot.slane %v1503, %v1573
    %v1575 = vlaneseq
    %v1576 = vshrl.u32 %v1575, 7
    %v1577 = vsub.s32 0, %v1576
    %v1578 = vrot.slane %v1504, %v1577
    %v1579 = vlaneseq
    %v1580 = vshrl.u32 %v1579, 7
    %v1581 = vsub.s32 0, %v1580
    %v1582 = vrot.slane %v1505, %v1581
    %v1583 = vlaneseq
    %v1584 = vshrl.u32 %v1583, 7
    %v1585 = vsub.s32 0, %v1584
    %v1586 = vrot.slane %v1506, %v1585
    %v1587 = vlaneseq
    %v1588 = vshrl.u32 %v1587, 7
    %v1589 = vsub.s32 0, %v1588
    %v1590 = vrot.slane %v1507, %v1589
    %v1591 = vlaneseq
    %v1592 = vshrl.u32 %v1591, 7
    %v1593 = vsub.s32 0, %v1592
    %v1594 = vrot.slane %v1508, %v1593
    %v1595 = vlaneseq
    %v1596 = vshrl.u32 %v1595, 7
    %v1597 = vsub.s32 0, %v1596
    %v1598 = vrot.slane %v1509, %v1597
    %v1599 = vlaneseq
    %v1600 = vshrl.u32 %v1599, 7
    %v1601 = vsub.s32 0, %v1600
    %v1602 = vrot.slane %v1510, %v1601
    %v1603 = vsel %vm954, %v1578, %v1574
    %v1604 = vsel %vm956, %v1582, %v1603
    %v1605 = vsel %vm958, %v1586, %v1604
    %v1606 = vsel %vm954, %v1594, %v1590
    %v1607 = vsel %vm956, %v1598, %v1606
    %v1608 = vsel %vm958, %v1602, %v1607
    %v1611 = vsel %vm992, 0.0, %v1605
    %v1612 = vsel %vm992, 0.0, %v1608
    %v1613 = vsel %vm259, %v1611, 0.0
    %v1614 = vsel %vm259, %v1612, 0.0
    %1617 = vrot.lane.b32.xlu0 %v1613, 32
    %v1618 = vpop.permute.xlu0 %1617
    %1619 = vrot.lane.b32.xlu0 %v1614, 32
    %v1620 = vpop.permute.xlu0 %1619
    %v1623 = vsel %vm419, %v1561, %v1618
    %v1624 = vsel %vm419, %v1562, %v1620
    %v1627 = vrot.slane %v1623, 1
    %v1628 = vrot.slane %v1624, 1
    %1629 = vrot.lane.b32.xlu0 %v1627, 64
    %v1630 = vpop.permute.xlu0 %1629
    %1631 = vrot.lane.b32.xlu0 %v1628, 64
    %v1632 = vpop.permute.xlu0 %1631
    %v1635 = vsel %vm1210, %v1623, %v1630
    %v1636 = vsel %vm1210, %v1624, %v1632
    %v1639 = vcombine.high %v1635, %v1635
    %v1641 = vunpack.c.l.s4 1966171168
    %v1642 = vunpack.c.0.s8 %v1641
    %v1643 = vlaneseq
    %v1644 = vshrl.u32 %v1643, 7
    %v1645 = vsub.s32 %v1642, %v1644
    %v1646 = vrot.slane %v1635, %v1645
    %v1648 = vunpack.c.l.s4 1966171168
    %v1649 = vunpack.c.0.s8 %v1648
    %v1650 = vlaneseq
    %v1651 = vshrl.u32 %v1650, 7
    %v1652 = vsub.s32 %v1649, %v1651
    %v1653 = vrot.slane %v1639, %v1652
    %v1654 = vcombine.high %v1646, %v1646
    %v1656 = vunpack.c.l.s4 1966171168
    %v1657 = vunpack.c.0.s8 %v1656
    %v1658 = vlaneseq
    %v1659 = vshrl.u32 %v1658, 7
    %v1660 = vsub.s32 %v1657, %v1659
    %v1661 = vrot.slane %v1646, %v1660
    %v1663 = vunpack.c.l.s4 1966171168
    %v1664 = vunpack.c.0.s8 %v1663
    %v1665 = vlaneseq
    %v1666 = vshrl.u32 %v1665, 7
    %v1667 = vsub.s32 %v1664, %v1666
    %v1668 = vrot.slane %v1653, %v1667
    %v1670 = vunpack.c.l.s4 1966171168
    %v1671 = vunpack.c.0.s8 %v1670
    %v1672 = vlaneseq
    %v1673 = vshrl.u32 %v1672, 7
    %v1674 = vsub.s32 %v1671, %v1673
    %v1675 = vrot.slane %v1654, %v1674
    %v1676 = vcombine.high %v1661, %v1661
    %v1677 = vcombine.high %v1675, %v1675
    %v1678 = vcombine.high %v1636, %v1636
    %v1680 = vunpack.c.l.s4 1966171168
    %v1681 = vunpack.c.0.s8 %v1680
    %v1682 = vlaneseq
    %v1683 = vshrl.u32 %v1682, 7
    %v1684 = vsub.s32 %v1681, %v1683
    %v1685 = vrot.slane %v1636, %v1684
    %v1687 = vunpack.c.l.s4 1966171168
    %v1688 = vunpack.c.0.s8 %v1687
    %v1689 = vlaneseq
    %v1690 = vshrl.u32 %v1689, 7
    %v1691 = vsub.s32 %v1688, %v1690
    %v1692 = vrot.slane %v1678, %v1691
    %v1693 = vcombine.high %v1685, %v1685
    %v1695 = vunpack.c.l.s4 1966171168
    %v1696 = vunpack.c.0.s8 %v1695
    %v1697 = vlaneseq
    %v1698 = vshrl.u32 %v1697, 7
    %v1699 = vsub.s32 %v1696, %v1698
    %v1700 = vrot.slane %v1685, %v1699
    %v1702 = vunpack.c.l.s4 1966171168
    %v1703 = vunpack.c.0.s8 %v1702
    %v1704 = vlaneseq
    %v1705 = vshrl.u32 %v1704, 7
    %v1706 = vsub.s32 %v1703, %v1705
    %v1707 = vrot.slane %v1692, %v1706
    %v1709 = vunpack.c.l.s4 1966171168
    %v1710 = vunpack.c.0.s8 %v1709
    %v1711 = vlaneseq
    %v1712 = vshrl.u32 %v1711, 7
    %v1713 = vsub.s32 %v1710, %v1712
    %v1714 = vrot.slane %v1693, %v1713
    %v1715 = vcombine.high %v1700, %v1700
    %v1716 = vcombine.high %v1714, %v1714
    %1717 = vrot.lane.b32.xlu0 %v1623, 96
    %v1718 = vpop.permute.xlu0 %1717
    %1719 = vrot.lane.b32.xlu0 %v1624, 96
    %v1720 = vpop.permute.xlu0 %1719
    %1723 = vrot.lane.b32.xlu0 %v1627, 32
    %v1724 = vpop.permute.xlu0 %1723
    %1725 = vrot.lane.b32.xlu0 %v1628, 32
    %v1726 = vpop.permute.xlu0 %1725
    %v1729 = vrot.slane %v1623, 2
    %v1730 = vrot.slane %v1624, 2
    %1731 = vrot.lane.b32.xlu0 %v1729, 96
    %v1732 = vpop.permute.xlu0 %1731
    %1733 = vrot.lane.b32.xlu0 %v1730, 96
    %v1734 = vpop.permute.xlu0 %1733
    %v1737 = vsel %vm419, %v1718, %v1724
    %v1738 = vsel %vm419, %v1720, %v1726
    %vm1739 = vcmask 785408
    %v1740 = vsel %vm1739, %v1737, %v1732
    %v1741 = vsel %vm1739, %v1738, %v1734
    %v1742 = vcombine.low %v1661, %v1675
    %v1743 = vcombine.low %v1676, %v1677
    %v1744 = vcombine.low %v1668, %v1700
    %v1745 = vcombine.low %v1714, %v1715
    %v1747 = vunpack.c.l.s4 1966171168
    %v1748 = vunpack.c.0.s8 %v1747
    %v1749 = vlaneseq
    %v1750 = vshrl.u32 %v1749, 7
    %v1751 = vsub.s32 %v1748, %v1750
    %v1752 = vrot.slane %v1742, %v1751
    %v1754 = vunpack.c.l.s4 1966171168
    %v1755 = vunpack.c.0.s8 %v1754
    %v1756 = vlaneseq
    %v1757 = vshrl.u32 %v1756, 7
    %v1758 = vsub.s32 %v1755, %v1757
    %v1759 = vrot.slane %v1743, %v1758
    %v1761 = vunpack.c.l.s4 1966171168
    %v1762 = vunpack.c.0.s8 %v1761
    %v1763 = vlaneseq
    %v1764 = vshrl.u32 %v1763, 7
    %v1765 = vsub.s32 %v1762, %v1764
    %v1766 = vrot.slane %v1744, %v1765
    %v1768 = vunpack.c.l.s4 1966171168
    %v1769 = vunpack.c.0.s8 %v1768
    %v1770 = vlaneseq
    %v1771 = vshrl.u32 %v1770, 7
    %v1772 = vsub.s32 %v1769, %v1771
    %v1773 = vrot.slane %v1745, %v1772
    %v1774 = vcombine.low %v1752, %v1759
    %v1775 = vcombine.low %v1766, %v1773
    %v1777 = vunpack.c.l.s4 1966171168
    %v1778 = vunpack.c.0.s8 %v1777
    %v1779 = vlaneseq
    %v1780 = vshrl.u32 %v1779, 7
    %v1781 = vsub.s32 %v1778, %v1780
    %v1782 = vrot.slane %v1774, %v1781
    %v1784 = vunpack.c.l.s4 1966171168
    %v1785 = vunpack.c.0.s8 %v1784
    %v1786 = vlaneseq
    %v1787 = vshrl.u32 %v1786, 7
    %v1788 = vsub.s32 %v1785, %v1787
    %v1789 = vrot.slane %v1775, %v1788
    %v1790 = vcombine.low %v1782, %v1789
    %v1791 = vcombine.low %v1716, %v1707
    %v1793 = vunpack.c.l.s4 1966171168
    %v1794 = vunpack.c.0.s8 %v1793
    %v1795 = vlaneseq
    %v1796 = vshrl.u32 %v1795, 7
    %v1797 = vsub.s32 %v1794, %v1796
    %v1798 = vrot.slane %v1791, %v1797
    %v1800 = vunpack.c.l.s4 1966171168
    %v1801 = vunpack.c.0.s8 %v1800
    %v1802 = vlaneseq
    %v1803 = vshrl.u32 %v1802, 7
    %v1804 = vsub.s32 %v1801, %v1803
    %v1805 = vrot.slane %v1798, %v1804
    %v1810 = vcombine.low %v1740, %v1741
    %v1811 = vrot.slane %v1810, 6
    %vm1813 = vcmask 1041408
    %v1814 = vsel %vm1813, %v1805, %v1811
    %v1815 = vld [vmem:[%s5] sm:$0xf]
    %v1816 = vld [vmem:[%s5 + $0x4] sm:$0xf]
    %v1817 = vld [vmem:[%s5 + $0x8] sm:$0xf]
    %v1818 = vld [vmem:[%s5 + $0xc] sm:$0xf]
    %v1819 = vld [vmem:[%s5 + $0x10] sm:$0xf]
    %v1820 = vld [vmem:[%s5 + $0x14] sm:$0xf]
    %v1821 = vld [vmem:[%s5 + $0x18] sm:$0xf]
    %v1822 = vld [vmem:[%s5 + $0x1c] sm:$0xf]
    %v1823 = vld [vmem:[%s5 + $0x20] sm:$0xf]
    %v1824 = vld [vmem:[%s5 + $0x24] sm:$0xf]
    %v1825 = vld [vmem:[%s5 + $0x28] sm:$0xf]
    %v1826 = vld [vmem:[%s5 + $0x2c] sm:$0xf]
    %v1827 = vld [vmem:[%s5 + $0x30] sm:$0xf]
    %v1828 = vld [vmem:[%s5 + $0x34] sm:$0xf]
    %v1829 = vld [vmem:[%s5 + $0x38] sm:$0xf]
    %v1830 = vld [vmem:[%s5 + $0x3c] sm:$0xf]
    %v1831 = vpack.c.bf16 %v1814, %v1790
    %v1832 = vpack.c.bf16 %v1811, %v1811
    %v1833 = vld [vmem:[%s6] sm:$0x7]
    %v1834 = vlaneseq
    %v1835 = vshrl.u32 %v1834, 7
    %v1836 = vsub.s32 0, %v1835
    %v1837 = vrot.slane %v1833, %v1836
    %v1854 = vunpack.c.l.b16 %v1815
    %v1855 = vunpack.c.l.b16 %v1816
    %v1856 = vunpack.c.l.b16 %v1817
    %v1857 = vunpack.c.l.b16 %v1818
    %v1858 = vunpack.c.l.b16 %v1819
    %v1859 = vunpack.c.l.b16 %v1820
    %v1860 = vunpack.c.l.b16 %v1821
    %v1861 = vunpack.c.l.b16 %v1822
    %v1862 = vunpack.c.l.b16 %v1823
    %v1863 = vunpack.c.l.b16 %v1824
    %v1864 = vunpack.c.l.b16 %v1825
    %v1865 = vunpack.c.l.b16 %v1826
    %v1866 = vunpack.c.l.b16 %v1827
    %v1867 = vunpack.c.l.b16 %v1828
    %v1868 = vunpack.c.l.b16 %v1829
    %v1869 = vunpack.c.l.b16 %v1830
    %v1870 = vpack.c.b16 %v1855, %v1854
    %v1871 = vpack.c.b16 %v1857, %v1856
    %v1872 = vpack.c.b16 %v1859, %v1858
    %v1873 = vpack.c.b16 %v1861, %v1860
    %v1874 = vpack.c.b16 %v1863, %v1862
    %v1875 = vpack.c.b16 %v1865, %v1864
    %v1876 = vpack.c.b16 %v1867, %v1866
    %v1877 = vpack.c.b16 %v1869, %v1868
    %1886 = vmatprep.subr.bf16.mxu0 0
    %1887 = vmatpush1.bf16.msra.mxu0 %v1870
    %1888 = vmatprep.subr.bf16.mxu0 0
    %1889 = vmatpush1.bf16.msra.mxu0 %v1871
    %1890 = vmatprep.subr.bf16.mxu0 0
    %1891 = vmatpush1.bf16.msra.mxu0 %v1872
    %1892 = vmatprep.subr.bf16.mxu0 0
    %1893 = vmatpush1.bf16.msra.mxu0 %v1873
    %1894 = vmatprep.subr.bf16.mxu0 0
    %1895 = vmatpush1.bf16.msra.mxu0 %v1874
    %1896 = vmatprep.subr.bf16.mxu0 0
    %1897 = vmatpush1.bf16.msra.mxu0 %v1875
    %1898 = vmatprep.subr.bf16.mxu0 0
    %1899 = vmatpush1.bf16.msra.mxu0 %v1876
    %1900 = vmatprep.subr.bf16.mxu0 0
    %1901 = vmatpush1.bf16.msra.mxu0 %v1877
    %1902 = vmatprep.subr.bf16.mxu0 0
    %1903 = vmatpush1.bf16.msra.mxu0 0
    %1904 = vmatprep.subr.bf16.mxu0 0
    %1905 = vmatpush1.bf16.msra.mxu0 0
    %1906 = vmatprep.subr.bf16.mxu0 0
    %1907 = vmatpush1.bf16.msra.mxu0 0
    %1908 = vmatprep.subr.bf16.mxu0 0
    %1909 = vmatpush1.bf16.msra.mxu0 0
    %1910 = vmatprep.subr.bf16.mxu0 0
    %1911 = vmatpush1.bf16.msra.mxu0 0
    %1912 = vmatprep.subr.bf16.mxu0 0
    %1913 = vmatpush1.bf16.msra.mxu0 0
    %1914 = vmatprep.subr.bf16.mxu0 0
    %1915 = vmatpush1.bf16.msra.mxu0 0
    %1916 = vmatprep.subr.bf16.mxu0 0
    %1917 = vmatpush1.bf16.msra.mxu0 0
    %1918 = vmatprep.mubr.bf16.mxu0 0
    %1919 = vmatmul.mubr.bf16.gmra.mrb[0].mxu0 %v1831
    %v1920 = vpop.f32.mrb[0].mxu0
    %v1921 = vadd.f32 %v1837, %v1920
    %v1922 = vpop.f32.mrb[0].mxu0
    %v1923 = vpop.f32.mrb[0].mxu0
    %v1924 = vadd.f32 %v1837, %v1923
    %v1925 = vpop.f32.mrb[0].mxu0
    %1926 = vmatprep.mubr.bf16.mxu0 0
    %1927 = vmatmul.mubr.bf16.gmra.mrb[0].mxu0 %v1832
    %v1928 = vpop.f32.mrb[0].mxu0
    %v1929 = vadd.f32 %v1837, %v1928
    %v1930 = vpop.f32.mrb[0].mxu0
    %v1931 = vpop.f32.mrb[0].mxu0
    %v1932 = vpop.f32.mrb[0].mxu0
    %1933 = vdwg.mxu0
    %v1934 = vmax.f32 %v1921, 0.0
    %v1935 = vmax.f32 %v1924, 0.0
    %v1936 = vmax.f32 %v1929, 0.0
    %v1937 = vlaneseq
    %v1938 = vshrl.u32 %v1937, 7
    %v1939 = vsub.s32 1, %v1938
    %v1940 = vrot.slane %v1833, %v1939
    %v1941 = vmul.f32 %v1934, %v1940
    %v1942 = vmul.f32 %v1935, %v1940
    %v1943 = vmul.f32 %v1936, %v1940
    %v1944 = vlaneseq
    %v1945 = vshrl.u32 %v1944, 7
    %v1946 = vsub.s32 2, %v1945
    %v1947 = vrot.slane %v1833, %v1946
    %v1948 = vadd.f32 %v1941, %v1947
    %v1949 = vadd.f32 %v1942, %v1947
    %v1950 = vadd.f32 %v1943, %v1947
    %v1953 = vcombine.high %v1948, %v1948
    %v1955 = vunpack.c.l.s4 1966171168
    %v1956 = vunpack.c.0.s8 %v1955
    %v1957 = vlaneseq
    %v1958 = vshrl.u32 %v1957, 7
    %v1959 = vsub.s32 %v1956, %v1958
    %v1960 = vrot.slane %v1948, %v1959
    %v1962 = vunpack.c.l.s4 1966171168
    %v1963 = vunpack.c.0.s8 %v1962
    %v1964 = vlaneseq
    %v1965 = vshrl.u32 %v1964, 7
    %v1966 = vsub.s32 %v1963, %v1965
    %v1967 = vrot.slane %v1953, %v1966
    %v1968 = vcombine.high %v1960, %v1960
    %v1969 = vcombine.high %v1967, %v1967
    %v1971 = vunpack.c.l.s4 1966171168
    %v1972 = vunpack.c.0.s8 %v1971
    %v1973 = vlaneseq
    %v1974 = vshrl.u32 %v1973, 7
    %v1975 = vsub.s32 %v1972, %v1974
    %v1976 = vrot.slane %v1960, %v1975
    %v1978 = vunpack.c.l.s4 1966171168
    %v1979 = vunpack.c.0.s8 %v1978
    %v1980 = vlaneseq
    %v1981 = vshrl.u32 %v1980, 7
    %v1982 = vsub.s32 %v1979, %v1981
    %v1983 = vrot.slane %v1967, %v1982
    %v1985 = vunpack.c.l.s4 1966171168
    %v1986 = vunpack.c.0.s8 %v1985
    %v1987 = vlaneseq
    %v1988 = vshrl.u32 %v1987, 7
    %v1989 = vsub.s32 %v1986, %v1988
    %v1990 = vrot.slane %v1968, %v1989
    %v1992 = vunpack.c.l.s4 1966171168
    %v1993 = vunpack.c.0.s8 %v1992
    %v1994 = vlaneseq
    %v1995 = vshrl.u32 %v1994, 7
    %v1996 = vsub.s32 %v1993, %v1995
    %v1997 = vrot.slane %v1969, %v1996
    %v1998 = vcombine.high %v1976, %v1976
    %v1999 = vcombine.high %v1983, %v1983
    %v2000 = vcombine.high %v1990, %v1990
    %v2001 = vcombine.high %v1997, %v1997
    %v2003 = vunpack.c.l.s4 1966171168
    %v2004 = vunpack.c.0.s8 %v2003
    %v2005 = vlaneseq
    %v2006 = vshrl.u32 %v2005, 7
    %v2007 = vsub.s32 %v2004, %v2006
    %v2008 = vrot.slane %v1949, %v2007
    %v2009 = vcombine.high %v2008, %v2008
    %v2011 = vunpack.c.l.s4 1966171168
    %v2012 = vunpack.c.0.s8 %v2011
    %v2013 = vlaneseq
    %v2014 = vshrl.u32 %v2013, 7
    %v2015 = vsub.s32 %v2012, %v2014
    %v2016 = vrot.slane %v2008, %v2015
    %v2018 = vunpack.c.l.s4 1966171168
    %v2019 = vunpack.c.0.s8 %v2018
    %v2020 = vlaneseq
    %v2021 = vshrl.u32 %v2020, 7
    %v2022 = vsub.s32 %v2019, %v2021
    %v2023 = vrot.slane %v2009, %v2022
    %v2025 = vcombine.high %v1949, %v1949
    %vm2026 = vcmask 1045508
    %vm2027 = vmor %vm1813, %vm2026
    %v2028 = vrot.slane %v1949, 6
    %v2029 = vrot.slane %v2028, 4
    %v2030 = vrot.slane %v2025, 6
    %v2031 = vsel %vm2027, %v2029, %v2030
    %v2032 = vrot.slane %v2030, 4
    %v2033 = vrot.slane %v1950, 6
    %v2034 = vsel %vm2027, %v2032, %v2033
    %v2037 = vcombine.low %v1976, %v1990
    %v2038 = vcombine.low %v1998, %v2000
    %v2040 = vunpack.c.l.s4 1966171168
    %v2041 = vunpack.c.0.s8 %v2040
    %v2042 = vlaneseq
    %v2043 = vshrl.u32 %v2042, 7
    %v2044 = vsub.s32 %v2041, %v2043
    %v2045 = vrot.slane %v2037, %v2044
    %v2047 = vunpack.c.l.s4 1966171168
    %v2048 = vunpack.c.0.s8 %v2047
    %v2049 = vlaneseq
    %v2050 = vshrl.u32 %v2049, 7
    %v2051 = vsub.s32 %v2048, %v2050
    %v2052 = vrot.slane %v2038, %v2051
    %v2054 = vunpack.c.l.s4 1966171168
    %v2055 = vunpack.c.0.s8 %v2054
    %v2056 = vlaneseq
    %v2057 = vshrl.u32 %v2056, 7
    %v2058 = vsub.s32 %v2055, %v2057
    %v2059 = vrot.slane %v1983, %v2058
    %v2060 = vcombine.low %v2045, %v2052
    %v2062 = vunpack.c.l.s4 1966171168
    %v2063 = vunpack.c.0.s8 %v2062
    %v2064 = vlaneseq
    %v2065 = vshrl.u32 %v2064, 7
    %v2066 = vsub.s32 %v2063, %v2065
    %v2067 = vrot.slane %v2060, %v2066
    %v2069 = vunpack.c.l.s4 1966171168
    %v2070 = vunpack.c.0.s8 %v2069
    %v2071 = vlaneseq
    %v2072 = vshrl.u32 %v2071, 7
    %v2073 = vsub.s32 %v2070, %v2072
    %v2074 = vrot.slane %v2059, %v2073
    %v2075 = vcombine.low %v2067, %v2074
    %2077 = vxpose.xlu0.b32.start [1/16] %v2075, 128
    %2078 = vxpose.xlu0.b32.cont [2/16] 0.0, 128
    %2079 = vxpose.xlu0.b32.cont [3/16] 0.0, 128
    %2080 = vxpose.xlu0.b32.cont [4/16] 0.0, 128
    %2081 = vxpose.xlu0.b32.cont [5/16] 0.0, 128
    %2082 = vxpose.xlu0.b32.cont [6/16] 0.0, 128
    %2083 = vxpose.xlu0.b32.cont [7/16] 0.0, 128
    %2084 = vxpose.xlu0.b32.cont [8/16] 0.0, 128
    %2085 = vxpose.xlu0.b32.cont [9/16] 0.0, 128
    %2086 = vxpose.xlu0.b32.cont [10/16] 0.0, 128
    %2087 = vxpose.xlu0.b32.cont [11/16] 0.0, 128
    %2088 = vxpose.xlu0.b32.cont [12/16] 0.0, 128
    %2089 = vxpose.xlu0.b32.cont [13/16] 0.0, 128
    %2090 = vxpose.xlu0.b32.cont [14/16] 0.0, 128
    %2091 = vxpose.xlu0.b32.cont [15/16] 0.0, 128
    %2092 = vxpose.xlu0.b32.end [16/16] 0.0, 128
    %v2093 = vpop.trf.xlu0
    %v2094 = vpop.trf.xlu0
    %v2095 = vpop.trf.xlu0
    %v2096 = vpop.trf.xlu0
    %v2097 = vpop.trf.xlu0
    %v2098 = vpop.trf.xlu0
    %v2099 = vpop.trf.xlu0
    %v2100 = vpop.trf.xlu0
    %v2101 = vpop.trf.xlu0
    %v2102 = vpop.trf.xlu0
    %v2103 = vpop.trf.xlu0
    %v2104 = vpop.trf.xlu0
    %v2105 = vpop.trf.xlu0
    %v2106 = vpop.trf.xlu0
    %v2107 = vpop.trf.xlu0
    %v2108 = vpop.trf.xlu0
    %2109 = vxpose.xlu0.b32.start [1/16] %v2031, 128
    %2110 = vxpose.xlu0.b32.cont [2/16] 0.0, 128
    %2111 = vxpose.xlu0.b32.cont [3/16] 0.0, 128
    %2112 = vxpose.xlu0.b32.cont [4/16] 0.0, 128
    %2113 = vxpose.xlu0.b32.cont [5/16] 0.0, 128
    %2114 = vxpose.xlu0.b32.cont [6/16] 0.0, 128
    %2115 = vxpose.xlu0.b32.cont [7/16] 0.0, 128
    %2116 = vxpose.xlu0.b32.cont [8/16] 0.0, 128
    %2117 = vxpose.xlu0.b32.cont [9/16] 0.0, 128
    %2118 = vxpose.xlu0.b32.cont [10/16] 0.0, 128
    %2119 = vxpose.xlu0.b32.cont [11/16] 0.0, 128
    %2120 = vxpose.xlu0.b32.cont [12/16] 0.0, 128
    %2121 = vxpose.xlu0.b32.cont [13/16] 0.0, 128
    %2122 = vxpose.xlu0.b32.cont [14/16] 0.0, 128
    %2123 = vxpose.xlu0.b32.cont [15/16] 0.0, 128
    %2124 = vxpose.xlu0.b32.end [16/16] 0.0, 128
    %v2125 = vpop.trf.xlu0
    %v2126 = vpop.trf.xlu0
    %v2127 = vpop.trf.xlu0
    %v2128 = vpop.trf.xlu0
    %v2129 = vpop.trf.xlu0
    %v2130 = vpop.trf.xlu0
    %v2131 = vpop.trf.xlu0
    %v2132 = vpop.trf.xlu0
    %v2133 = vpop.trf.xlu0
    %v2134 = vpop.trf.xlu0
    %v2135 = vpop.trf.xlu0
    %v2136 = vpop.trf.xlu0
    %v2137 = vpop.trf.xlu0
    %v2138 = vpop.trf.xlu0
    %v2139 = vpop.trf.xlu0
    %v2140 = vpop.trf.xlu0
    %2145 = vrot.lane.b32.xlu0 %v2125, 5
    %v2146 = vpop.permute.xlu0 %2145
    %2147 = vrot.lane.b32.xlu0 %v2126, 5
    %v2148 = vpop.permute.xlu0 %2147
    %2149 = vrot.lane.b32.xlu0 %v2127, 5
    %v2150 = vpop.permute.xlu0 %2149
    %2151 = vrot.lane.b32.xlu0 %v2128, 5
    %v2152 = vpop.permute.xlu0 %2151
    %vm2157 = vcmask 39936
    %v2158 = vsel %vm2157, %v2093, %v2146
    %v2159 = vsel %vm2157, %v2094, %v2148
    %v2160 = vsel %vm2157, %v2095, %v2150
    %v2161 = vsel %vm2157, %v2096, %v2152
    %v2162 = vcombine.low %v1997, %v1999
    %v2163 = vcombine.low %v2001, %v2016
    %v2165 = vunpack.c.l.s4 1966171168
    %v2166 = vunpack.c.0.s8 %v2165
    %v2167 = vlaneseq
    %v2168 = vshrl.u32 %v2167, 7
    %v2169 = vsub.s32 %v2166, %v2168
    %v2170 = vrot.slane %v2162, %v2169
    %v2172 = vunpack.c.l.s4 1966171168
    %v2173 = vunpack.c.0.s8 %v2172
    %v2174 = vlaneseq
    %v2175 = vshrl.u32 %v2174, 7
    %v2176 = vsub.s32 %v2173, %v2175
    %v2177 = vrot.slane %v2163, %v2176
    %v2179 = vunpack.c.l.s4 1966171168
    %v2180 = vunpack.c.0.s8 %v2179
    %v2181 = vlaneseq
    %v2182 = vshrl.u32 %v2181, 7
    %v2183 = vsub.s32 %v2180, %v2182
    %v2184 = vrot.slane %v2023, %v2183
    %v2185 = vcombine.low %v2170, %v2177
    %v2187 = vunpack.c.l.s4 1966171168
    %v2188 = vunpack.c.0.s8 %v2187
    %v2189 = vlaneseq
    %v2190 = vshrl.u32 %v2189, 7
    %v2191 = vsub.s32 %v2188, %v2190
    %v2192 = vrot.slane %v2185, %v2191
    %v2194 = vunpack.c.l.s4 1966171168
    %v2195 = vunpack.c.0.s8 %v2194
    %v2196 = vlaneseq
    %v2197 = vshrl.u32 %v2196, 7
    %v2198 = vsub.s32 %v2195, %v2197
    %v2199 = vrot.slane %v2184, %v2198
    %v2200 = vcombine.low %v2192, %v2199
    %2202 = vxpose.xlu0.b32.start [1/16] %v2200, 128
    %2203 = vxpose.xlu0.b32.cont [2/16] 0.0, 128
    %2204 = vxpose.xlu0.b32.cont [3/16] 0.0, 128
    %2205 = vxpose.xlu0.b32.cont [4/16] 0.0, 128
    %2206 = vxpose.xlu0.b32.cont [5/16] 0.0, 128
    %2207 = vxpose.xlu0.b32.cont [6/16] 0.0, 128
    %2208 = vxpose.xlu0.b32.cont [7/16] 0.0, 128
    %2209 = vxpose.xlu0.b32.cont [8/16] 0.0, 128
    %2210 = vxpose.xlu0.b32.cont [9/16] 0.0, 128
    %2211 = vxpose.xlu0.b32.cont [10/16] 0.0, 128
    %2212 = vxpose.xlu0.b32.cont [11/16] 0.0, 128
    %2213 = vxpose.xlu0.b32.cont [12/16] 0.0, 128
    %2214 = vxpose.xlu0.b32.cont [13/16] 0.0, 128
    %2215 = vxpose.xlu0.b32.cont [14/16] 0.0, 128
    %2216 = vxpose.xlu0.b32.cont [15/16] 0.0, 128
    %2217 = vxpose.xlu0.b32.end [16/16] 0.0, 128
    %v2218 = vpop.trf.xlu0
    %v2219 = vpop.trf.xlu0
    %v2220 = vpop.trf.xlu0
    %v2221 = vpop.trf.xlu0
    %v2222 = vpop.trf.xlu0
    %v2223 = vpop.trf.xlu0
    %v2224 = vpop.trf.xlu0
    %v2225 = vpop.trf.xlu0
    %v2226 = vpop.trf.xlu0
    %v2227 = vpop.trf.xlu0
    %v2228 = vpop.trf.xlu0
    %v2229 = vpop.trf.xlu0
    %v2230 = vpop.trf.xlu0
    %v2231 = vpop.trf.xlu0
    %v2232 = vpop.trf.xlu0
    %v2233 = vpop.trf.xlu0
    %2234 = vxpose.xlu0.b32.start [1/16] %v2034, 128
    %2235 = vxpose.xlu0.b32.cont [2/16] 0.0, 128
    %2236 = vxpose.xlu0.b32.cont [3/16] 0.0, 128
    %2237 = vxpose.xlu0.b32.cont [4/16] 0.0, 128
    %2238 = vxpose.xlu0.b32.cont [5/16] 0.0, 128
    %2239 = vxpose.xlu0.b32.cont [6/16] 0.0, 128
    %2240 = vxpose.xlu0.b32.cont [7/16] 0.0, 128
    %2241 = vxpose.xlu0.b32.cont [8/16] 0.0, 128
    %2242 = vxpose.xlu0.b32.cont [9/16] 0.0, 128
    %2243 = vxpose.xlu0.b32.cont [10/16] 0.0, 128
    %2244 = vxpose.xlu0.b32.cont [11/16] 0.0, 128
    %2245 = vxpose.xlu0.b32.cont [12/16] 0.0, 128
    %2246 = vxpose.xlu0.b32.cont [13/16] 0.0, 128
    %2247 = vxpose.xlu0.b32.cont [14/16] 0.0, 128
    %2248 = vxpose.xlu0.b32.cont [15/16] 0.0, 128
    %2249 = vxpose.xlu0.b32.end [16/16] 0.0, 128
    %v2250 = vpop.trf.xlu0
    %v2251 = vpop.trf.xlu0
    %v2252 = vpop.trf.xlu0
    %v2253 = vpop.trf.xlu0
    %v2254 = vpop.trf.xlu0
    %v2255 = vpop.trf.xlu0
    %v2256 = vpop.trf.xlu0
    %v2257 = vpop.trf.xlu0
    %v2258 = vpop.trf.xlu0
    %v2259 = vpop.trf.xlu0
    %v2260 = vpop.trf.xlu0
    %v2261 = vpop.trf.xlu0
    %v2262 = vpop.trf.xlu0
    %v2263 = vpop.trf.xlu0
    %v2264 = vpop.trf.xlu0
    %v2265 = vpop.trf.xlu0
    %2270 = vrot.lane.b32.xlu0 %v2250, 5
    %v2271 = vpop.permute.xlu0 %2270
    %2272 = vrot.lane.b32.xlu0 %v2251, 5
    %v2273 = vpop.permute.xlu0 %2272
    %2274 = vrot.lane.b32.xlu0 %v2252, 5
    %v2275 = vpop.permute.xlu0 %2274
    %2276 = vrot.lane.b32.xlu0 %v2253, 5
    %v2277 = vpop.permute.xlu0 %2276
    %v2282 = vsel %vm2157, %v2218, %v2271
    %v2283 = vsel %vm2157, %v2219, %v2273
    %v2284 = vsel %vm2157, %v2220, %v2275
    %v2285 = vsel %vm2157, %v2221, %v2277
    %v2286 = vld [vmem:[%s7] sm:$0xff]
    %v2287 = vld [vmem:[%s7 + $0x8] sm:$0xff]
    %v2288 = vld [vmem:[%s7 + $0x10] sm:$0x11]
    %v2289 = vld [vmem:[%s7 + $0x18] sm:$0x11]
    %v2290 = vpack.c.bf16 %v2159, %v2158
    %v2291 = vpack.c.bf16 %v2161, %v2160
    %v2292 = vpack.c.bf16 %v2283, %v2282
    %v2293 = vpack.c.bf16 %v2285, %v2284
    %v2294 = vld [vmem:[%s8] sm:$0xf]
    %v2296 = vlaneseq
    %v2297 = vshrl.u32 %v2296, 7
    %v2298 = vsub.s32 0, %v2297
    %v2299 = vrot.slane %v2294, %v2298
    %v2300 = vlaneseq
    %v2301 = vshrl.u32 %v2300, 7
    %v2302 = vsub.s32 1, %v2301
    %v2303 = vrot.slane %v2294, %v2302
    %v2304 = vlaneseq
    %v2305 = vshrl.u32 %v2304, 7
    %v2306 = vsub.s32 2, %v2305
    %v2307 = vrot.slane %v2294, %v2306
    %v2308 = vlaneseq
    %v2309 = vshrl.u32 %v2308, 7
    %v2310 = vsub.s32 3, %v2309
    %v2311 = vrot.slane %v2294, %v2310
    %v2320 = vunpack.c.l.b16 %v2286
    %v2321 = vunpack.c.h.b16 %v2286
    %v2322 = vunpack.c.l.b16 %v2287
    %v2323 = vunpack.c.h.b16 %v2287
    %v2324 = vunpack.c.l.b16 %v2288
    %v2325 = vunpack.c.h.b16 %v2288
    %v2326 = vunpack.c.l.b16 %v2289
    %v2327 = vunpack.c.h.b16 %v2289
    %v2328 = vpack.c.b16 %v2324, %v2320
    %v2329 = vpack.c.b16 %v2325, %v2321
    %v2330 = vpack.c.b16 %v2326, %v2322
    %v2331 = vpack.c.b16 %v2327, %v2323
    %vm2332 = vcmask 72704
    %v2334 = vsel %vm2332, %v2290, 0
    %v2337 = vsel %vm2332, %v2291, 0
    %v2340 = vsel %vm2332, %v2292, 0
    %v2343 = vsel %vm2332, %v2293, 0
    %vm2345 = vcmask 1043456
    %v2346 = vsel %vm2345, 4294967295, 65535
    %v2347 = vsel %vm259, %v2346, 0
    %v2349 = vand.u32 %v2328, %v2347
    %v2352 = vand.u32 %v2329, %v2347
    %v2355 = vand.u32 %v2330, %v2347
    %v2358 = vand.u32 %v2331, %v2347
    %2360 = vmatprep.subr.bf16.mxu0 %v2352
    %2361 = vmatpush1.bf16.msra.mxu0 %v2349
    %2362 = vmatprep.subr.bf16.mxu0 0
    %2363 = vmatpush1.bf16.msra.mxu0 0
    %2364 = vmatprep.subr.bf16.mxu0 0
    %2365 = vmatpush1.bf16.msra.mxu0 0
    %2366 = vmatprep.subr.bf16.mxu0 0
    %2367 = vmatpush1.bf16.msra.mxu0 0
    %2368 = vmatprep.subr.bf16.mxu0 0
    %2369 = vmatpush1.bf16.msra.mxu0 0
    %2370 = vmatprep.subr.bf16.mxu0 0
    %2371 = vmatpush1.bf16.msra.mxu0 0
    %2372 = vmatprep.subr.bf16.mxu0 0
    %2373 = vmatpush1.bf16.msra.mxu0 0
    %2374 = vmatprep.subr.bf16.mxu0 0
    %2375 = vmatpush1.bf16.msra.mxu0 0
    %2376 = vmatprep.subr.bf16.mxu0 0
    %2377 = vmatpush1.bf16.msra.mxu0 0
    %2378 = vmatprep.subr.bf16.mxu0 0
    %2379 = vmatpush1.bf16.msra.mxu0 0
    %2380 = vmatprep.subr.bf16.mxu0 0
    %2381 = vmatpush1.bf16.msra.mxu0 0
    %2382 = vmatprep.subr.bf16.mxu0 0
    %2383 = vmatpush1.bf16.msra.mxu0 0
    %2384 = vmatprep.subr.bf16.mxu0 0
    %2385 = vmatpush1.bf16.msra.mxu0 0
    %2386 = vmatprep.subr.bf16.mxu0 0
    %2387 = vmatpush1.bf16.msra.mxu0 0
    %2388 = vmatprep.subr.bf16.mxu0 0
    %2389 = vmatpush1.bf16.msra.mxu0 0
    %2390 = vmatprep.subr.bf16.mxu0 0
    %2391 = vmatpush1.bf16.msra.mxu0 0
    %2392 = vmatprep.mubr.bf16.mxu0 0
    %2393 = vmatmul.mubr.bf16.gmra.mrb[0].mxu0 %v2334
    %v2394 = vpop.f32.mrb[0].mxu0
    %v2395 = vadd.f32 %v2299, %v2394
    %v2396 = vpop.f32.mrb[0].mxu0
    %v2397 = vadd.f32 %v2303, %v2396
    %v2398 = vpop.f32.mrb[0].mxu0
    %v2399 = vadd.f32 %v2299, %v2398
    %v2400 = vpop.f32.mrb[0].mxu0
    %v2401 = vadd.f32 %v2303, %v2400
    %2402 = vmatprep.mubr.bf16.mxu0 0
    %2403 = vmatmul.mubr.bf16.gmra.mrb[0].mxu0 %v2337
    %v2404 = vpop.f32.mrb[0].mxu0
    %v2405 = vadd.f32 %v2299, %v2404
    %v2406 = vpop.f32.mrb[0].mxu0
    %v2407 = vadd.f32 %v2303, %v2406
    %v2408 = vpop.f32.mrb[0].mxu0
    %v2409 = vadd.f32 %v2299, %v2408
    %v2410 = vpop.f32.mrb[0].mxu0
    %v2411 = vadd.f32 %v2303, %v2410
    %2412 = vmatprep.mubr.bf16.mxu0 0
    %2413 = vmatmul.mubr.bf16.gmra.mrb[0].mxu0 %v2340
    %v2414 = vpop.f32.mrb[0].mxu0
    %v2415 = vadd.f32 %v2299, %v2414
    %v2416 = vpop.f32.mrb[0].mxu0
    %v2417 = vadd.f32 %v2303, %v2416
    %v2418 = vpop.f32.mrb[0].mxu0
    %v2419 = vadd.f32 %v2299, %v2418
    %v2420 = vpop.f32.mrb[0].mxu0
    %v2421 = vadd.f32 %v2303, %v2420
    %2422 = vmatprep.mubr.bf16.mxu0 0
    %2423 = vmatmul.mubr.bf16.gmra.mrb[0].mxu0 %v2343
    %v2424 = vpop.f32.mrb[0].mxu0
    %v2425 = vadd.f32 %v2299, %v2424
    %v2426 = vpop.f32.mrb[0].mxu0
    %v2427 = vadd.f32 %v2303, %v2426
    %v2428 = vpop.f32.mrb[0].mxu0
    %v2429 = vadd.f32 %v2299, %v2428
    %v2430 = vpop.f32.mrb[0].mxu0
    %v2431 = vadd.f32 %v2303, %v2430
    %2432 = vdwg.mxu0
    %2433 = vmatprep.subr.bf16.mxu0 %v2358
    %2434 = vmatpush1.bf16.msra.mxu0 %v2355
    %2435 = vmatprep.subr.bf16.mxu0 0
    %2436 = vmatpush1.bf16.msra.mxu0 0
    %2437 = vmatprep.subr.bf16.mxu0 0
    %2438 = vmatpush1.bf16.msra.mxu0 0
    %2439 = vmatprep.subr.bf16.mxu0 0
    %2440 = vmatpush1.bf16.msra.mxu0 0
    %2441 = vmatprep.subr.bf16.mxu0 0
    %2442 = vmatpush1.bf16.msra.mxu0 0
    %2443 = vmatprep.subr.bf16.mxu0 0
    %2444 = vmatpush1.bf16.msra.mxu0 0
    %2445 = vmatprep.subr.bf16.mxu0 0
    %2446 = vmatpush1.bf16.msra.mxu0 0
    %2447 = vmatprep.subr.bf16.mxu0 0
    %2448 = vmatpush1.bf16.msra.mxu0 0
    %2449 = vmatprep.subr.bf16.mxu0 0
    %2450 = vmatpush1.bf16.msra.mxu0 0
    %2451 = vmatprep.subr.bf16.mxu0 0
    %2452 = vmatpush1.bf16.msra.mxu0 0
    %2453 = vmatprep.subr.bf16.mxu0 0
    %2454 = vmatpush1.bf16.msra.mxu0 0
    %2455 = vmatprep.subr.bf16.mxu0 0
    %2456 = vmatpush1.bf16.msra.mxu0 0
    %2457 = vmatprep.subr.bf16.mxu0 0
    %2458 = vmatpush1.bf16.msra.mxu0 0
    %2459 = vmatprep.subr.bf16.mxu0 0
    %2460 = vmatpush1.bf16.msra.mxu0 0
    %2461 = vmatprep.subr.bf16.mxu0 0
    %2462 = vmatpush1.bf16.msra.mxu0 0
    %2463 = vmatprep.subr.bf16.mxu0 0
    %2464 = vmatpush1.bf16.msra.mxu0 0
    %2465 = vmatprep.mubr.bf16.mxu0 0
    %2466 = vmatmul.mubr.bf16.gmra.mrb[0].mxu0 %v2334
    %v2467 = vpop.f32.mrb[0].mxu0
    %v2468 = vadd.f32 %v2307, %v2467
    %v2469 = vpop.f32.mrb[0].mxu0
    %v2470 = vadd.f32 %v2311, %v2469
    %v2471 = vpop.f32.mrb[0].mxu0
    %v2472 = vadd.f32 %v2307, %v2471
    %v2473 = vpop.f32.mrb[0].mxu0
    %v2474 = vadd.f32 %v2311, %v2473
    %2475 = vmatprep.mubr.bf16.mxu0 0
    %2476 = vmatmul.mubr.bf16.gmra.mrb[0].mxu0 %v2337
    %v2477 = vpop.f32.mrb[0].mxu0
    %v2478 = vadd.f32 %v2307, %v2477
    %v2479 = vpop.f32.mrb[0].mxu0
    %v2480 = vadd.f32 %v2311, %v2479
    %v2481 = vpop.f32.mrb[0].mxu0
    %v2482 = vadd.f32 %v2307, %v2481
    %v2483 = vpop.f32.mrb[0].mxu0
    %v2484 = vadd.f32 %v2311, %v2483
    %2485 = vmatprep.mubr.bf16.mxu0 0
    %2486 = vmatmul.mubr.bf16.gmra.mrb[0].mxu0 %v2340
    %v2487 = vpop.f32.mrb[0].mxu0
    %v2488 = vadd.f32 %v2307, %v2487
    %v2489 = vpop.f32.mrb[0].mxu0
    %v2490 = vadd.f32 %v2311, %v2489
    %v2491 = vpop.f32.mrb[0].mxu0
    %v2492 = vadd.f32 %v2307, %v2491
    %v2493 = vpop.f32.mrb[0].mxu0
    %v2494 = vadd.f32 %v2311, %v2493
    %2495 = vmatprep.mubr.bf16.mxu0 0
    %2496 = vmatmul.mubr.bf16.gmra.mrb[0].mxu0 %v2343
    %v2497 = vpop.f32.mrb[0].mxu0
    %v2498 = vadd.f32 %v2307, %v2497
    %v2499 = vpop.f32.mrb[0].mxu0
    %v2500 = vadd.f32 %v2311, %v2499
    %v2501 = vpop.f32.mrb[0].mxu0
    %v2502 = vadd.f32 %v2307, %v2501
    %v2503 = vpop.f32.mrb[0].mxu0
    %v2504 = vadd.f32 %v2311, %v2503
    %2505 = vdwg.mxu0
    %v2506 = vld [vmem:[%s9] sm:$0xff]
    %v2507 = vld [vmem:[%s9 + $0x8] sm:$0xff]
    %v2508 = vld [vmem:[%s9 + $0x10] sm:$0xff]
    %v2509 = vld [vmem:[%s9 + $0x18] sm:$0xff]
    %v2510 = vld [vmem:[%s9 + $0x20] sm:$0xff]
    %v2511 = vld [vmem:[%s9 + $0x28] sm:$0xff]
    %v2512 = vld [vmem:[%s9 + $0x30] sm:$0xff]
    %v2513 = vld [vmem:[%s9 + $0x38] sm:$0xff]
    %v2514 = vld [vmem:[%s9 + $0x40] sm:$0xff]
    %v2515 = vld [vmem:[%s9 + $0x48] sm:$0xff]
    %v2516 = vld [vmem:[%s9 + $0x50] sm:$0xff]
    %v2517 = vld [vmem:[%s9 + $0x58] sm:$0xff]
    %v2518 = vld [vmem:[%s9 + $0x60] sm:$0xff]
    %v2519 = vld [vmem:[%s9 + $0x68] sm:$0xff]
    %v2520 = vld [vmem:[%s9 + $0x70] sm:$0xff]
    %v2521 = vld [vmem:[%s9 + $0x78] sm:$0xff]
    %v2522 = vld [vmem:[%s9 + $0x80] sm:$0xff]
    %v2523 = vld [vmem:[%s9 + $0x88] sm:$0xff]
    %v2524 = vld [vmem:[%s9 + $0x90] sm:$0xff]
    %v2525 = vld [vmem:[%s9 + $0x98] sm:$0xff]
    %v2526 = vld [vmem:[%s9 + $0xa0] sm:$0xff]
    %v2527 = vld [vmem:[%s9 + $0xa8] sm:$0xff]
    %v2528 = vld [vmem:[%s9 + $0xb0] sm:$0xff]
    %v2529 = vld [vmem:[%s9 + $0xb8] sm:$0xff]
    %v2530 = vld [vmem:[%s9 + $0xc0] sm:$0xff]
    %v2531 = vld [vmem:[%s9 + $0xc8] sm:$0xff]
    %v2532 = vld [vmem:[%s9 + $0xd0] sm:$0xff]
    %v2533 = vld [vmem:[%s9 + $0xd8] sm:$0xff]
    %v2534 = vld [vmem:[%s9 + $0xe0] sm:$0xff]
    %v2535 = vld [vmem:[%s9 + $0xe8] sm:$0xff]
    %v2536 = vld [vmem:[%s9 + $0xf0] sm:$0xff]
    %v2537 = vld [vmem:[%s9 + $0xf8] sm:$0xff]
    %v2570 = vunpack.c.l.b16 %v2506
    %v2571 = vunpack.c.h.b16 %v2506
    %v2572 = vunpack.c.l.b16 %v2507
    %v2573 = vunpack.c.h.b16 %v2507
    %v2574 = vunpack.c.l.b16 %v2508
    %v2575 = vunpack.c.h.b16 %v2508
    %v2576 = vunpack.c.l.b16 %v2509
    %v2577 = vunpack.c.h.b16 %v2509
    %v2578 = vunpack.c.l.b16 %v2510
    %v2579 = vunpack.c.h.b16 %v2510
    %v2580 = vunpack.c.l.b16 %v2511
    %v2581 = vunpack.c.h.b16 %v2511
    %v2582 = vunpack.c.l.b16 %v2512
    %v2583 = vunpack.c.h.b16 %v2512
    %v2584 = vunpack.c.l.b16 %v2513
    %v2585 = vunpack.c.h.b16 %v2513
    %v2586 = vunpack.c.l.b16 %v2514
    %v2587 = vunpack.c.h.b16 %v2514
    %v2588 = vunpack.c.l.b16 %v2515
    %v2589 = vunpack.c.h.b16 %v2515
    %v2590 = vunpack.c.l.b16 %v2516
    %v2591 = vunpack.c.h.b16 %v2516
    %v2592 = vunpack.c.l.b16 %v2517
    %v2593 = vunpack.c.h.b16 %v2517
    %v2594 = vunpack.c.l.b16 %v2518
    %v2595 = vunpack.c.h.b16 %v2518
    %v2596 = vunpack.c.l.b16 %v2519
    %v2597 = vunpack.c.h.b16 %v2519
    %v2598 = vunpack.c.l.b16 %v2520
    %v2599 = vunpack.c.h.b16 %v2520
    %v2600 = vunpack.c.l.b16 %v2521
    %v2601 = vunpack.c.h.b16 %v2521
    %v2602 = vunpack.c.l.b16 %v2522
    %v2603 = vunpack.c.h.b16 %v2522
    %v2604 = vunpack.c.l.b16 %v2523
    %v2605 = vunpack.c.h.b16 %v2523
    %v2606 = vunpack.c.l.b16 %v2524
    %v2607 = vunpack.c.h.b16 %v2524
    %v2608 = vunpack.c.l.b16 %v2525
    %v2609 = vunpack.c.h.b16 %v2525
    %v2610 = vunpack.c.l.b16 %v2526
    %v2611 = vunpack.c.h.b16 %v2526
    %v2612 = vunpack.c.l.b16 %v2527
    %v2613 = vunpack.c.h.b16 %v2527
    %v2614 = vunpack.c.l.b16 %v2528
    %v2615 = vunpack.c.h.b16 %v2528
    %v2616 = vunpack.c.l.b16 %v2529
    %v2617 = vunpack.c.h.b16 %v2529
    %v2618 = vunpack.c.l.b16 %v2530
    %v2619 = vunpack.c.h.b16 %v2530
    %v2620 = vunpack.c.l.b16 %v2531
    %v2621 = vunpack.c.h.b16 %v2531
    %v2622 = vunpack.c.l.b16 %v2532
    %v2623 = vunpack.c.h.b16 %v2532
    %v2624 = vunpack.c.l.b16 %v2533
    %v2625 = vunpack.c.h.b16 %v2533
    %v2626 = vunpack.c.l.b16 %v2534
    %v2627 = vunpack.c.h.b16 %v2534
    %v2628 = vunpack.c.l.b16 %v2535
    %v2629 = vunpack.c.h.b16 %v2535
    %v2630 = vunpack.c.l.b16 %v2536
    %v2631 = vunpack.c.h.b16 %v2536
    %v2632 = vunpack.c.l.b16 %v2537
    %v2633 = vunpack.c.h.b16 %v2537
    %v2634 = vpack.c.b16 %v2574, %v2570
    %v2635 = vpack.c.b16 %v2575, %v2571
    %v2636 = vpack.c.b16 %v2576, %v2572
    %v2637 = vpack.c.b16 %v2577, %v2573
    %v2638 = vpack.c.b16 %v2582, %v2578
    %v2639 = vpack.c.b16 %v2583, %v2579
    %v2640 = vpack.c.b16 %v2584, %v2580
    %v2641 = vpack.c.b16 %v2585, %v2581
    %v2642 = vpack.c.b16 %v2590, %v2586
    %v2643 = vpack.c.b16 %v2591, %v2587
    %v2644 = vpack.c.b16 %v2592, %v2588
    %v2645 = vpack.c.b16 %v2593, %v2589
    %v2646 = vpack.c.b16 %v2598, %v2594
    %v2647 = vpack.c.b16 %v2599, %v2595
    %v2648 = vpack.c.b16 %v2600, %v2596
    %v2649 = vpack.c.b16 %v2601, %v2597
    %v2650 = vpack.c.b16 %v2606, %v2602
    %v2651 = vpack.c.b16 %v2607, %v2603
    %v2652 = vpack.c.b16 %v2608, %v2604
    %v2653 = vpack.c.b16 %v2609, %v2605
    %v2654 = vpack.c.b16 %v2614, %v2610
    %v2655 = vpack.c.b16 %v2615, %v2611
    %v2656 = vpack.c.b16 %v2616, %v2612
    %v2657 = vpack.c.b16 %v2617, %v2613
    %v2658 = vpack.c.b16 %v2622, %v2618
    %v2659 = vpack.c.b16 %v2623, %v2619
    %v2660 = vpack.c.b16 %v2624, %v2620
    %v2661 = vpack.c.b16 %v2625, %v2621
    %v2662 = vpack.c.b16 %v2630, %v2626
    %v2663 = vpack.c.b16 %v2631, %v2627
    %v2664 = vpack.c.b16 %v2632, %v2628
    %v2665 = vpack.c.b16 %v2633, %v2629
    %2698 = vmatprep.subr.bf16.mxu0 %v2635
    %2699 = vmatpush1.bf16.msra.mxu0 %v2634
    %2700 = vmatprep.subr.bf16.mxu0 %v2639
    %2701 = vmatpush1.bf16.msra.mxu0 %v2638
    %2702 = vmatprep.subr.bf16.mxu0 %v2643
    %2703 = vmatpush1.bf16.msra.mxu0 %v2642
    %2704 = vmatprep.subr.bf16.mxu0 %v2647
    %2705 = vmatpush1.bf16.msra.mxu0 %v2646
    %2706 = vmatprep.subr.bf16.mxu0 %v2651
    %2707 = vmatpush1.bf16.msra.mxu0 %v2650
    %2708 = vmatprep.subr.bf16.mxu0 %v2655
    %2709 = vmatpush1.bf16.msra.mxu0 %v2654
    %2710 = vmatprep.subr.bf16.mxu0 %v2659
    %2711 = vmatpush1.bf16.msra.mxu0 %v2658
    %2712 = vmatprep.subr.bf16.mxu0 %v2663
    %2713 = vmatpush1.bf16.msra.mxu0 %v2662
    %2714 = vmatprep.subr.bf16.mxu0 0
    %2715 = vmatpush1.bf16.msra.mxu0 0
    %2716 = vmatprep.subr.bf16.mxu0 0
    %2717 = vmatpush1.bf16.msra.mxu0 0
    %2718 = vmatprep.subr.bf16.mxu0 0
    %2719 = vmatpush1.bf16.msra.mxu0 0
    %2720 = vmatprep.subr.bf16.mxu0 0
    %2721 = vmatpush1.bf16.msra.mxu0 0
    %2722 = vmatprep.subr.bf16.mxu0 0
    %2723 = vmatpush1.bf16.msra.mxu0 0
    %2724 = vmatprep.subr.bf16.mxu0 0
    %2725 = vmatpush1.bf16.msra.mxu0 0
    %2726 = vmatprep.subr.bf16.mxu0 0
    %2727 = vmatpush1.bf16.msra.mxu0 0
    %2728 = vmatprep.subr.bf16.mxu0 0
    %2729 = vmatpush1.bf16.msra.mxu0 0
    %2730 = vmatprep.mubr.bf16.mxu0 0
    %2731 = vmatmul.mubr.bf16.gmra.mrb[0].mxu0 0
    %v2732 = vpop.f32.mrb[0].mxu0
    %v2733 = vadd.f32 0.0, %v2732
    %v2734 = vpop.f32.mrb[0].mxu0
    %v2735 = vadd.f32 0.0, %v2734
    %v2736 = vpop.f32.mrb[0].mxu0
    %v2737 = vadd.f32 0.0, %v2736
    %v2738 = vpop.f32.mrb[0].mxu0
    %v2739 = vadd.f32 0.0, %v2738
    %2740 = vmatprep.mubr.bf16.mxu0 0
    %2741 = vmatmul.mubr.bf16.gmra.mrb[0].mxu0 0
    %v2742 = vpop.f32.mrb[0].mxu0
    %v2743 = vadd.f32 0.0, %v2742
    %v2744 = vpop.f32.mrb[0].mxu0
    %v2745 = vadd.f32 0.0, %v2744
    %v2746 = vpop.f32.mrb[0].mxu0
    %v2747 = vadd.f32 0.0, %v2746
    %v2748 = vpop.f32.mrb[0].mxu0
    %v2749 = vadd.f32 0.0, %v2748
    %2750 = vdwg.mxu0
    %2751 = vmatprep.subr.bf16.mxu0 %v2637
    %2752 = vmatpush1.bf16.msra.mxu0 %v2636
    %2753 = vmatprep.subr.bf16.mxu0 %v2641
    %2754 = vmatpush1.bf16.msra.mxu0 %v2640
    %2755 = vmatprep.subr.bf16.mxu0 %v2645
    %2756 = vmatpush1.bf16.msra.mxu0 %v2644
    %2757 = vmatprep.subr.bf16.mxu0 %v2649
    %2758 = vmatpush1.bf16.msra.mxu0 %v2648
    %2759 = vmatprep.subr.bf16.mxu0 %v2653
    %2760 = vmatpush1.bf16.msra.mxu0 %v2652
    %2761 = vmatprep.subr.bf16.mxu0 %v2657
    %2762 = vmatpush1.bf16.msra.mxu0 %v2656
    %2763 = vmatprep.subr.bf16.mxu0 %v2661
    %2764 = vmatpush1.bf16.msra.mxu0 %v2660
    %2765 = vmatprep.subr.bf16.mxu0 %v2665
    %2766 = vmatpush1.bf16.msra.mxu0 %v2664
    %2767 = vmatprep.subr.bf16.mxu0 0
    %2768 = vmatpush1.bf16.msra.mxu0 0
    %2769 = vmatprep.subr.bf16.mxu0 0
    %2770 = vmatpush1.bf16.msra.mxu0 0
    %2771 = vmatprep.subr.bf16.mxu0 0
    %2772 = vmatpush1.bf16.msra.mxu0 0
    %2773 = vmatprep.subr.bf16.mxu0 0
    %2774 = vmatpush1.bf16.msra.mxu0 0
    %2775 = vmatprep.subr.bf16.mxu0 0
    %2776 = vmatpush1.bf16.msra.mxu0 0
    %2777 = vmatprep.subr.bf16.mxu0 0
    %2778 = vmatpush1.bf16.msra.mxu0 0
    %2779 = vmatprep.subr.bf16.mxu0 0
    %2780 = vmatpush1.bf16.msra.mxu0 0
    %2781 = vmatprep.subr.bf16.mxu0 0
    %2782 = vmatpush1.bf16.msra.mxu0 0
    %2783 = vmatprep.mubr.bf16.mxu0 0
    %2784 = vmatmul.mubr.bf16.gmra.mrb[0].mxu0 0
    %v2785 = vpop.f32.mrb[0].mxu0
    %v2786 = vadd.f32 0.0, %v2785
    %v2787 = vpop.f32.mrb[0].mxu0
    %v2788 = vadd.f32 0.0, %v2787
    %v2789 = vpop.f32.mrb[0].mxu0
    %v2790 = vadd.f32 0.0, %v2789
    %v2791 = vpop.f32.mrb[0].mxu0
    %v2792 = vadd.f32 0.0, %v2791
    %2793 = vmatprep.mubr.bf16.mxu0 0
    %2794 = vmatmul.mubr.bf16.gmra.mrb[0].mxu0 0
    %v2795 = vpop.f32.mrb[0].mxu0
    %v2796 = vadd.f32 0.0, %v2795
    %v2797 = vpop.f32.mrb[0].mxu0
    %v2798 = vadd.f32 0.0, %v2797
    %v2799 = vpop.f32.mrb[0].mxu0
    %v2800 = vadd.f32 0.0, %v2799
    %v2801 = vpop.f32.mrb[0].mxu0
    %v2802 = vadd.f32 0.0, %v2801
    %2803 = vdwg.mxu0
    %v2804 = vadd.f32 %v2395, %v2733
    %v2805 = vadd.f32 %v2397, %v2735
    %v2806 = vadd.f32 %v2468, %v2786
    %v2807 = vadd.f32 %v2470, %v2788
    %v2808 = vadd.f32 %v2399, %v2737
    %v2809 = vadd.f32 %v2401, %v2739
    %v2810 = vadd.f32 %v2472, %v2790
    %v2811 = vadd.f32 %v2474, %v2792
    %v2812 = vadd.f32 %v2405, %v2743
    %v2813 = vadd.f32 %v2407, %v2745
    %v2814 = vadd.f32 %v2478, %v2796
    %v2815 = vadd.f32 %v2480, %v2798
    %v2816 = vadd.f32 %v2409, %v2747
    %v2817 = vadd.f32 %v2411, %v2749
    %v2818 = vadd.f32 %v2482, %v2800
    %v2819 = vadd.f32 %v2484, %v2802
    %v2820 = vxor.u32 %v2804, 2147483648
    %v2821 = vxor.u32 %v2808, 2147483648
    %v2822 = vxor.u32 %v2812, 2147483648
    %v2823 = vxor.u32 %v2816, 2147483648
    %v2824 = vmul.f32 %v2820, 1.442695
    %v2825 = vpow.pop %v2824
    %v2826 = vmul.f32 %v2821, 1.442695
    %v2827 = vpow.pop %v2826
    %v2828 = vmul.f32 %v2822, 1.442695
    %v2829 = vpow.pop %v2828
    %v2830 = vmul.f32 %v2823, 1.442695
    %v2831 = vpow.pop %v2830
    %v2832 = vadd.f32 %v2825, 1.0
    %v2833 = vadd.f32 %v2827, 1.0
    %v2834 = vadd.f32 %v2829, 1.0
    %v2835 = vadd.f32 %v2831, 1.0
    %v2836 = vrcp.pop %v2832
    %v2837 = vmul.f32 1.0, %v2836
    %v2838 = vrcp.pop %v2833
    %v2839 = vmul.f32 1.0, %v2838
    %v2840 = vrcp.pop %v2834
    %v2841 = vmul.f32 1.0, %v2840
    %v2842 = vrcp.pop %v2835
    %v2843 = vmul.f32 1.0, %v2842
    %v2844 = vxor.u32 %v2805, 2147483648
    %v2845 = vxor.u32 %v2809, 2147483648
    %v2846 = vxor.u32 %v2813, 2147483648
    %v2847 = vxor.u32 %v2817, 2147483648
    %v2848 = vmul.f32 %v2844, 1.442695
    %v2849 = vpow.pop %v2848
    %v2850 = vmul.f32 %v2845, 1.442695
    %v2851 = vpow.pop %v2850
    %v2852 = vmul.f32 %v2846, 1.442695
    %v2853 = vpow.pop %v2852
    %v2854 = vmul.f32 %v2847, 1.442695
    %v2855 = vpow.pop %v2854
    %v2856 = vadd.f32 %v2849, 1.0
    %v2857 = vadd.f32 %v2851, 1.0
    %v2858 = vadd.f32 %v2853, 1.0
    %v2859 = vadd.f32 %v2855, 1.0
    %v2860 = vrcp.pop %v2856
    %v2861 = vmul.f32 1.0, %v2860
    %v2862 = vrcp.pop %v2857
    %v2863 = vmul.f32 1.0, %v2862
    %v2864 = vrcp.pop %v2858
    %v2865 = vmul.f32 1.0, %v2864
    %v2866 = vrcp.pop %v2859
    %v2867 = vmul.f32 1.0, %v2866
    %v2868 = vtanh.pop %v2806
    %v2869 = vtanh.pop %v2810
    %v2870 = vtanh.pop %v2814
    %v2871 = vtanh.pop %v2818
    %v2872 = vxor.u32 %v2807, 2147483648
    %v2873 = vxor.u32 %v2811, 2147483648
    %v2874 = vxor.u32 %v2815, 2147483648
    %v2875 = vxor.u32 %v2819, 2147483648
    %v2876 = vmul.f32 %v2872, 1.442695
    %v2877 = vpow.pop %v2876
    %v2878 = vmul.f32 %v2873, 1.442695
    %v2879 = vpow.pop %v2878
    %v2880 = vmul.f32 %v2874, 1.442695
    %v2881 = vpow.pop %v2880
    %v2882 = vmul.f32 %v2875, 1.442695
    %v2883 = vpow.pop %v2882
    %v2884 = vadd.f32 %v2877, 1.0
    %v2885 = vadd.f32 %v2879, 1.0
    %v2886 = vadd.f32 %v2881, 1.0
    %v2887 = vadd.f32 %v2883, 1.0
    %v2888 = vrcp.pop %v2884
    %v2889 = vmul.f32 1.0, %v2888
    %v2890 = vrcp.pop %v2885
    %v2891 = vmul.f32 1.0, %v2890
    %v2892 = vrcp.pop %v2886
    %v2893 = vmul.f32 1.0, %v2892
    %v2894 = vrcp.pop %v2887
    %v2895 = vmul.f32 1.0, %v2894
    %v2896 = vmul.f32 %v2861, 0.0
    %v2897 = vmul.f32 %v2863, 0.0
    %v2898 = vmul.f32 %v2865, 0.0
    %v2899 = vmul.f32 %v2867, 0.0
    %v2900 = vmul.f32 %v2837, %v2868
    %v2901 = vmul.f32 %v2839, %v2869
    %v2902 = vmul.f32 %v2841, %v2870
    %v2903 = vmul.f32 %v2843, %v2871
    %v2904 = vadd.f32 %v2896, %v2900
    %v2905 = vadd.f32 %v2897, %v2901
    %v2906 = vadd.f32 %v2898, %v2902
    %v2907 = vadd.f32 %v2899, %v2903
    %v2908 = vtanh.pop %v2904
    %v2909 = vtanh.pop %v2905
    %v2910 = vtanh.pop %v2906
    %v2911 = vtanh.pop %v2907
    %v2912 = vmul.f32 %v2889, %v2908
    %v2913 = vmul.f32 %v2891, %v2909
    %v2914 = vmul.f32 %v2893, %v2910
    %v2915 = vmul.f32 %v2895, %v2911
    %v2916 = vpack.c.bf16 %v2913, %v2912
    %v2917 = vpack.c.bf16 %v2915, %v2914
    %2918 = vmatprep.subr.bf16.mxu0 %v2635
    %2919 = vmatpush1.bf16.msra.mxu0 %v2634
    %2920 = vmatprep.subr.bf16.mxu0 %v2639
    %2921 = vmatpush1.bf16.msra.mxu0 %v2638
    %2922 = vmatprep.subr.bf16.mxu0 %v2643
    %2923 = vmatpush1.bf16.msra.mxu0 %v2642
    %2924 = vmatprep.subr.bf16.mxu0 %v2647
    %2925 = vmatpush1.bf16.msra.mxu0 %v2646
    %2926 = vmatprep.subr.bf16.mxu0 %v2651
    %2927 = vmatpush1.bf16.msra.mxu0 %v2650
    %2928 = vmatprep.subr.bf16.mxu0 %v2655
    %2929 = vmatpush1.bf16.msra.mxu0 %v2654
    %2930 = vmatprep.subr.bf16.mxu0 %v2659
    %2931 = vmatpush1.bf16.msra.mxu0 %v2658
    %2932 = vmatprep.subr.bf16.mxu0 %v2663
    %2933 = vmatpush1.bf16.msra.mxu0 %v2662
    %2934 = vmatprep.subr.bf16.mxu0 0
    %2935 = vmatpush1.bf16.msra.mxu0 0
    %2936 = vmatprep.subr.bf16.mxu0 0
    %2937 = vmatpush1.bf16.msra.mxu0 0
    %2938 = vmatprep.subr.bf16.mxu0 0
    %2939 = vmatpush1.bf16.msra.mxu0 0
    %2940 = vmatprep.subr.bf16.mxu0 0
    %2941 = vmatpush1.bf16.msra.mxu0 0
    %2942 = vmatprep.subr.bf16.mxu0 0
    %2943 = vmatpush1.bf16.msra.mxu0 0
    %2944 = vmatprep.subr.bf16.mxu0 0
    %2945 = vmatpush1.bf16.msra.mxu0 0
    %2946 = vmatprep.subr.bf16.mxu0 0
    %2947 = vmatpush1.bf16.msra.mxu0 0
    %2948 = vmatprep.subr.bf16.mxu0 0
    %2949 = vmatpush1.bf16.msra.mxu0 0
    %2950 = vmatprep.mubr.bf16.mxu0 0
    %2951 = vmatmul.mubr.bf16.gmra.mrb[0].mxu0 %v2916
    %v2952 = vpop.f32.mrb[0].mxu0
    %v2953 = vadd.f32 0.0, %v2952
    %v2954 = vpop.f32.mrb[0].mxu0
    %v2955 = vadd.f32 0.0, %v2954
    %v2956 = vpop.f32.mrb[0].mxu0
    %v2957 = vadd.f32 0.0, %v2956
    %v2958 = vpop.f32.mrb[0].mxu0
    %v2959 = vadd.f32 0.0, %v2958
    %2960 = vmatprep.mubr.bf16.mxu0 0
    %2961 = vmatmul.mubr.bf16.gmra.mrb[0].mxu0 %v2917
    %v2962 = vpop.f32.mrb[0].mxu0
    %v2963 = vadd.f32 0.0, %v2962
    %v2964 = vpop.f32.mrb[0].mxu0
    %v2965 = vadd.f32 0.0, %v2964
    %v2966 = vpop.f32.mrb[0].mxu0
    %v2967 = vadd.f32 0.0, %v2966
    %v2968 = vpop.f32.mrb[0].mxu0
    %v2969 = vadd.f32 0.0, %v2968
    %2970 = vdwg.mxu0
    %2971 = vmatprep.subr.bf16.mxu0 %v2637
    %2972 = vmatpush1.bf16.msra.mxu0 %v2636
    %2973 = vmatprep.subr.bf16.mxu0 %v2641
    %2974 = vmatpush1.bf16.msra.mxu0 %v2640
    %2975 = vmatprep.subr.bf16.mxu0 %v2645
    %2976 = vmatpush1.bf16.msra.mxu0 %v2644
    %2977 = vmatprep.subr.bf16.mxu0 %v2649
    %2978 = vmatpush1.bf16.msra.mxu0 %v2648
    %2979 = vmatprep.subr.bf16.mxu0 %v2653
    %2980 = vmatpush1.bf16.msra.mxu0 %v2652
    %2981 = vmatprep.subr.bf16.mxu0 %v2657
    %2982 = vmatpush1.bf16.msra.mxu0 %v2656
    %2983 = vmatprep.subr.bf16.mxu0 %v2661
    %2984 = vmatpush1.bf16.msra.mxu0 %v2660
    %2985 = vmatprep.subr.bf16.mxu0 %v2665
    %2986 = vmatpush1.bf16.msra.mxu0 %v2664
    %2987 = vmatprep.subr.bf16.mxu0 0
    %2988 = vmatpush1.bf16.msra.mxu0 0
    %2989 = vmatprep.subr.bf16.mxu0 0
    %2990 = vmatpush1.bf16.msra.mxu0 0
    %2991 = vmatprep.subr.bf16.mxu0 0
    %2992 = vmatpush1.bf16.msra.mxu0 0
    %2993 = vmatprep.subr.bf16.mxu0 0
    %2994 = vmatpush1.bf16.msra.mxu0 0
    %2995 = vmatprep.subr.bf16.mxu0 0
    %2996 = vmatpush1.bf16.msra.mxu0 0
    %2997 = vmatprep.subr.bf16.mxu0 0
    %2998 = vmatpush1.bf16.msra.mxu0 0
    %2999 = vmatprep.subr.bf16.mxu0 0
    %3000 = vmatpush1.bf16.msra.mxu0 0
    %3001 = vmatprep.subr.bf16.mxu0 0
    %3002 = vmatpush1.bf16.msra.mxu0 0
    %3003 = vmatprep.mubr.bf16.mxu0 0
    %3004 = vmatmul.mubr.bf16.gmra.mrb[0].mxu0 %v2916
    %v3005 = vpop.f32.mrb[0].mxu0
    %v3006 = vadd.f32 0.0, %v3005
    %v3007 = vpop.f32.mrb[0].mxu0
    %v3008 = vadd.f32 0.0, %v3007
    %v3009 = vpop.f32.mrb[0].mxu0
    %v3010 = vadd.f32 0.0, %v3009
    %v3011 = vpop.f32.mrb[0].mxu0
    %v3012 = vadd.f32 0.0, %v3011
    %3013 = vmatprep.mubr.bf16.mxu0 0
    %3014 = vmatmul.mubr.bf16.gmra.mrb[0].mxu0 %v2917
    %v3015 = vpop.f32.mrb[0].mxu0
    %v3016 = vadd.f32 0.0, %v3015
    %v3017 = vpop.f32.mrb[0].mxu0
    %v3018 = vadd.f32 0.0, %v3017
    %v3019 = vpop.f32.mrb[0].mxu0
    %v3020 = vadd.f32 0.0, %v3019
    %v3021 = vpop.f32.mrb[0].mxu0
    %v3022 = vadd.f32 0.0, %v3021
    %3023 = vdwg.mxu0
    %v3024 = vadd.f32 %v2415, %v2953
    %v3025 = vadd.f32 %v2417, %v2955
    %v3026 = vadd.f32 %v2488, %v3006
    %v3027 = vadd.f32 %v2490, %v3008
    %v3028 = vadd.f32 %v2419, %v2957
    %v3029 = vadd.f32 %v2421, %v2959
    %v3030 = vadd.f32 %v2492, %v3010
    %v3031 = vadd.f32 %v2494, %v3012
    %v3032 = vadd.f32 %v2425, %v2963
    %v3033 = vadd.f32 %v2427, %v2965
    %v3034 = vadd.f32 %v2498, %v3016
    %v3035 = vadd.f32 %v2500, %v3018
    %v3036 = vadd.f32 %v2429, %v2967
    %v3037 = vadd.f32 %v2431, %v2969
    %v3038 = vadd.f32 %v2502, %v3020
    %v3039 = vadd.f32 %v2504, %v3022
    %v3040 = vxor.u32 %v3024, 2147483648
    %v3041 = vxor.u32 %v3028, 2147483648
    %v3042 = vxor.u32 %v3032, 2147483648
    %v3043 = vxor.u32 %v3036, 2147483648
    %v3044 = vmul.f32 %v3040, 1.442695
    %v3045 = vpow.pop %v3044
    %v3046 = vmul.f32 %v3041, 1.442695
    %v3047 = vpow.pop %v3046
    %v3048 = vmul.f32 %v3042, 1.442695
    %v3049 = vpow.pop %v3048
    %v3050 = vmul.f32 %v3043, 1.442695
    %v3051 = vpow.pop %v3050
    %v3052 = vadd.f32 %v3045, 1.0
    %v3053 = vadd.f32 %v3047, 1.0
    %v3054 = vadd.f32 %v3049, 1.0
    %v3055 = vadd.f32 %v3051, 1.0
    %v3056 = vrcp.pop %v3052
    %v3057 = vmul.f32 1.0, %v3056
    %v3058 = vrcp.pop %v3053
    %v3059 = vmul.f32 1.0, %v3058
    %v3060 = vrcp.pop %v3054
    %v3061 = vmul.f32 1.0, %v3060
    %v3062 = vrcp.pop %v3055
    %v3063 = vmul.f32 1.0, %v3062
    %v3064 = vxor.u32 %v3025, 2147483648
    %v3065 = vxor.u32 %v3029, 2147483648
    %v3066 = vxor.u32 %v3033, 2147483648
    %v3067 = vxor.u32 %v3037, 2147483648
    %v3068 = vmul.f32 %v3064, 1.442695
    %v3069 = vpow.pop %v3068
    %v3070 = vmul.f32 %v3065, 1.442695
    %v3071 = vpow.pop %v3070
    %v3072 = vmul.f32 %v3066, 1.442695
    %v3073 = vpow.pop %v3072
    %v3074 = vmul.f32 %v3067, 1.442695
    %v3075 = vpow.pop %v3074
    %v3076 = vadd.f32 %v3069, 1.0
    %v3077 = vadd.f32 %v3071, 1.0
    %v3078 = vadd.f32 %v3073, 1.0
    %v3079 = vadd.f32 %v3075, 1.0
    %v3080 = vrcp.pop %v3076
    %v3081 = vmul.f32 1.0, %v3080
    %v3082 = vrcp.pop %v3077
    %v3083 = vmul.f32 1.0, %v3082
    %v3084 = vrcp.pop %v3078
    %v3085 = vmul.f32 1.0, %v3084
    %v3086 = vrcp.pop %v3079
    %v3087 = vmul.f32 1.0, %v3086
    %v3088 = vtanh.pop %v3026
    %v3089 = vtanh.pop %v3030
    %v3090 = vtanh.pop %v3034
    %v3091 = vtanh.pop %v3038
    %v3092 = vxor.u32 %v3027, 2147483648
    %v3093 = vxor.u32 %v3031, 2147483648
    %v3094 = vxor.u32 %v3035, 2147483648
    %v3095 = vxor.u32 %v3039, 2147483648
    %v3096 = vmul.f32 %v3092, 1.442695
    %v3097 = vpow.pop %v3096
    %v3098 = vmul.f32 %v3093, 1.442695
    %v3099 = vpow.pop %v3098
    %v3100 = vmul.f32 %v3094, 1.442695
    %v3101 = vpow.pop %v3100
    %v3102 = vmul.f32 %v3095, 1.442695
    %v3103 = vpow.pop %v3102
    %v3104 = vadd.f32 %v3097, 1.0
    %v3105 = vadd.f32 %v3099, 1.0
    %v3106 = vadd.f32 %v3101, 1.0
    %v3107 = vadd.f32 %v3103, 1.0
    %v3108 = vrcp.pop %v3104
    %v3109 = vmul.f32 1.0, %v3108
    %v3110 = vrcp.pop %v3105
    %v3111 = vmul.f32 1.0, %v3110
    %v3112 = vrcp.pop %v3106
    %v3113 = vmul.f32 1.0, %v3112
    %v3114 = vrcp.pop %v3107
    %v3115 = vmul.f32 1.0, %v3114
    %v3116 = vmul.f32 %v3081, %v2904
    %v3117 = vmul.f32 %v3083, %v2905
    %v3118 = vmul.f32 %v3085, %v2906
    %v3119 = vmul.f32 %v3087, %v2907
    %v3120 = vmul.f32 %v3057, %v3088
    %v3121 = vmul.f32 %v3059, %v3089
    %v3122 = vmul.f32 %v3061, %v3090
    %v3123 = vmul.f32 %v3063, %v3091
    %v3124 = vadd.f32 %v3116, %v3120
    %v3125 = vadd.f32 %v3117, %v3121
    %v3126 = vadd.f32 %v3118, %v3122
    %v3127 = vadd.f32 %v3119, %v3123
    %v3128 = vtanh.pop %v3124
    %v3129 = vtanh.pop %v3125
    %v3130 = vtanh.pop %v3126
    %v3131 = vtanh.pop %v3127
    %v3132 = vmul.f32 %v3109, %v3128
    %v3133 = vmul.f32 %v3111, %v3129
    %v3134 = vmul.f32 %v3113, %v3130
    %v3135 = vmul.f32 %v3115, %v3131
    %v3140 = vcombine.high %v2912, %v2912
    %v3142 = vunpack.c.l.s4 1966171168
    %v3143 = vunpack.c.0.s8 %v3142
    %v3144 = vlaneseq
    %v3145 = vshrl.u32 %v3144, 7
    %v3146 = vsub.s32 %v3143, %v3145
    %v3147 = vrot.slane %v2912, %v3146
    %v3149 = vunpack.c.l.s4 1966171168
    %v3150 = vunpack.c.0.s8 %v3149
    %v3151 = vlaneseq
    %v3152 = vshrl.u32 %v3151, 7
    %v3153 = vsub.s32 %v3150, %v3152
    %v3154 = vrot.slane %v3140, %v3153
    %v3155 = vcombine.high %v3147, %v3147
    %v3156 = vcombine.high %v3154, %v3154
    %v3158 = vunpack.c.l.s4 1966171168
    %v3159 = vunpack.c.0.s8 %v3158
    %v3160 = vlaneseq
    %v3161 = vshrl.u32 %v3160, 7
    %v3162 = vsub.s32 %v3159, %v3161
    %v3163 = vrot.slane %v3147, %v3162
    %v3165 = vunpack.c.l.s4 1966171168
    %v3166 = vunpack.c.0.s8 %v3165
    %v3167 = vlaneseq
    %v3168 = vshrl.u32 %v3167, 7
    %v3169 = vsub.s32 %v3166, %v3168
    %v3170 = vrot.slane %v3154, %v3169
    %v3172 = vunpack.c.l.s4 1966171168
    %v3173 = vunpack.c.0.s8 %v3172
    %v3174 = vlaneseq
    %v3175 = vshrl.u32 %v3174, 7
    %v3176 = vsub.s32 %v3173, %v3175
    %v3177 = vrot.slane %v3155, %v3176
    %v3179 = vunpack.c.l.s4 1966171168
    %v3180 = vunpack.c.0.s8 %v3179
    %v3181 = vlaneseq
    %v3182 = vshrl.u32 %v3181, 7
    %v3183 = vsub.s32 %v3180, %v3182
    %v3184 = vrot.slane %v3156, %v3183
    %v3185 = vcombine.high %v3163, %v3163
    %v3186 = vcombine.high %v3170, %v3170
    %v3187 = vcombine.high %v3177, %v3177
    %v3188 = vcombine.high %v3184, %v3184
    %v3189 = vcombine.high %v2913, %v2913
    %v3191 = vunpack.c.l.s4 1966171168
    %v3192 = vunpack.c.0.s8 %v3191
    %v3193 = vlaneseq
    %v3194 = vshrl.u32 %v3193, 7
    %v3195 = vsub.s32 %v3192, %v3194
    %v3196 = vrot.slane %v2913, %v3195
    %v3198 = vunpack.c.l.s4 1966171168
    %v3199 = vunpack.c.0.s8 %v3198
    %v3200 = vlaneseq
    %v3201 = vshrl.u32 %v3200, 7
    %v3202 = vsub.s32 %v3199, %v3201
    %v3203 = vrot.slane %v3189, %v3202
    %v3204 = vcombine.high %v3196, %v3196
    %v3205 = vcombine.high %v3203, %v3203
    %v3207 = vunpack.c.l.s4 1966171168
    %v3208 = vunpack.c.0.s8 %v3207
    %v3209 = vlaneseq
    %v3210 = vshrl.u32 %v3209, 7
    %v3211 = vsub.s32 %v3208, %v3210
    %v3212 = vrot.slane %v3196, %v3211
    %v3214 = vunpack.c.l.s4 1966171168
    %v3215 = vunpack.c.0.s8 %v3214
    %v3216 = vlaneseq
    %v3217 = vshrl.u32 %v3216, 7
    %v3218 = vsub.s32 %v3215, %v3217
    %v3219 = vrot.slane %v3203, %v3218
    %v3221 = vunpack.c.l.s4 1966171168
    %v3222 = vunpack.c.0.s8 %v3221
    %v3223 = vlaneseq
    %v3224 = vshrl.u32 %v3223, 7
    %v3225 = vsub.s32 %v3222, %v3224
    %v3226 = vrot.slane %v3204, %v3225
    %v3228 = vunpack.c.l.s4 1966171168
    %v3229 = vunpack.c.0.s8 %v3228
    %v3230 = vlaneseq
    %v3231 = vshrl.u32 %v3230, 7
    %v3232 = vsub.s32 %v3229, %v3231
    %v3233 = vrot.slane %v3205, %v3232
    %v3234 = vcombine.high %v3212, %v3212
    %v3235 = vcombine.high %v3219, %v3219
    %v3236 = vcombine.high %v3226, %v3226
    %v3237 = vcombine.high %v3233, %v3233
    %v3238 = vcombine.high %v2914, %v2914
    %v3240 = vunpack.c.l.s4 1966171168
    %v3241 = vunpack.c.0.s8 %v3240
    %v3242 = vlaneseq
    %v3243 = vshrl.u32 %v3242, 7
    %v3244 = vsub.s32 %v3241, %v3243
    %v3245 = vrot.slane %v2914, %v3244
    %v3247 = vunpack.c.l.s4 1966171168
    %v3248 = vunpack.c.0.s8 %v3247
    %v3249 = vlaneseq
    %v3250 = vshrl.u32 %v3249, 7
    %v3251 = vsub.s32 %v3248, %v3250
    %v3252 = vrot.slane %v3238, %v3251
    %v3253 = vcombine.high %v3245, %v3245
    %v3254 = vcombine.high %v3252, %v3252
    %v3256 = vunpack.c.l.s4 1966171168
    %v3257 = vunpack.c.0.s8 %v3256
    %v3258 = vlaneseq
    %v3259 = vshrl.u32 %v3258, 7
    %v3260 = vsub.s32 %v3257, %v3259
    %v3261 = vrot.slane %v3245, %v3260
    %v3263 = vunpack.c.l.s4 1966171168
    %v3264 = vunpack.c.0.s8 %v3263
    %v3265 = vlaneseq
    %v3266 = vshrl.u32 %v3265, 7
    %v3267 = vsub.s32 %v3264, %v3266
    %v3268 = vrot.slane %v3252, %v3267
    %v3270 = vunpack.c.l.s4 1966171168
    %v3271 = vunpack.c.0.s8 %v3270
    %v3272 = vlaneseq
    %v3273 = vshrl.u32 %v3272, 7
    %v3274 = vsub.s32 %v3271, %v3273
    %v3275 = vrot.slane %v3253, %v3274
    %v3277 = vunpack.c.l.s4 1966171168
    %v3278 = vunpack.c.0.s8 %v3277
    %v3279 = vlaneseq
    %v3280 = vshrl.u32 %v3279, 7
    %v3281 = vsub.s32 %v3278, %v3280
    %v3282 = vrot.slane %v3254, %v3281
    %v3283 = vcombine.high %v3261, %v3261
    %v3284 = vcombine.high %v3268, %v3268
    %v3285 = vcombine.high %v3275, %v3275
    %v3286 = vcombine.high %v3282, %v3282
    %v3287 = vcombine.high %v2915, %v2915
    %v3289 = vunpack.c.l.s4 1966171168
    %v3290 = vunpack.c.0.s8 %v3289
    %v3291 = vlaneseq
    %v3292 = vshrl.u32 %v3291, 7
    %v3293 = vsub.s32 %v3290, %v3292
    %v3294 = vrot.slane %v2915, %v3293
    %v3296 = vunpack.c.l.s4 1966171168
    %v3297 = vunpack.c.0.s8 %v3296
    %v3298 = vlaneseq
    %v3299 = vshrl.u32 %v3298, 7
    %v3300 = vsub.s32 %v3297, %v3299
    %v3301 = vrot.slane %v3287, %v3300
    %v3302 = vcombine.high %v3294, %v3294
    %v3303 = vcombine.high %v3301, %v3301
    %v3305 = vunpack.c.l.s4 1966171168
    %v3306 = vunpack.c.0.s8 %v3305
    %v3307 = vlaneseq
    %v3308 = vshrl.u32 %v3307, 7
    %v3309 = vsub.s32 %v3306, %v3308
    %v3310 = vrot.slane %v3294, %v3309
    %v3312 = vunpack.c.l.s4 1966171168
    %v3313 = vunpack.c.0.s8 %v3312
    %v3314 = vlaneseq
    %v3315 = vshrl.u32 %v3314, 7
    %v3316 = vsub.s32 %v3313, %v3315
    %v3317 = vrot.slane %v3301, %v3316
    %v3319 = vunpack.c.l.s4 1966171168
    %v3320 = vunpack.c.0.s8 %v3319
    %v3321 = vlaneseq
    %v3322 = vshrl.u32 %v3321, 7
    %v3323 = vsub.s32 %v3320, %v3322
    %v3324 = vrot.slane %v3302, %v3323
    %v3326 = vunpack.c.l.s4 1966171168
    %v3327 = vunpack.c.0.s8 %v3326
    %v3328 = vlaneseq
    %v3329 = vshrl.u32 %v3328, 7
    %v3330 = vsub.s32 %v3327, %v3329
    %v3331 = vrot.slane %v3303, %v3330
    %v3332 = vcombine.high %v3310, %v3310
    %v3333 = vcombine.high %v3317, %v3317
    %v3334 = vcombine.high %v3324, %v3324
    %v3335 = vcombine.high %v3331, %v3331
    %v3372 = vcombine.high %v3132, %v3132
    %v3374 = vunpack.c.l.s4 1966171168
    %v3375 = vunpack.c.0.s8 %v3374
    %v3376 = vlaneseq
    %v3377 = vshrl.u32 %v3376, 7
    %v3378 = vsub.s32 %v3375, %v3377
    %v3379 = vrot.slane %v3132, %v3378
    %v3381 = vunpack.c.l.s4 1966171168
    %v3382 = vunpack.c.0.s8 %v3381
    %v3383 = vlaneseq
    %v3384 = vshrl.u32 %v3383, 7
    %v3385 = vsub.s32 %v3382, %v3384
    %v3386 = vrot.slane %v3372, %v3385
    %v3387 = vcombine.high %v3379, %v3379
    %v3388 = vcombine.high %v3386, %v3386
    %v3390 = vunpack.c.l.s4 1966171168
    %v3391 = vunpack.c.0.s8 %v3390
    %v3392 = vlaneseq
    %v3393 = vshrl.u32 %v3392, 7
    %v3394 = vsub.s32 %v3391, %v3393
    %v3395 = vrot.slane %v3379, %v3394
    %v3397 = vunpack.c.l.s4 1966171168
    %v3398 = vunpack.c.0.s8 %v3397
    %v3399 = vlaneseq
    %v3400 = vshrl.u32 %v3399, 7
    %v3401 = vsub.s32 %v3398, %v3400
    %v3402 = vrot.slane %v3386, %v3401
    %v3404 = vunpack.c.l.s4 1966171168
    %v3405 = vunpack.c.0.s8 %v3404
    %v3406 = vlaneseq
    %v3407 = vshrl.u32 %v3406, 7
    %v3408 = vsub.s32 %v3405, %v3407
    %v3409 = vrot.slane %v3387, %v3408
    %v3411 = vunpack.c.l.s4 1966171168
    %v3412 = vunpack.c.0.s8 %v3411
    %v3413 = vlaneseq
    %v3414 = vshrl.u32 %v3413, 7
    %v3415 = vsub.s32 %v3412, %v3414
    %v3416 = vrot.slane %v3388, %v3415
    %v3417 = vcombine.high %v3395, %v3395
    %v3418 = vcombine.high %v3402, %v3402
    %v3419 = vcombine.high %v3409, %v3409
    %v3420 = vcombine.high %v3416, %v3416
    %v3421 = vcombine.high %v3133, %v3133
    %v3423 = vunpack.c.l.s4 1966171168
    %v3424 = vunpack.c.0.s8 %v3423
    %v3425 = vlaneseq
    %v3426 = vshrl.u32 %v3425, 7
    %v3427 = vsub.s32 %v3424, %v3426
    %v3428 = vrot.slane %v3133, %v3427
    %v3430 = vunpack.c.l.s4 1966171168
    %v3431 = vunpack.c.0.s8 %v3430
    %v3432 = vlaneseq
    %v3433 = vshrl.u32 %v3432, 7
    %v3434 = vsub.s32 %v3431, %v3433
    %v3435 = vrot.slane %v3421, %v3434
    %v3436 = vcombine.high %v3428, %v3428
    %v3437 = vcombine.high %v3435, %v3435
    %v3439 = vunpack.c.l.s4 1966171168
    %v3440 = vunpack.c.0.s8 %v3439
    %v3441 = vlaneseq
    %v3442 = vshrl.u32 %v3441, 7
    %v3443 = vsub.s32 %v3440, %v3442
    %v3444 = vrot.slane %v3428, %v3443
    %v3446 = vunpack.c.l.s4 1966171168
    %v3447 = vunpack.c.0.s8 %v3446
    %v3448 = vlaneseq
    %v3449 = vshrl.u32 %v3448, 7
    %v3450 = vsub.s32 %v3447, %v3449
    %v3451 = vrot.slane %v3435, %v3450
    %v3453 = vunpack.c.l.s4 1966171168
    %v3454 = vunpack.c.0.s8 %v3453
    %v3455 = vlaneseq
    %v3456 = vshrl.u32 %v3455, 7
    %v3457 = vsub.s32 %v3454, %v3456
    %v3458 = vrot.slane %v3436, %v3457
    %v3460 = vunpack.c.l.s4 1966171168
    %v3461 = vunpack.c.0.s8 %v3460
    %v3462 = vlaneseq
    %v3463 = vshrl.u32 %v3462, 7
    %v3464 = vsub.s32 %v3461, %v3463
    %v3465 = vrot.slane %v3437, %v3464
    %v3466 = vcombine.high %v3444, %v3444
    %v3467 = vcombine.high %v3451, %v3451
    %v3468 = vcombine.high %v3458, %v3458
    %v3469 = vcombine.high %v3465, %v3465
    %v3470 = vcombine.high %v3134, %v3134
    %v3472 = vunpack.c.l.s4 1966171168
    %v3473 = vunpack.c.0.s8 %v3472
    %v3474 = vlaneseq
    %v3475 = vshrl.u32 %v3474, 7
    %v3476 = vsub.s32 %v3473, %v3475
    %v3477 = vrot.slane %v3134, %v3476
    %v3479 = vunpack.c.l.s4 1966171168
    %v3480 = vunpack.c.0.s8 %v3479
    %v3481 = vlaneseq
    %v3482 = vshrl.u32 %v3481, 7
    %v3483 = vsub.s32 %v3480, %v3482
    %v3484 = vrot.slane %v3470, %v3483
    %v3485 = vcombine.high %v3477, %v3477
    %v3486 = vcombine.high %v3484, %v3484
    %v3488 = vunpack.c.l.s4 1966171168
    %v3489 = vunpack.c.0.s8 %v3488
    %v3490 = vlaneseq
    %v3491 = vshrl.u32 %v3490, 7
    %v3492 = vsub.s32 %v3489, %v3491
    %v3493 = vrot.slane %v3477, %v3492
    %v3495 = vunpack.c.l.s4 1966171168
    %v3496 = vunpack.c.0.s8 %v3495
    %v3497 = vlaneseq
    %v3498 = vshrl.u32 %v3497, 7
    %v3499 = vsub.s32 %v3496, %v3498
    %v3500 = vrot.slane %v3484, %v3499
    %v3502 = vunpack.c.l.s4 1966171168
    %v3503 = vunpack.c.0.s8 %v3502
    %v3504 = vlaneseq
    %v3505 = vshrl.u32 %v3504, 7
    %v3506 = vsub.s32 %v3503, %v3505
    %v3507 = vrot.slane %v3485, %v3506
    %v3509 = vunpack.c.l.s4 1966171168
    %v3510 = vunpack.c.0.s8 %v3509
    %v3511 = vlaneseq
    %v3512 = vshrl.u32 %v3511, 7
    %v3513 = vsub.s32 %v3510, %v3512
    %v3514 = vrot.slane %v3486, %v3513
    %v3515 = vcombine.high %v3493, %v3493
    %v3516 = vcombine.high %v3500, %v3500
    %v3517 = vcombine.high %v3507, %v3507
    %v3518 = vcombine.high %v3514, %v3514
    %v3519 = vcombine.high %v3135, %v3135
    %v3521 = vunpack.c.l.s4 1966171168
    %v3522 = vunpack.c.0.s8 %v3521
    %v3523 = vlaneseq
    %v3524 = vshrl.u32 %v3523, 7
    %v3525 = vsub.s32 %v3522, %v3524
    %v3526 = vrot.slane %v3135, %v3525
    %v3528 = vunpack.c.l.s4 1966171168
    %v3529 = vunpack.c.0.s8 %v3528
    %v3530 = vlaneseq
    %v3531 = vshrl.u32 %v3530, 7
    %v3532 = vsub.s32 %v3529, %v3531
    %v3533 = vrot.slane %v3519, %v3532
    %v3534 = vcombine.high %v3526, %v3526
    %v3535 = vcombine.high %v3533, %v3533
    %v3537 = vunpack.c.l.s4 1966171168
    %v3538 = vunpack.c.0.s8 %v3537
    %v3539 = vlaneseq
    %v3540 = vshrl.u32 %v3539, 7
    %v3541 = vsub.s32 %v3538, %v3540
    %v3542 = vrot.slane %v3526, %v3541
    %v3544 = vunpack.c.l.s4 1966171168
    %v3545 = vunpack.c.0.s8 %v3544
    %v3546 = vlaneseq
    %v3547 = vshrl.u32 %v3546, 7
    %v3548 = vsub.s32 %v3545, %v3547
    %v3549 = vrot.slane %v3533, %v3548
    %v3551 = vunpack.c.l.s4 1966171168
    %v3552 = vunpack.c.0.s8 %v3551
    %v3553 = vlaneseq
    %v3554 = vshrl.u32 %v3553, 7
    %v3555 = vsub.s32 %v3552, %v3554
    %v3556 = vrot.slane %v3534, %v3555
    %v3558 = vunpack.c.l.s4 1966171168
    %v3559 = vunpack.c.0.s8 %v3558
    %v3560 = vlaneseq
    %v3561 = vshrl.u32 %v3560, 7
    %v3562 = vsub.s32 %v3559, %v3561
    %v3563 = vrot.slane %v3535, %v3562
    %v3564 = vcombine.high %v3542, %v3542
    %v3565 = vcombine.high %v3549, %v3549
    %v3566 = vcombine.high %v3556, %v3556
    %v3567 = vcombine.high %v3563, %v3563
    %v3568 = vlaneseq
    %v3569 = vshrl.u32 %v3568, 7
    %v3570 = vsub.s32 0, %v3569
    %v3571 = vrot.slane %v3395, %v3570
    %v3572 = vlaneseq
    %v3573 = vshrl.u32 %v3572, 7
    %v3574 = vsub.s32 0, %v3573
    %v3575 = vrot.slane %v3409, %v3574
    %v3576 = vlaneseq
    %v3577 = vshrl.u32 %v3576, 7
    %v3578 = vsub.s32 0, %v3577
    %v3579 = vrot.slane %v3417, %v3578
    %v3580 = vlaneseq
    %v3581 = vshrl.u32 %v3580, 7
    %v3582 = vsub.s32 0, %v3581
    %v3583 = vrot.slane %v3419, %v3582
    %v3584 = vlaneseq
    %v3585 = vshrl.u32 %v3584, 7
    %v3586 = vsub.s32 0, %v3585
    %v3587 = vrot.slane %v3402, %v3586
    %v3588 = vlaneseq
    %v3589 = vshrl.u32 %v3588, 7
    %v3590 = vsub.s32 0, %v3589
    %v3591 = vrot.slane %v3416, %v3590
    %v3592 = vlaneseq
    %v3593 = vshrl.u32 %v3592, 7
    %v3594 = vsub.s32 0, %v3593
    %v3595 = vrot.slane %v3418, %v3594
    %v3596 = vlaneseq
    %v3597 = vshrl.u32 %v3596, 7
    %v3598 = vsub.s32 0, %v3597
    %v3599 = vrot.slane %v3420, %v3598
    %v3600 = vlaneseq
    %v3601 = vshrl.u32 %v3600, 7
    %v3602 = vsub.s32 0, %v3601
    %v3603 = vrot.slane %v3444, %v3602
    %v3604 = vlaneseq
    %v3605 = vshrl.u32 %v3604, 7
    %v3606 = vsub.s32 0, %v3605
    %v3607 = vrot.slane %v3458, %v3606
    %v3608 = vlaneseq
    %v3609 = vshrl.u32 %v3608, 7
    %v3610 = vsub.s32 0, %v3609
    %v3611 = vrot.slane %v3466, %v3610
    %v3612 = vlaneseq
    %v3613 = vshrl.u32 %v3612, 7
    %v3614 = vsub.s32 0, %v3613
    %v3615 = vrot.slane %v3468, %v3614
    %v3616 = vlaneseq
    %v3617 = vshrl.u32 %v3616, 7
    %v3618 = vsub.s32 0, %v3617
    %v3619 = vrot.slane %v3451, %v3618
    %v3620 = vlaneseq
    %v3621 = vshrl.u32 %v3620, 7
    %v3622 = vsub.s32 0, %v3621
    %v3623 = vrot.slane %v3465, %v3622
    %v3624 = vlaneseq
    %v3625 = vshrl.u32 %v3624, 7
    %v3626 = vsub.s32 0, %v3625
    %v3627 = vrot.slane %v3467, %v3626
    %v3628 = vlaneseq
    %v3629 = vshrl.u32 %v3628, 7
    %v3630 = vsub.s32 0, %v3629
    %v3631 = vrot.slane %v3469, %v3630
    %v3632 = vlaneseq
    %v3633 = vshrl.u32 %v3632, 7
    %v3634 = vsub.s32 0, %v3633
    %v3635 = vrot.slane %v3493, %v3634
    %v3636 = vlaneseq
    %v3637 = vshrl.u32 %v3636, 7
    %v3638 = vsub.s32 0, %v3637
    %v3639 = vrot.slane %v3507, %v3638
    %v3640 = vlaneseq
    %v3641 = vshrl.u32 %v3640, 7
    %v3642 = vsub.s32 0, %v3641
    %v3643 = vrot.slane %v3515, %v3642
    %v3644 = vlaneseq
    %v3645 = vshrl.u32 %v3644, 7
    %v3646 = vsub.s32 0, %v3645
    %v3647 = vrot.slane %v3517, %v3646
    %v3648 = vlaneseq
    %v3649 = vshrl.u32 %v3648, 7
    %v3650 = vsub.s32 0, %v3649
    %v3651 = vrot.slane %v3500, %v3650
    %v3652 = vlaneseq
    %v3653 = vshrl.u32 %v3652, 7
    %v3654 = vsub.s32 0, %v3653
    %v3655 = vrot.slane %v3514, %v3654
    %v3656 = vlaneseq
    %v3657 = vshrl.u32 %v3656, 7
    %v3658 = vsub.s32 0, %v3657
    %v3659 = vrot.slane %v3516, %v3658
    %v3660 = vlaneseq
    %v3661 = vshrl.u32 %v3660, 7
    %v3662 = vsub.s32 0, %v3661
    %v3663 = vrot.slane %v3518, %v3662
    %v3664 = vlaneseq
    %v3665 = vshrl.u32 %v3664, 7
    %v3666 = vsub.s32 0, %v3665
    %v3667 = vrot.slane %v3542, %v3666
    %v3668 = vlaneseq
    %v3669 = vshrl.u32 %v3668, 7
    %v3670 = vsub.s32 0, %v3669
    %v3671 = vrot.slane %v3556, %v3670
    %v3672 = vlaneseq
    %v3673 = vshrl.u32 %v3672, 7
    %v3674 = vsub.s32 0, %v3673
    %v3675 = vrot.slane %v3564, %v3674
    %v3676 = vlaneseq
    %v3677 = vshrl.u32 %v3676, 7
    %v3678 = vsub.s32 0, %v3677
    %v3679 = vrot.slane %v3566, %v3678
    %v3680 = vlaneseq
    %v3681 = vshrl.u32 %v3680, 7
    %v3682 = vsub.s32 0, %v3681
    %v3683 = vrot.slane %v3549, %v3682
    %v3684 = vlaneseq
    %v3685 = vshrl.u32 %v3684, 7
    %v3686 = vsub.s32 0, %v3685
    %v3687 = vrot.slane %v3563, %v3686
    %v3688 = vlaneseq
    %v3689 = vshrl.u32 %v3688, 7
    %v3690 = vsub.s32 0, %v3689
    %v3691 = vrot.slane %v3565, %v3690
    %v3692 = vlaneseq
    %v3693 = vshrl.u32 %v3692, 7
    %v3694 = vsub.s32 0, %v3693
    %v3695 = vrot.slane %v3567, %v3694
    %v3728 = vsel %vm992, %v3163, %v3571
    %v3729 = vsel %vm992, %v3177, %v3575
    %v3730 = vsel %vm992, %v3185, %v3579
    %v3731 = vsel %vm992, %v3187, %v3583
    %v3732 = vsel %vm992, %v3170, %v3587
    %v3733 = vsel %vm992, %v3184, %v3591
    %v3734 = vsel %vm992, %v3186, %v3595
    %v3735 = vsel %vm992, %v3188, %v3599
    %v3736 = vsel %vm992, %v3212, %v3603
    %v3737 = vsel %vm992, %v3226, %v3607
    %v3738 = vsel %vm992, %v3234, %v3611
    %v3739 = vsel %vm992, %v3236, %v3615
    %v3740 = vsel %vm992, %v3219, %v3619
    %v3741 = vsel %vm992, %v3233, %v3623
    %v3742 = vsel %vm992, %v3235, %v3627
    %v3743 = vsel %vm992, %v3237, %v3631
    %v3744 = vsel %vm992, %v3261, %v3635
    %v3745 = vsel %vm992, %v3275, %v3639
    %v3746 = vsel %vm992, %v3283, %v3643
    %v3747 = vsel %vm992, %v3285, %v3647
    %v3748 = vsel %vm992, %v3268, %v3651
    %v3749 = vsel %vm992, %v3282, %v3655
    %v3750 = vsel %vm992, %v3284, %v3659
    %v3751 = vsel %vm992, %v3286, %v3663
    %v3752 = vsel %vm992, %v3310, %v3667
    %v3753 = vsel %vm992, %v3324, %v3671
    %v3754 = vsel %vm992, %v3332, %v3675
    %v3755 = vsel %vm992, %v3334, %v3679
    %v3756 = vsel %vm992, %v3317, %v3683
    %v3757 = vsel %vm992, %v3331, %v3687
    %v3758 = vsel %vm992, %v3333, %v3691
    %v3759 = vsel %vm992, %v3335, %v3695
    %v3760 = vpack.c.bf16 %v3728, %v3728
    %v3761 = vpack.c.bf16 %v3729, %v3729
    %v3762 = vpack.c.bf16 %v3730, %v3730
    %v3763 = vpack.c.bf16 %v3731, %v3731
    %v3764 = vpack.c.bf16 %v3732, %v3732
    %v3765 = vpack.c.bf16 %v3733, %v3733
    %v3766 = vpack.c.bf16 %v3734, %v3734
    %v3767 = vpack.c.bf16 %v3735, %v3735
    %v3768 = vpack.c.bf16 %v3736, %v3736
    %v3769 = vpack.c.bf16 %v3737, %v3737
    %v3770 = vpack.c.bf16 %v3738, %v3738
    %v3771 = vpack.c.bf16 %v3739, %v3739
    %v3772 = vpack.c.bf16 %v3740, %v3740
    %v3773 = vpack.c.bf16 %v3741, %v3741
    %v3774 = vpack.c.bf16 %v3742, %v3742
    %v3775 = vpack.c.bf16 %v3743, %v3743
    %v3776 = vpack.c.bf16 %v3744, %v3744
    %v3777 = vpack.c.bf16 %v3745, %v3745
    %v3778 = vpack.c.bf16 %v3746, %v3746
    %v3779 = vpack.c.bf16 %v3747, %v3747
    %v3780 = vpack.c.bf16 %v3748, %v3748
    %v3781 = vpack.c.bf16 %v3749, %v3749
    %v3782 = vpack.c.bf16 %v3750, %v3750
    %v3783 = vpack.c.bf16 %v3751, %v3751
    %v3784 = vpack.c.bf16 %v3752, %v3752
    %v3785 = vpack.c.bf16 %v3753, %v3753
    %v3786 = vpack.c.bf16 %v3754, %v3754
    %v3787 = vpack.c.bf16 %v3755, %v3755
    %v3788 = vpack.c.bf16 %v3756, %v3756
    %v3789 = vpack.c.bf16 %v3757, %v3757
    %v3790 = vpack.c.bf16 %v3758, %v3758
    %v3791 = vpack.c.bf16 %v3759, %v3759
    %v3792 = vld [vmem:[%s10] sm:$0xf]
    %v3793 = vld [vmem:[%s10 + $0x4] sm:$0xf]
    %v3794 = vld [vmem:[%s10 + $0x8] sm:$0xf]
    %v3795 = vld [vmem:[%s10 + $0xc] sm:$0xf]
    %v3796 = vld [vmem:[%s10 + $0x10] sm:$0xf]
    %v3797 = vld [vmem:[%s10 + $0x14] sm:$0xf]
    %v3798 = vld [vmem:[%s10 + $0x18] sm:$0xf]
    %v3799 = vld [vmem:[%s10 + $0x1c] sm:$0xf]
    %v3800 = vld [vmem:[%s10 + $0x20] sm:$0xf]
    %v3801 = vld [vmem:[%s10 + $0x24] sm:$0xf]
    %v3802 = vld [vmem:[%s10 + $0x28] sm:$0xf]
    %v3803 = vld [vmem:[%s10 + $0x2c] sm:$0xf]
    %v3804 = vld [vmem:[%s10 + $0x30] sm:$0xf]
    %v3805 = vld [vmem:[%s10 + $0x34] sm:$0xf]
    %v3806 = vld [vmem:[%s10 + $0x38] sm:$0xf]
    %v3807 = vld [vmem:[%s10 + $0x3c] sm:$0xf]
    %v3808 = vld [vmem:[%s10 + $0x40] sm:$0xf]
    %v3809 = vld [vmem:[%s10 + $0x44] sm:$0xf]
    %v3810 = vld [vmem:[%s10 + $0x48] sm:$0xf]
    %v3811 = vld [vmem:[%s10 + $0x4c] sm:$0xf]
    %v3812 = vld [vmem:[%s10 + $0x50] sm:$0xf]
    %v3813 = vld [vmem:[%s10 + $0x54] sm:$0xf]
    %v3814 = vld [vmem:[%s10 + $0x58] sm:$0xf]
    %v3815 = vld [vmem:[%s10 + $0x5c] sm:$0xf]
    %v3816 = vld [vmem:[%s10 + $0x60] sm:$0xf]
    %v3817 = vld [vmem:[%s10 + $0x64] sm:$0xf]
    %v3818 = vld [vmem:[%s10 + $0x68] sm:$0xf]
    %v3819 = vld [vmem:[%s10 + $0x6c] sm:$0xf]
    %v3820 = vld [vmem:[%s10 + $0x70] sm:$0xf]
    %v3821 = vld [vmem:[%s10 + $0x74] sm:$0xf]
    %v3822 = vld [vmem:[%s10 + $0x78] sm:$0xf]
    %v3823 = vld [vmem:[%s10 + $0x7c] sm:$0xf]
    %v3824 = vld [vmem:[%s10 + $0x80] sm:$0xf]
    %v3825 = vld [vmem:[%s10 + $0x84] sm:$0xf]
    %v3826 = vld [vmem:[%s10 + $0x88] sm:$0xf]
    %v3827 = vld [vmem:[%s10 + $0x8c] sm:$0xf]
    %v3828 = vld [vmem:[%s10 + $0x90] sm:$0xf]
    %v3829 = vld [vmem:[%s10 + $0x94] sm:$0xf]
    %v3830 = vld [vmem:[%s10 + $0x98] sm:$0xf]
    %v3831 = vld [vmem:[%s10 + $0x9c] sm:$0xf]
    %v3832 = vld [vmem:[%s10 + $0xa0] sm:$0xf]
    %v3833 = vld [vmem:[%s10 + $0xa4] sm:$0xf]
    %v3834 = vld [vmem:[%s10 + $0xa8] sm:$0xf]
    %v3835 = vld [vmem:[%s10 + $0xac] sm:$0xf]
    %v3836 = vld [vmem:[%s10 + $0xb0] sm:$0xf]
    %v3837 = vld [vmem:[%s10 + $0xb4] sm:$0xf]
    %v3838 = vld [vmem:[%s10 + $0xb8] sm:$0xf]
    %v3839 = vld [vmem:[%s10 + $0xbc] sm:$0xf]
    %v3840 = vld [vmem:[%s10 + $0xc0] sm:$0xf]
    %v3841 = vld [vmem:[%s10 + $0xc4] sm:$0xf]
    %v3842 = vld [vmem:[%s10 + $0xc8] sm:$0xf]
    %v3843 = vld [vmem:[%s10 + $0xcc] sm:$0xf]
    %v3844 = vld [vmem:[%s10 + $0xd0] sm:$0xf]
    %v3845 = vld [vmem:[%s10 + $0xd4] sm:$0xf]
    %v3846 = vld [vmem:[%s10 + $0xd8] sm:$0xf]
    %v3847 = vld [vmem:[%s10 + $0xdc] sm:$0xf]
    %v3848 = vld [vmem:[%s10 + $0xe0] sm:$0xf]
    %v3849 = vld [vmem:[%s10 + $0xe4] sm:$0xf]
    %v3850 = vld [vmem:[%s10 + $0xe8] sm:$0xf]
    %v3851 = vld [vmem:[%s10 + $0xec] sm:$0xf]
    %v3852 = vld [vmem:[%s10 + $0xf0] sm:$0xf]
    %v3853 = vld [vmem:[%s10 + $0xf4] sm:$0xf]
    %v3854 = vld [vmem:[%s10 + $0xf8] sm:$0xf]
    %v3855 = vld [vmem:[%s10 + $0xfc] sm:$0xf]
    %v3856 = vld [vmem:[%s10 + $0x100] sm:$0xf]
    %v3857 = vld [vmem:[%s10 + $0x104] sm:$0xf]
    %v3858 = vld [vmem:[%s10 + $0x108] sm:$0xf]
    %v3859 = vld [vmem:[%s10 + $0x10c] sm:$0xf]
    %v3860 = vld [vmem:[%s10 + $0x110] sm:$0xf]
    %v3861 = vld [vmem:[%s10 + $0x114] sm:$0xf]
    %v3862 = vld [vmem:[%s10 + $0x118] sm:$0xf]
    %v3863 = vld [vmem:[%s10 + $0x11c] sm:$0xf]
    %v3864 = vld [vmem:[%s10 + $0x120] sm:$0xf]
    %v3865 = vld [vmem:[%s10 + $0x124] sm:$0xf]
    %v3866 = vld [vmem:[%s10 + $0x128] sm:$0xf]
    %v3867 = vld [vmem:[%s10 + $0x12c] sm:$0xf]
    %v3868 = vld [vmem:[%s10 + $0x130] sm:$0xf]
    %v3869 = vld [vmem:[%s10 + $0x134] sm:$0xf]
    %v3870 = vld [vmem:[%s10 + $0x138] sm:$0xf]
    %v3871 = vld [vmem:[%s10 + $0x13c] sm:$0xf]
    %v3872 = vld [vmem:[%s10 + $0x140] sm:$0xf]
    %v3873 = vld [vmem:[%s10 + $0x144] sm:$0xf]
    %v3874 = vld [vmem:[%s10 + $0x148] sm:$0xf]
    %v3875 = vld [vmem:[%s10 + $0x14c] sm:$0xf]
    %v3876 = vld [vmem:[%s10 + $0x150] sm:$0xf]
    %v3877 = vld [vmem:[%s10 + $0x154] sm:$0xf]
    %v3878 = vld [vmem:[%s10 + $0x158] sm:$0xf]
    %v3879 = vld [vmem:[%s10 + $0x15c] sm:$0xf]
    %v3880 = vld [vmem:[%s10 + $0x160] sm:$0xf]
    %v3881 = vld [vmem:[%s10 + $0x164] sm:$0xf]
    %v3882 = vld [vmem:[%s10 + $0x168] sm:$0xf]
    %v3883 = vld [vmem:[%s10 + $0x16c] sm:$0xf]
    %v3884 = vld [vmem:[%s10 + $0x170] sm:$0xf]
    %v3885 = vld [vmem:[%s10 + $0x174] sm:$0xf]
    %v3886 = vld [vmem:[%s10 + $0x178] sm:$0xf]
    %v3887 = vld [vmem:[%s10 + $0x17c] sm:$0xf]
    %v3888 = vld [vmem:[%s10 + $0x180] sm:$0xf]
    %v3889 = vld [vmem:[%s10 + $0x184] sm:$0xf]
    %v3890 = vld [vmem:[%s10 + $0x188] sm:$0xf]
    %v3891 = vld [vmem:[%s10 + $0x18c] sm:$0xf]
    %v3892 = vld [vmem:[%s10 + $0x190] sm:$0xf]
    %v3893 = vld [vmem:[%s10 + $0x194] sm:$0xf]
    %v3894 = vld [vmem:[%s10 + $0x198] sm:$0xf]
    %v3895 = vld [vmem:[%s10 + $0x19c] sm:$0xf]
    %v3896 = vld [vmem:[%s10 + $0x1a0] sm:$0xf]
    %v3897 = vld [vmem:[%s10 + $0x1a4] sm:$0xf]
    %v3898 = vld [vmem:[%s10 + $0x1a8] sm:$0xf]
    %v3899 = vld [vmem:[%s10 + $0x1ac] sm:$0xf]
    %v3900 = vld [vmem:[%s10 + $0x1b0] sm:$0xf]
    %v3901 = vld [vmem:[%s10 + $0x1b4] sm:$0xf]
    %v3902 = vld [vmem:[%s10 + $0x1b8] sm:$0xf]
    %v3903 = vld [vmem:[%s10 + $0x1bc] sm:$0xf]
    %v3904 = vld [vmem:[%s10 + $0x1c0] sm:$0xf]
    %v3905 = vld [vmem:[%s10 + $0x1c4] sm:$0xf]
    %v3906 = vld [vmem:[%s10 + $0x1c8] sm:$0xf]
    %v3907 = vld [vmem:[%s10 + $0x1cc] sm:$0xf]
    %v3908 = vld [vmem:[%s10 + $0x1d0] sm:$0xf]
    %v3909 = vld [vmem:[%s10 + $0x1d4] sm:$0xf]
    %v3910 = vld [vmem:[%s10 + $0x1d8] sm:$0xf]
    %v3911 = vld [vmem:[%s10 + $0x1dc] sm:$0xf]
    %v3912 = vld [vmem:[%s10 + $0x1e0] sm:$0xf]
    %v3913 = vld [vmem:[%s10 + $0x1e4] sm:$0xf]
    %v3914 = vld [vmem:[%s10 + $0x1e8] sm:$0xf]
    %v3915 = vld [vmem:[%s10 + $0x1ec] sm:$0xf]
    %v3916 = vld [vmem:[%s10 + $0x1f0] sm:$0xf]
    %v3917 = vld [vmem:[%s10 + $0x1f4] sm:$0xf]
    %v3918 = vld [vmem:[%s10 + $0x1f8] sm:$0xf]
    %v3919 = vld [vmem:[%s10 + $0x1fc] sm:$0xf]
    %v3920 = vld [vmem:[%s10 + $0x200] sm:$0xf]
    %v3921 = vld [vmem:[%s10 + $0x204] sm:$0xf]
    %v3922 = vld [vmem:[%s10 + $0x208] sm:$0xf]
    %v3923 = vld [vmem:[%s10 + $0x20c] sm:$0xf]
    %v3924 = vld [vmem:[%s10 + $0x210] sm:$0xf]
    %v3925 = vld [vmem:[%s10 + $0x214] sm:$0xf]
    %v3926 = vld [vmem:[%s10 + $0x218] sm:$0xf]
    %v3927 = vld [vmem:[%s10 + $0x21c] sm:$0xf]
    %v3928 = vld [vmem:[%s10 + $0x220] sm:$0xf]
    %v3929 = vld [vmem:[%s10 + $0x224] sm:$0xf]
    %v3930 = vld [vmem:[%s10 + $0x228] sm:$0xf]
    %v3931 = vld [vmem:[%s10 + $0x22c] sm:$0xf]
    %v3932 = vld [vmem:[%s10 + $0x230] sm:$0xf]
    %v3933 = vld [vmem:[%s10 + $0x234] sm:$0xf]
    %v3934 = vld [vmem:[%s10 + $0x238] sm:$0xf]
    %v3935 = vld [vmem:[%s10 + $0x23c] sm:$0xf]
    %v3936 = vld [vmem:[%s10 + $0x240] sm:$0xf]
    %v3937 = vld [vmem:[%s10 + $0x244] sm:$0xf]
    %v3938 = vld [vmem:[%s10 + $0x248] sm:$0xf]
    %v3939 = vld [vmem:[%s10 + $0x24c] sm:$0xf]
    %v3940 = vld [vmem:[%s10 + $0x250] sm:$0xf]
    %v3941 = vld [vmem:[%s10 + $0x254] sm:$0xf]
    %v3942 = vld [vmem:[%s10 + $0x258] sm:$0xf]
    %v3943 = vld [vmem:[%s10 + $0x25c] sm:$0xf]
    %v3944 = vld [vmem:[%s10 + $0x260] sm:$0xf]
    %v3945 = vld [vmem:[%s10 + $0x264] sm:$0xf]
    %v3946 = vld [vmem:[%s10 + $0x268] sm:$0xf]
    %v3947 = vld [vmem:[%s10 + $0x26c] sm:$0xf]
    %v3948 = vld [vmem:[%s10 + $0x270] sm:$0xf]
    %v3949 = vld [vmem:[%s10 + $0x274] sm:$0xf]
    %v3950 = vld [vmem:[%s10 + $0x278] sm:$0xf]
    %v3951 = vld [vmem:[%s10 + $0x27c] sm:$0xf]
    %v3957 = vunpack.c.l.b16 %v3792
    %v3958 = vunpack.c.l.b16 %v3793
    %v3959 = vunpack.c.l.b16 %v3794
    %v3960 = vunpack.c.l.b16 %v3795
    %v3961 = vunpack.c.l.b16 %v3796
    %v3962 = vpack.c.b16 %v3958, %v3957
    %v3963 = vpack.c.b16 %v3960, %v3959
    %v3964 = vpack.c.b16 %v3961, %v3961
    %vm3967 = vcmask 326656
    %v3969 = vsel %vm3967, %v3760, 0
    %v3972 = vsel %vm2345, %v3964, 0
    %3974 = vmatprep.subr.bf16.mxu0 0
    %3975 = vmatpush1.bf16.msra.mxu0 %v3962
    %3976 = vmatprep.subr.bf16.mxu0 0
    %3977 = vmatpush1.bf16.msra.mxu0 %v3963
    %3978 = vmatprep.subr.bf16.mxu0 0
    %3979 = vmatpush1.bf16.msra.mxu0 %v3972
    %3980 = vmatprep.subr.bf16.mxu0 0
    %3981 = vmatpush1.bf16.msra.mxu0 0
    %3982 = vmatprep.subr.bf16.mxu0 0
    %3983 = vmatpush1.bf16.msra.mxu0 0
    %3984 = vmatprep.subr.bf16.mxu0 0
    %3985 = vmatpush1.bf16.msra.mxu0 0
    %3986 = vmatprep.subr.bf16.mxu0 0
    %3987 = vmatpush1.bf16.msra.mxu0 0
    %3988 = vmatprep.subr.bf16.mxu0 0
    %3989 = vmatpush1.bf16.msra.mxu0 0
    %3990 = vmatprep.subr.bf16.mxu0 0
    %3991 = vmatpush1.bf16.msra.mxu0 0
    %3992 = vmatprep.subr.bf16.mxu0 0
    %3993 = vmatpush1.bf16.msra.mxu0 0
    %3994 = vmatprep.subr.bf16.mxu0 0
    %3995 = vmatpush1.bf16.msra.mxu0 0
    %3996 = vmatprep.subr.bf16.mxu0 0
    %3997 = vmatpush1.bf16.msra.mxu0 0
    %3998 = vmatprep.subr.bf16.mxu0 0
    %3999 = vmatpush1.bf16.msra.mxu0 0
    %4000 = vmatprep.subr.bf16.mxu0 0
    %4001 = vmatpush1.bf16.msra.mxu0 0
    %4002 = vmatprep.subr.bf16.mxu0 0
    %4003 = vmatpush1.bf16.msra.mxu0 0
    %4004 = vmatprep.subr.bf16.mxu0 0
    %4005 = vmatpush1.bf16.msra.mxu0 0
    %4006 = vmatprep.mubr.bf16.mxu0 0
    %4007 = vmatmul.mubr.bf16.gmra.mrb[0].mxu0 %v3969
    %v4008 = vpop.f32.mrb[0].mxu0
    %v4009 = vadd.f32 0.0, %v4008
    %v4010 = vpop.f32.mrb[0].mxu0
    %v4011 = vpop.f32.mrb[0].mxu0
    %v4012 = vpop.f32.mrb[0].mxu0
    %4013 = vdwg.mxu0
    %v4019 = vunpack.c.l.b16 %v3797
    %v4020 = vunpack.c.l.b16 %v3798
    %v4021 = vunpack.c.l.b16 %v3799
    %v4022 = vunpack.c.l.b16 %v3800
    %v4023 = vunpack.c.l.b16 %v3801
    %v4024 = vpack.c.b16 %v4020, %v4019
    %v4025 = vpack.c.b16 %v4022, %v4021
    %v4026 = vpack.c.b16 %v4023, %v4023
    %v4030 = vsel %vm3967, %v3761, 0
    %v4033 = vsel %vm2345, %v4026, 0
    %4035 = vmatprep.subr.bf16.mxu0 0
    %4036 = vmatpush1.bf16.msra.mxu0 %v4024
    %4037 = vmatprep.subr.bf16.mxu0 0
    %4038 = vmatpush1.bf16.msra.mxu0 %v4025
    %4039 = vmatprep.subr.bf16.mxu0 0
    %4040 = vmatpush1.bf16.msra.mxu0 %v4033
    %4041 = vmatprep.subr.bf16.mxu0 0
    %4042 = vmatpush1.bf16.msra.mxu0 0
    %4043 = vmatprep.subr.bf16.mxu0 0
    %4044 = vmatpush1.bf16.msra.mxu0 0
    %4045 = vmatprep.subr.bf16.mxu0 0
    %4046 = vmatpush1.bf16.msra.mxu0 0
    %4047 = vmatprep.subr.bf16.mxu0 0
    %4048 = vmatpush1.bf16.msra.mxu0 0
    %4049 = vmatprep.subr.bf16.mxu0 0
    %4050 = vmatpush1.bf16.msra.mxu0 0
    %4051 = vmatprep.subr.bf16.mxu0 0
    %4052 = vmatpush1.bf16.msra.mxu0 0
    %4053 = vmatprep.subr.bf16.mxu0 0
    %4054 = vmatpush1.bf16.msra.mxu0 0
    %4055 = vmatprep.subr.bf16.mxu0 0
    %4056 = vmatpush1.bf16.msra.mxu0 0
    %4057 = vmatprep.subr.bf16.mxu0 0
    %4058 = vmatpush1.bf16.msra.mxu0 0
    %4059 = vmatprep.subr.bf16.mxu0 0
    %4060 = vmatpush1.bf16.msra.mxu0 0
    %4061 = vmatprep.subr.bf16.mxu0 0
    %4062 = vmatpush1.bf16.msra.mxu0 0
    %4063 = vmatprep.subr.bf16.mxu0 0
    %4064 = vmatpush1.bf16.msra.mxu0 0
    %4065 = vmatprep.subr.bf16.mxu0 0
    %4066 = vmatpush1.bf16.msra.mxu0 0
    %4067 = vmatprep.mubr.bf16.mxu0 0
    %4068 = vmatmul.mubr.bf16.gmra.mrb[0].mxu0 %v4030
    %v4069 = vpop.f32.mrb[0].mxu0
    %v4070 = vadd.f32 0.0, %v4069
    %v4071 = vpop.f32.mrb[0].mxu0
    %v4072 = vpop.f32.mrb[0].mxu0
    %v4073 = vpop.f32.mrb[0].mxu0
    %4074 = vdwg.mxu0
    %v4080 = vunpack.c.l.b16 %v3802
    %v4081 = vunpack.c.l.b16 %v3803
    %v4082 = vunpack.c.l.b16 %v3804
    %v4083 = vunpack.c.l.b16 %v3805
    %v4084 = vunpack.c.l.b16 %v3806
    %v4085 = vpack.c.b16 %v4081, %v4080
    %v4086 = vpack.c.b16 %v4083, %v4082
    %v4087 = vpack.c.b16 %v4084, %v4084
    %v4091 = vsel %vm3967, %v3762, 0
    %v4094 = vsel %vm2345, %v4087, 0
    %4096 = vmatprep.subr.bf16.mxu0 0
    %4097 = vmatpush1.bf16.msra.mxu0 %v4085
    %4098 = vmatprep.subr.bf16.mxu0 0
    %4099 = vmatpush1.bf16.msra.mxu0 %v4086
    %4100 = vmatprep.subr.bf16.mxu0 0
    %4101 = vmatpush1.bf16.msra.mxu0 %v4094
    %4102 = vmatprep.subr.bf16.mxu0 0
    %4103 = vmatpush1.bf16.msra.mxu0 0
    %4104 = vmatprep.subr.bf16.mxu0 0
    %4105 = vmatpush1.bf16.msra.mxu0 0
    %4106 = vmatprep.subr.bf16.mxu0 0
    %4107 = vmatpush1.bf16.msra.mxu0 0
    %4108 = vmatprep.subr.bf16.mxu0 0
    %4109 = vmatpush1.bf16.msra.mxu0 0
    %4110 = vmatprep.subr.bf16.mxu0 0
    %4111 = vmatpush1.bf16.msra.mxu0 0
    %4112 = vmatprep.subr.bf16.mxu0 0
    %4113 = vmatpush1.bf16.msra.mxu0 0
    %4114 = vmatprep.subr.bf16.mxu0 0
    %4115 = vmatpush1.bf16.msra.mxu0 0
    %4116 = vmatprep.subr.bf16.mxu0 0
    %4117 = vmatpush1.bf16.msra.mxu0 0
    %4118 = vmatprep.subr.bf16.mxu0 0
    %4119 = vmatpush1.bf16.msra.mxu0 0
    %4120 = vmatprep.subr.bf16.mxu0 0
    %4121 = vmatpush1.bf16.msra.mxu0 0
    %4122 = vmatprep.subr.bf16.mxu0 0
    %4123 = vmatpush1.bf16.msra.mxu0 0
    %4124 = vmatprep.subr.bf16.mxu0 0
    %4125 = vmatpush1.bf16.msra.mxu0 0
    %4126 = vmatprep.subr.bf16.mxu0 0
    %4127 = vmatpush1.bf16.msra.mxu0 0
    %4128 = vmatprep.mubr.bf16.mxu0 0
    %4129 = vmatmul.mubr.bf16.gmra.mrb[0].mxu0 %v4091
    %v4130 = vpop.f32.mrb[0].mxu0
    %v4131 = vadd.f32 0.0, %v4130
    %v4132 = vpop.f32.mrb[0].mxu0
    %v4133 = vpop.f32.mrb[0].mxu0
    %v4134 = vpop.f32.mrb[0].mxu0
    %4135 = vdwg.mxu0
    %v4141 = vunpack.c.l.b16 %v3807
    %v4142 = vunpack.c.l.b16 %v3808
    %v4143 = vunpack.c.l.b16 %v3809
    %v4144 = vunpack.c.l.b16 %v3810
    %v4145 = vunpack.c.l.b16 %v3811
    %v4146 = vpack.c.b16 %v4142, %v4141
    %v4147 = vpack.c.b16 %v4144, %v4143
    %v4148 = vpack.c.b16 %v4145, %v4145
    %v4152 = vsel %vm3967, %v3763, 0
    %v4155 = vsel %vm2345, %v4148, 0
    %4157 = vmatprep.subr.bf16.mxu0 0
    %4158 = vmatpush1.bf16.msra.mxu0 %v4146
    %4159 = vmatprep.subr.bf16.mxu0 0
    %4160 = vmatpush1.bf16.msra.mxu0 %v4147
    %4161 = vmatprep.subr.bf16.mxu0 0
    %4162 = vmatpush1.bf16.msra.mxu0 %v4155
    %4163 = vmatprep.subr.bf16.mxu0 0
    %4164 = vmatpush1.bf16.msra.mxu0 0
    %4165 = vmatprep.subr.bf16.mxu0 0
    %4166 = vmatpush1.bf16.msra.mxu0 0
    %4167 = vmatprep.subr.bf16.mxu0 0
    %4168 = vmatpush1.bf16.msra.mxu0 0
    %4169 = vmatprep.subr.bf16.mxu0 0
    %4170 = vmatpush1.bf16.msra.mxu0 0
    %4171 = vmatprep.subr.bf16.mxu0 0
    %4172 = vmatpush1.bf16.msra.mxu0 0
    %4173 = vmatprep.subr.bf16.mxu0 0
    %4174 = vmatpush1.bf16.msra.mxu0 0
    %4175 = vmatprep.subr.bf16.mxu0 0
    %4176 = vmatpush1.bf16.msra.mxu0 0
    %4177 = vmatprep.subr.bf16.mxu0 0
    %4178 = vmatpush1.bf16.msra.mxu0 0
    %4179 = vmatprep.subr.bf16.mxu0 0
    %4180 = vmatpush1.bf16.msra.mxu0 0
    %4181 = vmatprep.subr.bf16.mxu0 0
    %4182 = vmatpush1.bf16.msra.mxu0 0
    %4183 = vmatprep.subr.bf16.mxu0 0
    %4184 = vmatpush1.bf16.msra.mxu0 0
    %4185 = vmatprep.subr.bf16.mxu0 0
    %4186 = vmatpush1.bf16.msra.mxu0 0
    %4187 = vmatprep.subr.bf16.mxu0 0
    %4188 = vmatpush1.bf16.msra.mxu0 0
    %4189 = vmatprep.mubr.bf16.mxu0 0
    %4190 = vmatmul.mubr.bf16.gmra.mrb[0].mxu0 %v4152
    %v4191 = vpop.f32.mrb[0].mxu0
    %v4192 = vadd.f32 0.0, %v4191
    %v4193 = vpop.f32.mrb[0].mxu0
    %v4194 = vpop.f32.mrb[0].mxu0
    %v4195 = vpop.f32.mrb[0].mxu0
    %4196 = vdwg.mxu0
    %v4202 = vunpack.c.l.b16 %v3812
    %v4203 = vunpack.c.l.b16 %v3813
    %v4204 = vunpack.c.l.b16 %v3814
    %v4205 = vunpack.c.l.b16 %v3815
    %v4206 = vunpack.c.l.b16 %v3816
    %v4207 = vpack.c.b16 %v4203, %v4202
    %v4208 = vpack.c.b16 %v4205, %v4204
    %v4209 = vpack.c.b16 %v4206, %v4206
    %v4213 = vsel %vm3967, %v3764, 0
    %v4216 = vsel %vm2345, %v4209, 0
    %4218 = vmatprep.subr.bf16.mxu0 0
    %4219 = vmatpush1.bf16.msra.mxu0 %v4207
    %4220 = vmatprep.subr.bf16.mxu0 0
    %4221 = vmatpush1.bf16.msra.mxu0 %v4208
    %4222 = vmatprep.subr.bf16.mxu0 0
    %4223 = vmatpush1.bf16.msra.mxu0 %v4216
    %4224 = vmatprep.subr.bf16.mxu0 0
    %4225 = vmatpush1.bf16.msra.mxu0 0
    %4226 = vmatprep.subr.bf16.mxu0 0
    %4227 = vmatpush1.bf16.msra.mxu0 0
    %4228 = vmatprep.subr.bf16.mxu0 0
    %4229 = vmatpush1.bf16.msra.mxu0 0
    %4230 = vmatprep.subr.bf16.mxu0 0
    %4231 = vmatpush1.bf16.msra.mxu0 0
    %4232 = vmatprep.subr.bf16.mxu0 0
    %4233 = vmatpush1.bf16.msra.mxu0 0
    %4234 = vmatprep.subr.bf16.mxu0 0
    %4235 = vmatpush1.bf16.msra.mxu0 0
    %4236 = vmatprep.subr.bf16.mxu0 0
    %4237 = vmatpush1.bf16.msra.mxu0 0
    %4238 = vmatprep.subr.bf16.mxu0 0
    %4239 = vmatpush1.bf16.msra.mxu0 0
    %4240 = vmatprep.subr.bf16.mxu0 0
    %4241 = vmatpush1.bf16.msra.mxu0 0
    %4242 = vmatprep.subr.bf16.mxu0 0
    %4243 = vmatpush1.bf16.msra.mxu0 0
    %4244 = vmatprep.subr.bf16.mxu0 0
    %4245 = vmatpush1.bf16.msra.mxu0 0
    %4246 = vmatprep.subr.bf16.mxu0 0
    %4247 = vmatpush1.bf16.msra.mxu0 0
    %4248 = vmatprep.subr.bf16.mxu0 0
    %4249 = vmatpush1.bf16.msra.mxu0 0
    %4250 = vmatprep.mubr.bf16.mxu0 0
    %4251 = vmatmul.mubr.bf16.gmra.mrb[0].mxu0 %v4213
    %v4252 = vpop.f32.mrb[0].mxu0
    %v4253 = vadd.f32 0.0, %v4252
    %v4254 = vpop.f32.mrb[0].mxu0
    %v4255 = vpop.f32.mrb[0].mxu0
    %v4256 = vpop.f32.mrb[0].mxu0
    %4257 = vdwg.mxu0
    %v4263 = vunpack.c.l.b16 %v3817
    %v4264 = vunpack.c.l.b16 %v3818
    %v4265 = vunpack.c.l.b16 %v3819
    %v4266 = vunpack.c.l.b16 %v3820
    %v4267 = vunpack.c.l.b16 %v3821
    %v4268 = vpack.c.b16 %v4264, %v4263
    %v4269 = vpack.c.b16 %v4266, %v4265
    %v4270 = vpack.c.b16 %v4267, %v4267
    %v4274 = vsel %vm3967, %v3765, 0
    %v4277 = vsel %vm2345, %v4270, 0
    %4279 = vmatprep.subr.bf16.mxu0 0
    %4280 = vmatpush1.bf16.msra.mxu0 %v4268
    %4281 = vmatprep.subr.bf16.mxu0 0
    %4282 = vmatpush1.bf16.msra.mxu0 %v4269
    %4283 = vmatprep.subr.bf16.mxu0 0
    %4284 = vmatpush1.bf16.msra.mxu0 %v4277
    %4285 = vmatprep.subr.bf16.mxu0 0
    %4286 = vmatpush1.bf16.msra.mxu0 0
    %4287 = vmatprep.subr.bf16.mxu0 0
    %4288 = vmatpush1.bf16.msra.mxu0 0
    %4289 = vmatprep.subr.bf16.mxu0 0
    %4290 = vmatpush1.bf16.msra.mxu0 0
    %4291 = vmatprep.subr.bf16.mxu0 0
    %4292 = vmatpush1.bf16.msra.mxu0 0
    %4293 = vmatprep.subr.bf16.mxu0 0
    %4294 = vmatpush1.bf16.msra.mxu0 0
    %4295 = vmatprep.subr.bf16.mxu0 0
    %4296 = vmatpush1.bf16.msra.mxu0 0
    %4297 = vmatprep.subr.bf16.mxu0 0
    %4298 = vmatpush1.bf16.msra.mxu0 0
    %4299 = vmatprep.subr.bf16.mxu0 0
    %4300 = vmatpush1.bf16.msra.mxu0 0
    %4301 = vmatprep.subr.bf16.mxu0 0
    %4302 = vmatpush1.bf16.msra.mxu0 0
    %4303 = vmatprep.subr.bf16.mxu0 0
    %4304 = vmatpush1.bf16.msra.mxu0 0
    %4305 = vmatprep.subr.bf16.mxu0 0
    %4306 = vmatpush1.bf16.msra.mxu0 0
    %4307 = vmatprep.subr.bf16.mxu0 0
    %4308 = vmatpush1.bf16.msra.mxu0 0
    %4309 = vmatprep.subr.bf16.mxu0 0
    %4310 = vmatpush1.bf16.msra.mxu0 0
    %4311 = vmatprep.mubr.bf16.mxu0 0
    %4312 = vmatmul.mubr.bf16.gmra.mrb[0].mxu0 %v4274
    %v4313 = vpop.f32.mrb[0].mxu0
    %v4314 = vadd.f32 0.0, %v4313
    %v4315 = vpop.f32.mrb[0].mxu0
    %v4316 = vpop.f32.mrb[0].mxu0
    %v4317 = vpop.f32.mrb[0].mxu0
    %4318 = vdwg.mxu0
    %v4324 = vunpack.c.l.b16 %v3822
    %v4325 = vunpack.c.l.b16 %v3823
    %v4326 = vunpack.c.l.b16 %v3824
    %v4327 = vunpack.c.l.b16 %v3825
    %v4328 = vunpack.c.l.b16 %v3826
    %v4329 = vpack.c.b16 %v4325, %v4324
    %v4330 = vpack.c.b16 %v4327, %v4326
    %v4331 = vpack.c.b16 %v4328, %v4328
    %v4335 = vsel %vm3967, %v3766, 0
    %v4338 = vsel %vm2345, %v4331, 0
    %4340 = vmatprep.subr.bf16.mxu0 0
    %4341 = vmatpush1.bf16.msra.mxu0 %v4329
    %4342 = vmatprep.subr.bf16.mxu0 0
    %4343 = vmatpush1.bf16.msra.mxu0 %v4330
    %4344 = vmatprep.subr.bf16.mxu0 0
    %4345 = vmatpush1.bf16.msra.mxu0 %v4338
    %4346 = vmatprep.subr.bf16.mxu0 0
    %4347 = vmatpush1.bf16.msra.mxu0 0
    %4348 = vmatprep.subr.bf16.mxu0 0
    %4349 = vmatpush1.bf16.msra.mxu0 0
    %4350 = vmatprep.subr.bf16.mxu0 0
    %4351 = vmatpush1.bf16.msra.mxu0 0
    %4352 = vmatprep.subr.bf16.mxu0 0
    %4353 = vmatpush1.bf16.msra.mxu0 0
    %4354 = vmatprep.subr.bf16.mxu0 0
    %4355 = vmatpush1.bf16.msra.mxu0 0
    %4356 = vmatprep.subr.bf16.mxu0 0
    %4357 = vmatpush1.bf16.msra.mxu0 0
    %4358 = vmatprep.subr.bf16.mxu0 0
    %4359 = vmatpush1.bf16.msra.mxu0 0
    %4360 = vmatprep.subr.bf16.mxu0 0
    %4361 = vmatpush1.bf16.msra.mxu0 0
    %4362 = vmatprep.subr.bf16.mxu0 0
    %4363 = vmatpush1.bf16.msra.mxu0 0
    %4364 = vmatprep.subr.bf16.mxu0 0
    %4365 = vmatpush1.bf16.msra.mxu0 0
    %4366 = vmatprep.subr.bf16.mxu0 0
    %4367 = vmatpush1.bf16.msra.mxu0 0
    %4368 = vmatprep.subr.bf16.mxu0 0
    %4369 = vmatpush1.bf16.msra.mxu0 0
    %4370 = vmatprep.subr.bf16.mxu0 0
    %4371 = vmatpush1.bf16.msra.mxu0 0
    %4372 = vmatprep.mubr.bf16.mxu0 0
    %4373 = vmatmul.mubr.bf16.gmra.mrb[0].mxu0 %v4335
    %v4374 = vpop.f32.mrb[0].mxu0
    %v4375 = vadd.f32 0.0, %v4374
    %v4376 = vpop.f32.mrb[0].mxu0
    %v4377 = vpop.f32.mrb[0].mxu0
    %v4378 = vpop.f32.mrb[0].mxu0
    %4379 = vdwg.mxu0
    %v4385 = vunpack.c.l.b16 %v3827
    %v4386 = vunpack.c.l.b16 %v3828
    %v4387 = vunpack.c.l.b16 %v3829
    %v4388 = vunpack.c.l.b16 %v3830
    %v4389 = vunpack.c.l.b16 %v3831
    %v4390 = vpack.c.b16 %v4386, %v4385
    %v4391 = vpack.c.b16 %v4388, %v4387
    %v4392 = vpack.c.b16 %v4389, %v4389
    %v4396 = vsel %vm3967, %v3767, 0
    %v4399 = vsel %vm2345, %v4392, 0
    %4401 = vmatprep.subr.bf16.mxu0 0
    %4402 = vmatpush1.bf16.msra.mxu0 %v4390
    %4403 = vmatprep.subr.bf16.mxu0 0
    %4404 = vmatpush1.bf16.msra.mxu0 %v4391
    %4405 = vmatprep.subr.bf16.mxu0 0
    %4406 = vmatpush1.bf16.msra.mxu0 %v4399
    %4407 = vmatprep.subr.bf16.mxu0 0
    %4408 = vmatpush1.bf16.msra.mxu0 0
    %4409 = vmatprep.subr.bf16.mxu0 0
    %4410 = vmatpush1.bf16.msra.mxu0 0
    %4411 = vmatprep.subr.bf16.mxu0 0
    %4412 = vmatpush1.bf16.msra.mxu0 0
    %4413 = vmatprep.subr.bf16.mxu0 0
    %4414 = vmatpush1.bf16.msra.mxu0 0
    %4415 = vmatprep.subr.bf16.mxu0 0
    %4416 = vmatpush1.bf16.msra.mxu0 0
    %4417 = vmatprep.subr.bf16.mxu0 0
    %4418 = vmatpush1.bf16.msra.mxu0 0
    %4419 = vmatprep.subr.bf16.mxu0 0
    %4420 = vmatpush1.bf16.msra.mxu0 0
    %4421 = vmatprep.subr.bf16.mxu0 0
    %4422 = vmatpush1.bf16.msra.mxu0 0
    %4423 = vmatprep.subr.bf16.mxu0 0
    %4424 = vmatpush1.bf16.msra.mxu0 0
    %4425 = vmatprep.subr.bf16.mxu0 0
    %4426 = vmatpush1.bf16.msra.mxu0 0
    %4427 = vmatprep.subr.bf16.mxu0 0
    %4428 = vmatpush1.bf16.msra.mxu0 0
    %4429 = vmatprep.subr.bf16.mxu0 0
    %4430 = vmatpush1.bf16.msra.mxu0 0
    %4431 = vmatprep.subr.bf16.mxu0 0
    %4432 = vmatpush1.bf16.msra.mxu0 0
    %4433 = vmatprep.mubr.bf16.mxu0 0
    %4434 = vmatmul.mubr.bf16.gmra.mrb[0].mxu0 %v4396
    %v4435 = vpop.f32.mrb[0].mxu0
    %v4436 = vadd.f32 0.0, %v4435
    %v4437 = vpop.f32.mrb[0].mxu0
    %v4438 = vpop.f32.mrb[0].mxu0
    %v4439 = vpop.f32.mrb[0].mxu0
    %4440 = vdwg.mxu0
    %v4446 = vunpack.c.l.b16 %v3832
    %v4447 = vunpack.c.l.b16 %v3833
    %v4448 = vunpack.c.l.b16 %v3834
    %v4449 = vunpack.c.l.b16 %v3835
    %v4450 = vunpack.c.l.b16 %v3836
    %v4451 = vpack.c.b16 %v4447, %v4446
    %v4452 = vpack.c.b16 %v4449, %v4448
    %v4453 = vpack.c.b16 %v4450, %v4450
    %v4457 = vsel %vm3967, %v3768, 0
    %v4460 = vsel %vm2345, %v4453, 0
    %4462 = vmatprep.subr.bf16.mxu0 0
    %4463 = vmatpush1.bf16.msra.mxu0 %v4451
    %4464 = vmatprep.subr.bf16.mxu0 0
    %4465 = vmatpush1.bf16.msra.mxu0 %v4452
    %4466 = vmatprep.subr.bf16.mxu0 0
    %4467 = vmatpush1.bf16.msra.mxu0 %v4460
    %4468 = vmatprep.subr.bf16.mxu0 0
    %4469 = vmatpush1.bf16.msra.mxu0 0
    %4470 = vmatprep.subr.bf16.mxu0 0
    %4471 = vmatpush1.bf16.msra.mxu0 0
    %4472 = vmatprep.subr.bf16.mxu0 0
    %4473 = vmatpush1.bf16.msra.mxu0 0
    %4474 = vmatprep.subr.bf16.mxu0 0
    %4475 = vmatpush1.bf16.msra.mxu0 0
    %4476 = vmatprep.subr.bf16.mxu0 0
    %4477 = vmatpush1.bf16.msra.mxu0 0
    %4478 = vmatprep.subr.bf16.mxu0 0
    %4479 = vmatpush1.bf16.msra.mxu0 0
    %4480 = vmatprep.subr.bf16.mxu0 0
    %4481 = vmatpush1.bf16.msra.mxu0 0
    %4482 = vmatprep.subr.bf16.mxu0 0
    %4483 = vmatpush1.bf16.msra.mxu0 0
    %4484 = vmatprep.subr.bf16.mxu0 0
    %4485 = vmatpush1.bf16.msra.mxu0 0
    %4486 = vmatprep.subr.bf16.mxu0 0
    %4487 = vmatpush1.bf16.msra.mxu0 0
    %4488 = vmatprep.subr.bf16.mxu0 0
    %4489 = vmatpush1.bf16.msra.mxu0 0
    %4490 = vmatprep.subr.bf16.mxu0 0
    %4491 = vmatpush1.bf16.msra.mxu0 0
    %4492 = vmatprep.subr.bf16.mxu0 0
    %4493 = vmatpush1.bf16.msra.mxu0 0
    %4494 = vmatprep.mubr.bf16.mxu0 0
    %4495 = vmatmul.mubr.bf16.gmra.mrb[0].mxu0 %v4457
    %v4496 = vpop.f32.mrb[0].mxu0
    %v4497 = vadd.f32 0.0, %v4496
    %v4498 = vpop.f32.mrb[0].mxu0
    %v4499 = vpop.f32.mrb[0].mxu0
    %v4500 = vpop.f32.mrb[0].mxu0
    %4501 = vdwg.mxu0
    %v4507 = vunpack.c.l.b16 %v3837
    %v4508 = vunpack.c.l.b16 %v3838
    %v4509 = vunpack.c.l.b16 %v3839
    %v4510 = vunpack.c.l.b16 %v3840
    %v4511 = vunpack.c.l.b16 %v3841
    %v4512 = vpack.c.b16 %v4508, %v4507
    %v4513 = vpack.c.b16 %v4510, %v4509
    %v4514 = vpack.c.b16 %v4511, %v4511
    %v4518 = vsel %vm3967, %v3769, 0
    %v4521 = vsel %vm2345, %v4514, 0
    %4523 = vmatprep.subr.bf16.mxu0 0
    %4524 = vmatpush1.bf16.msra.mxu0 %v4512
    %4525 = vmatprep.subr.bf16.mxu0 0
    %4526 = vmatpush1.bf16.msra.mxu0 %v4513
    %4527 = vmatprep.subr.bf16.mxu0 0
    %4528 = vmatpush1.bf16.msra.mxu0 %v4521
    %4529 = vmatprep.subr.bf16.mxu0 0
    %4530 = vmatpush1.bf16.msra.mxu0 0
    %4531 = vmatprep.subr.bf16.mxu0 0
    %4532 = vmatpush1.bf16.msra.mxu0 0
    %4533 = vmatprep.subr.bf16.mxu0 0
    %4534 = vmatpush1.bf16.msra.mxu0 0
    %4535 = vmatprep.subr.bf16.mxu0 0
    %4536 = vmatpush1.bf16.msra.mxu0 0
    %4537 = vmatprep.subr.bf16.mxu0 0
    %4538 = vmatpush1.bf16.msra.mxu0 0
    %4539 = vmatprep.subr.bf16.mxu0 0
    %4540 = vmatpush1.bf16.msra.mxu0 0
    %4541 = vmatprep.subr.bf16.mxu0 0
    %4542 = vmatpush1.bf16.msra.mxu0 0
    %4543 = vmatprep.subr.bf16.mxu0 0
    %4544 = vmatpush1.bf16.msra.mxu0 0
    %4545 = vmatprep.subr.bf16.mxu0 0
    %4546 = vmatpush1.bf16.msra.mxu0 0
    %4547 = vmatprep.subr.bf16.mxu0 0
    %4548 = vmatpush1.bf16.msra.mxu0 0
    %4549 = vmatprep.subr.bf16.mxu0 0
    %4550 = vmatpush1.bf16.msra.mxu0 0
    %4551 = vmatprep.subr.bf16.mxu0 0
    %4552 = vmatpush1.bf16.msra.mxu0 0
    %4553 = vmatprep.subr.bf16.mxu0 0
    %4554 = vmatpush1.bf16.msra.mxu0 0
    %4555 = vmatprep.mubr.bf16.mxu0 0
    %4556 = vmatmul.mubr.bf16.gmra.mrb[0].mxu0 %v4518
    %v4557 = vpop.f32.mrb[0].mxu0
    %v4558 = vadd.f32 0.0, %v4557
    %v4559 = vpop.f32.mrb[0].mxu0
    %v4560 = vpop.f32.mrb[0].mxu0
    %v4561 = vpop.f32.mrb[0].mxu0
    %4562 = vdwg.mxu0
    %v4568 = vunpack.c.l.b16 %v3842
    %v4569 = vunpack.c.l.b16 %v3843
    %v4570 = vunpack.c.l.b16 %v3844
    %v4571 = vunpack.c.l.b16 %v3845
    %v4572 = vunpack.c.l.b16 %v3846
    %v4573 = vpack.c.b16 %v4569, %v4568
    %v4574 = vpack.c.b16 %v4571, %v4570
    %v4575 = vpack.c.b16 %v4572, %v4572
    %v4579 = vsel %vm3967, %v3770, 0
    %v4582 = vsel %vm2345, %v4575, 0
    %4584 = vmatprep.subr.bf16.mxu0 0
    %4585 = vmatpush1.bf16.msra.mxu0 %v4573
    %4586 = vmatprep.subr.bf16.mxu0 0
    %4587 = vmatpush1.bf16.msra.mxu0 %v4574
    %4588 = vmatprep.subr.bf16.mxu0 0
    %4589 = vmatpush1.bf16.msra.mxu0 %v4582
    %4590 = vmatprep.subr.bf16.mxu0 0
    %4591 = vmatpush1.bf16.msra.mxu0 0
    %4592 = vmatprep.subr.bf16.mxu0 0
    %4593 = vmatpush1.bf16.msra.mxu0 0
    %4594 = vmatprep.subr.bf16.mxu0 0
    %4595 = vmatpush1.bf16.msra.mxu0 0
    %4596 = vmatprep.subr.bf16.mxu0 0
    %4597 = vmatpush1.bf16.msra.mxu0 0
    %4598 = vmatprep.subr.bf16.mxu0 0
    %4599 = vmatpush1.bf16.msra.mxu0 0
    %4600 = vmatprep.subr.bf16.mxu0 0
    %4601 = vmatpush1.bf16.msra.mxu0 0
    %4602 = vmatprep.subr.bf16.mxu0 0
    %4603 = vmatpush1.bf16.msra.mxu0 0
    %4604 = vmatprep.subr.bf16.mxu0 0
    %4605 = vmatpush1.bf16.msra.mxu0 0
    %4606 = vmatprep.subr.bf16.mxu0 0
    %4607 = vmatpush1.bf16.msra.mxu0 0
    %4608 = vmatprep.subr.bf16.mxu0 0
    %4609 = vmatpush1.bf16.msra.mxu0 0
    %4610 = vmatprep.subr.bf16.mxu0 0
    %4611 = vmatpush1.bf16.msra.mxu0 0
    %4612 = vmatprep.subr.bf16.mxu0 0
    %4613 = vmatpush1.bf16.msra.mxu0 0
    %4614 = vmatprep.subr.bf16.mxu0 0
    %4615 = vmatpush1.bf16.msra.mxu0 0
    %4616 = vmatprep.mubr.bf16.mxu0 0
    %4617 = vmatmul.mubr.bf16.gmra.mrb[0].mxu0 %v4579
    %v4618 = vpop.f32.mrb[0].mxu0
    %v4619 = vadd.f32 0.0, %v4618
    %v4620 = vpop.f32.mrb[0].mxu0
    %v4621 = vpop.f32.mrb[0].mxu0
    %v4622 = vpop.f32.mrb[0].mxu0
    %4623 = vdwg.mxu0
    %v4629 = vunpack.c.l.b16 %v3847
    %v4630 = vunpack.c.l.b16 %v3848
    %v4631 = vunpack.c.l.b16 %v3849
    %v4632 = vunpack.c.l.b16 %v3850
    %v4633 = vunpack.c.l.b16 %v3851
    %v4634 = vpack.c.b16 %v4630, %v4629
    %v4635 = vpack.c.b16 %v4632, %v4631
    %v4636 = vpack.c.b16 %v4633, %v4633
    %v4640 = vsel %vm3967, %v3771, 0
    %v4643 = vsel %vm2345, %v4636, 0
    %4645 = vmatprep.subr.bf16.mxu0 0
    %4646 = vmatpush1.bf16.msra.mxu0 %v4634
    %4647 = vmatprep.subr.bf16.mxu0 0
    %4648 = vmatpush1.bf16.msra.mxu0 %v4635
    %4649 = vmatprep.subr.bf16.mxu0 0
    %4650 = vmatpush1.bf16.msra.mxu0 %v4643
    %4651 = vmatprep.subr.bf16.mxu0 0
    %4652 = vmatpush1.bf16.msra.mxu0 0
    %4653 = vmatprep.subr.bf16.mxu0 0
    %4654 = vmatpush1.bf16.msra.mxu0 0
    %4655 = vmatprep.subr.bf16.mxu0 0
    %4656 = vmatpush1.bf16.msra.mxu0 0
    %4657 = vmatprep.subr.bf16.mxu0 0
    %4658 = vmatpush1.bf16.msra.mxu0 0
    %4659 = vmatprep.subr.bf16.mxu0 0
    %4660 = vmatpush1.bf16.msra.mxu0 0
    %4661 = vmatprep.subr.bf16.mxu0 0
    %4662 = vmatpush1.bf16.msra.mxu0 0
    %4663 = vmatprep.subr.bf16.mxu0 0
    %4664 = vmatpush1.bf16.msra.mxu0 0
    %4665 = vmatprep.subr.bf16.mxu0 0
    %4666 = vmatpush1.bf16.msra.mxu0 0
    %4667 = vmatprep.subr.bf16.mxu0 0
    %4668 = vmatpush1.bf16.msra.mxu0 0
    %4669 = vmatprep.subr.bf16.mxu0 0
    %4670 = vmatpush1.bf16.msra.mxu0 0
    %4671 = vmatprep.subr.bf16.mxu0 0
    %4672 = vmatpush1.bf16.msra.mxu0 0
    %4673 = vmatprep.subr.bf16.mxu0 0
    %4674 = vmatpush1.bf16.msra.mxu0 0
    %4675 = vmatprep.subr.bf16.mxu0 0
    %4676 = vmatpush1.bf16.msra.mxu0 0
    %4677 = vmatprep.mubr.bf16.mxu0 0
    %4678 = vmatmul.mubr.bf16.gmra.mrb[0].mxu0 %v4640
    %v4679 = vpop.f32.mrb[0].mxu0
    %v4680 = vadd.f32 0.0, %v4679
    %v4681 = vpop.f32.mrb[0].mxu0
    %v4682 = vpop.f32.mrb[0].mxu0
    %v4683 = vpop.f32.mrb[0].mxu0
    %4684 = vdwg.mxu0
    %v4690 = vunpack.c.l.b16 %v3852
    %v4691 = vunpack.c.l.b16 %v3853
    %v4692 = vunpack.c.l.b16 %v3854
    %v4693 = vunpack.c.l.b16 %v3855
    %v4694 = vunpack.c.l.b16 %v3856
    %v4695 = vpack.c.b16 %v4691, %v4690
    %v4696 = vpack.c.b16 %v4693, %v4692
    %v4697 = vpack.c.b16 %v4694, %v4694
    %v4701 = vsel %vm3967, %v3772, 0
    %v4704 = vsel %vm2345, %v4697, 0
    %4706 = vmatprep.subr.bf16.mxu0 0
    %4707 = vmatpush1.bf16.msra.mxu0 %v4695
    %4708 = vmatprep.subr.bf16.mxu0 0
    %4709 = vmatpush1.bf16.msra.mxu0 %v4696
    %4710 = vmatprep.subr.bf16.mxu0 0
    %4711 = vmatpush1.bf16.msra.mxu0 %v4704
    %4712 = vmatprep.subr.bf16.mxu0 0
    %4713 = vmatpush1.bf16.msra.mxu0 0
    %4714 = vmatprep.subr.bf16.mxu0 0
    %4715 = vmatpush1.bf16.msra.mxu0 0
    %4716 = vmatprep.subr.bf16.mxu0 0
    %4717 = vmatpush1.bf16.msra.mxu0 0
    %4718 = vmatprep.subr.bf16.mxu0 0
    %4719 = vmatpush1.bf16.msra.mxu0 0
    %4720 = vmatprep.subr.bf16.mxu0 0
    %4721 = vmatpush1.bf16.msra.mxu0 0
    %4722 = vmatprep.subr.bf16.mxu0 0
    %4723 = vmatpush1.bf16.msra.mxu0 0
    %4724 = vmatprep.subr.bf16.mxu0 0
    %4725 = vmatpush1.bf16.msra.mxu0 0
    %4726 = vmatprep.subr.bf16.mxu0 0
    %4727 = vmatpush1.bf16.msra.mxu0 0
    %4728 = vmatprep.subr.bf16.mxu0 0
    %4729 = vmatpush1.bf16.msra.mxu0 0
    %4730 = vmatprep.subr.bf16.mxu0 0
    %4731 = vmatpush1.bf16.msra.mxu0 0
    %4732 = vmatprep.subr.bf16.mxu0 0
    %4733 = vmatpush1.bf16.msra.mxu0 0
    %4734 = vmatprep.subr.bf16.mxu0 0
    %4735 = vmatpush1.bf16.msra.mxu0 0
    %4736 = vmatprep.subr.bf16.mxu0 0
    %4737 = vmatpush1.bf16.msra.mxu0 0
    %4738 = vmatprep.mubr.bf16.mxu0 0
    %4739 = vmatmul.mubr.bf16.gmra.mrb[0].mxu0 %v4701
    %v4740 = vpop.f32.mrb[0].mxu0
    %v4741 = vadd.f32 0.0, %v4740
    %v4742 = vpop.f32.mrb[0].mxu0
    %v4743 = vpop.f32.mrb[0].mxu0
    %v4744 = vpop.f32.mrb[0].mxu0
    %4745 = vdwg.mxu0
    %v4751 = vunpack.c.l.b16 %v3857
    %v4752 = vunpack.c.l.b16 %v3858
    %v4753 = vunpack.c.l.b16 %v3859
    %v4754 = vunpack.c.l.b16 %v3860
    %v4755 = vunpack.c.l.b16 %v3861
    %v4756 = vpack.c.b16 %v4752, %v4751
    %v4757 = vpack.c.b16 %v4754, %v4753
    %v4758 = vpack.c.b16 %v4755, %v4755
    %v4762 = vsel %vm3967, %v3773, 0
    %v4765 = vsel %vm2345, %v4758, 0
    %4767 = vmatprep.subr.bf16.mxu0 0
    %4768 = vmatpush1.bf16.msra.mxu0 %v4756
    %4769 = vmatprep.subr.bf16.mxu0 0
    %4770 = vmatpush1.bf16.msra.mxu0 %v4757
    %4771 = vmatprep.subr.bf16.mxu0 0
    %4772 = vmatpush1.bf16.msra.mxu0 %v4765
    %4773 = vmatprep.subr.bf16.mxu0 0
    %4774 = vmatpush1.bf16.msra.mxu0 0
    %4775 = vmatprep.subr.bf16.mxu0 0
    %4776 = vmatpush1.bf16.msra.mxu0 0
    %4777 = vmatprep.subr.bf16.mxu0 0
    %4778 = vmatpush1.bf16.msra.mxu0 0
    %4779 = vmatprep.subr.bf16.mxu0 0
    %4780 = vmatpush1.bf16.msra.mxu0 0
    %4781 = vmatprep.subr.bf16.mxu0 0
    %4782 = vmatpush1.bf16.msra.mxu0 0
    %4783 = vmatprep.subr.bf16.mxu0 0
    %4784 = vmatpush1.bf16.msra.mxu0 0
    %4785 = vmatprep.subr.bf16.mxu0 0
    %4786 = vmatpush1.bf16.msra.mxu0 0
    %4787 = vmatprep.subr.bf16.mxu0 0
    %4788 = vmatpush1.bf16.msra.mxu0 0
    %4789 = vmatprep.subr.bf16.mxu0 0
    %4790 = vmatpush1.bf16.msra.mxu0 0
    %4791 = vmatprep.subr.bf16.mxu0 0
    %4792 = vmatpush1.bf16.msra.mxu0 0
    %4793 = vmatprep.subr.bf16.mxu0 0
    %4794 = vmatpush1.bf16.msra.mxu0 0
    %4795 = vmatprep.subr.bf16.mxu0 0
    %4796 = vmatpush1.bf16.msra.mxu0 0
    %4797 = vmatprep.subr.bf16.mxu0 0
    %4798 = vmatpush1.bf16.msra.mxu0 0
    %4799 = vmatprep.mubr.bf16.mxu0 0
    %4800 = vmatmul.mubr.bf16.gmra.mrb[0].mxu0 %v4762
    %v4801 = vpop.f32.mrb[0].mxu0
    %v4802 = vadd.f32 0.0, %v4801
    %v4803 = vpop.f32.mrb[0].mxu0
    %v4804 = vpop.f32.mrb[0].mxu0
    %v4805 = vpop.f32.mrb[0].mxu0
    %4806 = vdwg.mxu0
    %v4812 = vunpack.c.l.b16 %v3862
    %v4813 = vunpack.c.l.b16 %v3863
    %v4814 = vunpack.c.l.b16 %v3864
    %v4815 = vunpack.c.l.b16 %v3865
    %v4816 = vunpack.c.l.b16 %v3866
    %v4817 = vpack.c.b16 %v4813, %v4812
    %v4818 = vpack.c.b16 %v4815, %v4814
    %v4819 = vpack.c.b16 %v4816, %v4816
    %v4823 = vsel %vm3967, %v3774, 0
    %v4826 = vsel %vm2345, %v4819, 0
    %4828 = vmatprep.subr.bf16.mxu0 0
    %4829 = vmatpush1.bf16.msra.mxu0 %v4817
    %4830 = vmatprep.subr.bf16.mxu0 0
    %4831 = vmatpush1.bf16.msra.mxu0 %v4818
    %4832 = vmatprep.subr.bf16.mxu0 0
    %4833 = vmatpush1.bf16.msra.mxu0 %v4826
    %4834 = vmatprep.subr.bf16.mxu0 0
    %4835 = vmatpush1.bf16.msra.mxu0 0
    %4836 = vmatprep.subr.bf16.mxu0 0
    %4837 = vmatpush1.bf16.msra.mxu0 0
    %4838 = vmatprep.subr.bf16.mxu0 0
    %4839 = vmatpush1.bf16.msra.mxu0 0
    %4840 = vmatprep.subr.bf16.mxu0 0
    %4841 = vmatpush1.bf16.msra.mxu0 0
    %4842 = vmatprep.subr.bf16.mxu0 0
    %4843 = vmatpush1.bf16.msra.mxu0 0
    %4844 = vmatprep.subr.bf16.mxu0 0
    %4845 = vmatpush1.bf16.msra.mxu0 0
    %4846 = vmatprep.subr.bf16.mxu0 0
    %4847 = vmatpush1.bf16.msra.mxu0 0
    %4848 = vmatprep.subr.bf16.mxu0 0
    %4849 = vmatpush1.bf16.msra.mxu0 0
    %4850 = vmatprep.subr.bf16.mxu0 0
    %4851 = vmatpush1.bf16.msra.mxu0 0
    %4852 = vmatprep.subr.bf16.mxu0 0
    %4853 = vmatpush1.bf16.msra.mxu0 0
    %4854 = vmatprep.subr.bf16.mxu0 0
    %4855 = vmatpush1.bf16.msra.mxu0 0
    %4856 = vmatprep.subr.bf16.mxu0 0
    %4857 = vmatpush1.bf16.msra.mxu0 0
    %4858 = vmatprep.subr.bf16.mxu0 0
    %4859 = vmatpush1.bf16.msra.mxu0 0
    %4860 = vmatprep.mubr.bf16.mxu0 0
    %4861 = vmatmul.mubr.bf16.gmra.mrb[0].mxu0 %v4823
    %v4862 = vpop.f32.mrb[0].mxu0
    %v4863 = vadd.f32 0.0, %v4862
    %v4864 = vpop.f32.mrb[0].mxu0
    %v4865 = vpop.f32.mrb[0].mxu0
    %v4866 = vpop.f32.mrb[0].mxu0
    %4867 = vdwg.mxu0
    %v4873 = vunpack.c.l.b16 %v3867
    %v4874 = vunpack.c.l.b16 %v3868
    %v4875 = vunpack.c.l.b16 %v3869
    %v4876 = vunpack.c.l.b16 %v3870
    %v4877 = vunpack.c.l.b16 %v3871
    %v4878 = vpack.c.b16 %v4874, %v4873
    %v4879 = vpack.c.b16 %v4876, %v4875
    %v4880 = vpack.c.b16 %v4877, %v4877
    %v4884 = vsel %vm3967, %v3775, 0
    %v4887 = vsel %vm2345, %v4880, 0
    %4889 = vmatprep.subr.bf16.mxu0 0
    %4890 = vmatpush1.bf16.msra.mxu0 %v4878
    %4891 = vmatprep.subr.bf16.mxu0 0
    %4892 = vmatpush1.bf16.msra.mxu0 %v4879
    %4893 = vmatprep.subr.bf16.mxu0 0
    %4894 = vmatpush1.bf16.msra.mxu0 %v4887
    %4895 = vmatprep.subr.bf16.mxu0 0
    %4896 = vmatpush1.bf16.msra.mxu0 0
    %4897 = vmatprep.subr.bf16.mxu0 0
    %4898 = vmatpush1.bf16.msra.mxu0 0
    %4899 = vmatprep.subr.bf16.mxu0 0
    %4900 = vmatpush1.bf16.msra.mxu0 0
    %4901 = vmatprep.subr.bf16.mxu0 0
    %4902 = vmatpush1.bf16.msra.mxu0 0
    %4903 = vmatprep.subr.bf16.mxu0 0
    %4904 = vmatpush1.bf16.msra.mxu0 0
    %4905 = vmatprep.subr.bf16.mxu0 0
    %4906 = vmatpush1.bf16.msra.mxu0 0
    %4907 = vmatprep.subr.bf16.mxu0 0
    %4908 = vmatpush1.bf16.msra.mxu0 0
    %4909 = vmatprep.subr.bf16.mxu0 0
    %4910 = vmatpush1.bf16.msra.mxu0 0
    %4911 = vmatprep.subr.bf16.mxu0 0
    %4912 = vmatpush1.bf16.msra.mxu0 0
    %4913 = vmatprep.subr.bf16.mxu0 0
    %4914 = vmatpush1.bf16.msra.mxu0 0
    %4915 = vmatprep.subr.bf16.mxu0 0
    %4916 = vmatpush1.bf16.msra.mxu0 0
    %4917 = vmatprep.subr.bf16.mxu0 0
    %4918 = vmatpush1.bf16.msra.mxu0 0
    %4919 = vmatprep.subr.bf16.mxu0 0
    %4920 = vmatpush1.bf16.msra.mxu0 0
    %4921 = vmatprep.mubr.bf16.mxu0 0
    %4922 = vmatmul.mubr.bf16.gmra.mrb[0].mxu0 %v4884
    %v4923 = vpop.f32.mrb[0].mxu0
    %v4924 = vadd.f32 0.0, %v4923
    %v4925 = vpop.f32.mrb[0].mxu0
    %v4926 = vpop.f32.mrb[0].mxu0
    %v4927 = vpop.f32.mrb[0].mxu0
    %4928 = vdwg.mxu0
    %v4934 = vunpack.c.l.b16 %v3872
    %v4935 = vunpack.c.l.b16 %v3873
    %v4936 = vunpack.c.l.b16 %v3874
    %v4937 = vunpack.c.l.b16 %v3875
    %v4938 = vunpack.c.l.b16 %v3876
    %v4939 = vpack.c.b16 %v4935, %v4934
    %v4940 = vpack.c.b16 %v4937, %v4936
    %v4941 = vpack.c.b16 %v4938, %v4938
    %v4945 = vsel %vm3967, %v3776, 0
    %v4948 = vsel %vm2345, %v4941, 0
    %4950 = vmatprep.subr.bf16.mxu0 0
    %4951 = vmatpush1.bf16.msra.mxu0 %v4939
    %4952 = vmatprep.subr.bf16.mxu0 0
    %4953 = vmatpush1.bf16.msra.mxu0 %v4940
    %4954 = vmatprep.subr.bf16.mxu0 0
    %4955 = vmatpush1.bf16.msra.mxu0 %v4948
    %4956 = vmatprep.subr.bf16.mxu0 0
    %4957 = vmatpush1.bf16.msra.mxu0 0
    %4958 = vmatprep.subr.bf16.mxu0 0
    %4959 = vmatpush1.bf16.msra.mxu0 0
    %4960 = vmatprep.subr.bf16.mxu0 0
    %4961 = vmatpush1.bf16.msra.mxu0 0
    %4962 = vmatprep.subr.bf16.mxu0 0
    %4963 = vmatpush1.bf16.msra.mxu0 0
    %4964 = vmatprep.subr.bf16.mxu0 0
    %4965 = vmatpush1.bf16.msra.mxu0 0
    %4966 = vmatprep.subr.bf16.mxu0 0
    %4967 = vmatpush1.bf16.msra.mxu0 0
    %4968 = vmatprep.subr.bf16.mxu0 0
    %4969 = vmatpush1.bf16.msra.mxu0 0
    %4970 = vmatprep.subr.bf16.mxu0 0
    %4971 = vmatpush1.bf16.msra.mxu0 0
    %4972 = vmatprep.subr.bf16.mxu0 0
    %4973 = vmatpush1.bf16.msra.mxu0 0
    %4974 = vmatprep.subr.bf16.mxu0 0
    %4975 = vmatpush1.bf16.msra.mxu0 0
    %4976 = vmatprep.subr.bf16.mxu0 0
    %4977 = vmatpush1.bf16.msra.mxu0 0
    %4978 = vmatprep.subr.bf16.mxu0 0
    %4979 = vmatpush1.bf16.msra.mxu0 0
    %4980 = vmatprep.subr.bf16.mxu0 0
    %4981 = vmatpush1.bf16.msra.mxu0 0
    %4982 = vmatprep.mubr.bf16.mxu0 0
    %4983 = vmatmul.mubr.bf16.gmra.mrb[0].mxu0 %v4945
    %v4984 = vpop.f32.mrb[0].mxu0
    %v4985 = vadd.f32 0.0, %v4984
    %v4986 = vpop.f32.mrb[0].mxu0
    %v4987 = vpop.f32.mrb[0].mxu0
    %v4988 = vpop.f32.mrb[0].mxu0
    %4989 = vdwg.mxu0
    %v4995 = vunpack.c.l.b16 %v3877
    %v4996 = vunpack.c.l.b16 %v3878
    %v4997 = vunpack.c.l.b16 %v3879
    %v4998 = vunpack.c.l.b16 %v3880
    %v4999 = vunpack.c.l.b16 %v3881
    %v5000 = vpack.c.b16 %v4996, %v4995
    %v5001 = vpack.c.b16 %v4998, %v4997
    %v5002 = vpack.c.b16 %v4999, %v4999
    %v5006 = vsel %vm3967, %v3777, 0
    %v5009 = vsel %vm2345, %v5002, 0
    %5011 = vmatprep.subr.bf16.mxu0 0
    %5012 = vmatpush1.bf16.msra.mxu0 %v5000
    %5013 = vmatprep.subr.bf16.mxu0 0
    %5014 = vmatpush1.bf16.msra.mxu0 %v5001
    %5015 = vmatprep.subr.bf16.mxu0 0
    %5016 = vmatpush1.bf16.msra.mxu0 %v5009
    %5017 = vmatprep.subr.bf16.mxu0 0
    %5018 = vmatpush1.bf16.msra.mxu0 0
    %5019 = vmatprep.subr.bf16.mxu0 0
    %5020 = vmatpush1.bf16.msra.mxu0 0
    %5021 = vmatprep.subr.bf16.mxu0 0
    %5022 = vmatpush1.bf16.msra.mxu0 0
    %5023 = vmatprep.subr.bf16.mxu0 0
    %5024 = vmatpush1.bf16.msra.mxu0 0
    %5025 = vmatprep.subr.bf16.mxu0 0
    %5026 = vmatpush1.bf16.msra.mxu0 0
    %5027 = vmatprep.subr.bf16.mxu0 0
    %5028 = vmatpush1.bf16.msra.mxu0 0
    %5029 = vmatprep.subr.bf16.mxu0 0
    %5030 = vmatpush1.bf16.msra.mxu0 0
    %5031 = vmatprep.subr.bf16.mxu0 0
    %5032 = vmatpush1.bf16.msra.mxu0 0
    %5033 = vmatprep.subr.bf16.mxu0 0
    %5034 = vmatpush1.bf16.msra.mxu0 0
    %5035 = vmatprep.subr.bf16.mxu0 0
    %5036 = vmatpush1.bf16.msra.mxu0 0
    %5037 = vmatprep.subr.bf16.mxu0 0
    %5038 = vmatpush1.bf16.msra.mxu0 0
    %5039 = vmatprep.subr.bf16.mxu0 0
    %5040 = vmatpush1.bf16.msra.mxu0 0
    %5041 = vmatprep.subr.bf16.mxu0 0
    %5042 = vmatpush1.bf16.msra.mxu0 0
    %5043 = vmatprep.mubr.bf16.mxu0 0
    %5044 = vmatmul.mubr.bf16.gmra.mrb[0].mxu0 %v5006
    %v5045 = vpop.f32.mrb[0].mxu0
    %v5046 = vadd.f32 0.0, %v5045
    %v5047 = vpop.f32.mrb[0].mxu0
    %v5048 = vpop.f32.mrb[0].mxu0
    %v5049 = vpop.f32.mrb[0].mxu0
    %5050 = vdwg.mxu0
    %v5056 = vunpack.c.l.b16 %v3882
    %v5057 = vunpack.c.l.b16 %v3883
    %v5058 = vunpack.c.l.b16 %v3884
    %v5059 = vunpack.c.l.b16 %v3885
    %v5060 = vunpack.c.l.b16 %v3886
    %v5061 = vpack.c.b16 %v5057, %v5056
    %v5062 = vpack.c.b16 %v5059, %v5058
    %v5063 = vpack.c.b16 %v5060, %v5060
    %v5067 = vsel %vm3967, %v3778, 0
    %v5070 = vsel %vm2345, %v5063, 0
    %5072 = vmatprep.subr.bf16.mxu0 0
    %5073 = vmatpush1.bf16.msra.mxu0 %v5061
    %5074 = vmatprep.subr.bf16.mxu0 0
    %5075 = vmatpush1.bf16.msra.mxu0 %v5062
    %5076 = vmatprep.subr.bf16.mxu0 0
    %5077 = vmatpush1.bf16.msra.mxu0 %v5070
    %5078 = vmatprep.subr.bf16.mxu0 0
    %5079 = vmatpush1.bf16.msra.mxu0 0
    %5080 = vmatprep.subr.bf16.mxu0 0
    %5081 = vmatpush1.bf16.msra.mxu0 0
    %5082 = vmatprep.subr.bf16.mxu0 0
    %5083 = vmatpush1.bf16.msra.mxu0 0
    %5084 = vmatprep.subr.bf16.mxu0 0
    %5085 = vmatpush1.bf16.msra.mxu0 0
    %5086 = vmatprep.subr.bf16.mxu0 0
    %5087 = vmatpush1.bf16.msra.mxu0 0
    %5088 = vmatprep.subr.bf16.mxu0 0
    %5089 = vmatpush1.bf16.msra.mxu0 0
    %5090 = vmatprep.subr.bf16.mxu0 0
    %5091 = vmatpush1.bf16.msra.mxu0 0
    %5092 = vmatprep.subr.bf16.mxu0 0
    %5093 = vmatpush1.bf16.msra.mxu0 0
    %5094 = vmatprep.subr.bf16.mxu0 0
    %5095 = vmatpush1.bf16.msra.mxu0 0
    %5096 = vmatprep.subr.bf16.mxu0 0
    %5097 = vmatpush1.bf16.msra.mxu0 0
    %5098 = vmatprep.subr.bf16.mxu0 0
    %5099 = vmatpush1.bf16.msra.mxu0 0
    %5100 = vmatprep.subr.bf16.mxu0 0
    %5101 = vmatpush1.bf16.msra.mxu0 0
    %5102 = vmatprep.subr.bf16.mxu0 0
    %5103 = vmatpush1.bf16.msra.mxu0 0
    %5104 = vmatprep.mubr.bf16.mxu0 0
    %5105 = vmatmul.mubr.bf16.gmra.mrb[0].mxu0 %v5067
    %v5106 = vpop.f32.mrb[0].mxu0
    %v5107 = vadd.f32 0.0, %v5106
    %v5108 = vpop.f32.mrb[0].mxu0
    %v5109 = vpop.f32.mrb[0].mxu0
    %v5110 = vpop.f32.mrb[0].mxu0
    %5111 = vdwg.mxu0
    %v5117 = vunpack.c.l.b16 %v3887
    %v5118 = vunpack.c.l.b16 %v3888
    %v5119 = vunpack.c.l.b16 %v3889
    %v5120 = vunpack.c.l.b16 %v3890
    %v5121 = vunpack.c.l.b16 %v3891
    %v5122 = vpack.c.b16 %v5118, %v5117
    %v5123 = vpack.c.b16 %v5120, %v5119
    %v5124 = vpack.c.b16 %v5121, %v5121
    %v5128 = vsel %vm3967, %v3779, 0
    %v5131 = vsel %vm2345, %v5124, 0
    %5133 = vmatprep.subr.bf16.mxu0 0
    %5134 = vmatpush1.bf16.msra.mxu0 %v5122
    %5135 = vmatprep.subr.bf16.mxu0 0
    %5136 = vmatpush1.bf16.msra.mxu0 %v5123
    %5137 = vmatprep.subr.bf16.mxu0 0
    %5138 = vmatpush1.bf16.msra.mxu0 %v5131
    %5139 = vmatprep.subr.bf16.mxu0 0
    %5140 = vmatpush1.bf16.msra.mxu0 0
    %5141 = vmatprep.subr.bf16.mxu0 0
    %5142 = vmatpush1.bf16.msra.mxu0 0
    %5143 = vmatprep.subr.bf16.mxu0 0
    %5144 = vmatpush1.bf16.msra.mxu0 0
    %5145 = vmatprep.subr.bf16.mxu0 0
    %5146 = vmatpush1.bf16.msra.mxu0 0
    %5147 = vmatprep.subr.bf16.mxu0 0
    %5148 = vmatpush1.bf16.msra.mxu0 0
    %5149 = vmatprep.subr.bf16.mxu0 0
    %5150 = vmatpush1.bf16.msra.mxu0 0
    %5151 = vmatprep.subr.bf16.mxu0 0
    %5152 = vmatpush1.bf16.msra.mxu0 0
    %5153 = vmatprep.subr.bf16.mxu0 0
    %5154 = vmatpush1.bf16.msra.mxu0 0
    %5155 = vmatprep.subr.bf16.mxu0 0
    %5156 = vmatpush1.bf16.msra.mxu0 0
    %5157 = vmatprep.subr.bf16.mxu0 0
    %5158 = vmatpush1.bf16.msra.mxu0 0
    %5159 = vmatprep.subr.bf16.mxu0 0
    %5160 = vmatpush1.bf16.msra.mxu0 0
    %5161 = vmatprep.subr.bf16.mxu0 0
    %5162 = vmatpush1.bf16.msra.mxu0 0
    %5163 = vmatprep.subr.bf16.mxu0 0
    %5164 = vmatpush1.bf16.msra.mxu0 0
    %5165 = vmatprep.mubr.bf16.mxu0 0
    %5166 = vmatmul.mubr.bf16.gmra.mrb[0].mxu0 %v5128
    %v5167 = vpop.f32.mrb[0].mxu0
    %v5168 = vadd.f32 0.0, %v5167
    %v5169 = vpop.f32.mrb[0].mxu0
    %v5170 = vpop.f32.mrb[0].mxu0
    %v5171 = vpop.f32.mrb[0].mxu0
    %5172 = vdwg.mxu0
    %v5178 = vunpack.c.l.b16 %v3892
    %v5179 = vunpack.c.l.b16 %v3893
    %v5180 = vunpack.c.l.b16 %v3894
    %v5181 = vunpack.c.l.b16 %v3895
    %v5182 = vunpack.c.l.b16 %v3896
    %v5183 = vpack.c.b16 %v5179, %v5178
    %v5184 = vpack.c.b16 %v5181, %v5180
    %v5185 = vpack.c.b16 %v5182, %v5182
    %v5189 = vsel %vm3967, %v3780, 0
    %v5192 = vsel %vm2345, %v5185, 0
    %5194 = vmatprep.subr.bf16.mxu0 0
    %5195 = vmatpush1.bf16.msra.mxu0 %v5183
    %5196 = vmatprep.subr.bf16.mxu0 0
    %5197 = vmatpush1.bf16.msra.mxu0 %v5184
    %5198 = vmatprep.subr.bf16.mxu0 0
    %5199 = vmatpush1.bf16.msra.mxu0 %v5192
    %5200 = vmatprep.subr.bf16.mxu0 0
    %5201 = vmatpush1.bf16.msra.mxu0 0
    %5202 = vmatprep.subr.bf16.mxu0 0
    %5203 = vmatpush1.bf16.msra.mxu0 0
    %5204 = vmatprep.subr.bf16.mxu0 0
    %5205 = vmatpush1.bf16.msra.mxu0 0
    %5206 = vmatprep.subr.bf16.mxu0 0
    %5207 = vmatpush1.bf16.msra.mxu0 0
    %5208 = vmatprep.subr.bf16.mxu0 0
    %5209 = vmatpush1.bf16.msra.mxu0 0
    %5210 = vmatprep.subr.bf16.mxu0 0
    %5211 = vmatpush1.bf16.msra.mxu0 0
    %5212 = vmatprep.subr.bf16.mxu0 0
    %5213 = vmatpush1.bf16.msra.mxu0 0
    %5214 = vmatprep.subr.bf16.mxu0 0
    %5215 = vmatpush1.bf16.msra.mxu0 0
    %5216 = vmatprep.subr.bf16.mxu0 0
    %5217 = vmatpush1.bf16.msra.mxu0 0
    %5218 = vmatprep.subr.bf16.mxu0 0
    %5219 = vmatpush1.bf16.msra.mxu0 0
    %5220 = vmatprep.subr.bf16.mxu0 0
    %5221 = vmatpush1.bf16.msra.mxu0 0
    %5222 = vmatprep.subr.bf16.mxu0 0
    %5223 = vmatpush1.bf16.msra.mxu0 0
    %5224 = vmatprep.subr.bf16.mxu0 0
    %5225 = vmatpush1.bf16.msra.mxu0 0
    %5226 = vmatprep.mubr.bf16.mxu0 0
    %5227 = vmatmul.mubr.bf16.gmra.mrb[0].mxu0 %v5189
    %v5228 = vpop.f32.mrb[0].mxu0
    %v5229 = vadd.f32 0.0, %v5228
    %v5230 = vpop.f32.mrb[0].mxu0
    %v5231 = vpop.f32.mrb[0].mxu0
    %v5232 = vpop.f32.mrb[0].mxu0
    %5233 = vdwg.mxu0
    %v5239 = vunpack.c.l.b16 %v3897
    %v5240 = vunpack.c.l.b16 %v3898
    %v5241 = vunpack.c.l.b16 %v3899
    %v5242 = vunpack.c.l.b16 %v3900
    %v5243 = vunpack.c.l.b16 %v3901
    %v5244 = vpack.c.b16 %v5240, %v5239
    %v5245 = vpack.c.b16 %v5242, %v5241
    %v5246 = vpack.c.b16 %v5243, %v5243
    %v5250 = vsel %vm3967, %v3781, 0
    %v5253 = vsel %vm2345, %v5246, 0
    %5255 = vmatprep.subr.bf16.mxu0 0
    %5256 = vmatpush1.bf16.msra.mxu0 %v5244
    %5257 = vmatprep.subr.bf16.mxu0 0
    %5258 = vmatpush1.bf16.msra.mxu0 %v5245
    %5259 = vmatprep.subr.bf16.mxu0 0
    %5260 = vmatpush1.bf16.msra.mxu0 %v5253
    %5261 = vmatprep.subr.bf16.mxu0 0
    %5262 = vmatpush1.bf16.msra.mxu0 0
    %5263 = vmatprep.subr.bf16.mxu0 0
    %5264 = vmatpush1.bf16.msra.mxu0 0
    %5265 = vmatprep.subr.bf16.mxu0 0
    %5266 = vmatpush1.bf16.msra.mxu0 0
    %5267 = vmatprep.subr.bf16.mxu0 0
    %5268 = vmatpush1.bf16.msra.mxu0 0
    %5269 = vmatprep.subr.bf16.mxu0 0
    %5270 = vmatpush1.bf16.msra.mxu0 0
    %5271 = vmatprep.subr.bf16.mxu0 0
    %5272 = vmatpush1.bf16.msra.mxu0 0
    %5273 = vmatprep.subr.bf16.mxu0 0
    %5274 = vmatpush1.bf16.msra.mxu0 0
    %5275 = vmatprep.subr.bf16.mxu0 0
    %5276 = vmatpush1.bf16.msra.mxu0 0
    %5277 = vmatprep.subr.bf16.mxu0 0
    %5278 = vmatpush1.bf16.msra.mxu0 0
    %5279 = vmatprep.subr.bf16.mxu0 0
    %5280 = vmatpush1.bf16.msra.mxu0 0
    %5281 = vmatprep.subr.bf16.mxu0 0
    %5282 = vmatpush1.bf16.msra.mxu0 0
    %5283 = vmatprep.subr.bf16.mxu0 0
    %5284 = vmatpush1.bf16.msra.mxu0 0
    %5285 = vmatprep.subr.bf16.mxu0 0
    %5286 = vmatpush1.bf16.msra.mxu0 0
    %5287 = vmatprep.mubr.bf16.mxu0 0
    %5288 = vmatmul.mubr.bf16.gmra.mrb[0].mxu0 %v5250
    %v5289 = vpop.f32.mrb[0].mxu0
    %v5290 = vadd.f32 0.0, %v5289
    %v5291 = vpop.f32.mrb[0].mxu0
    %v5292 = vpop.f32.mrb[0].mxu0
    %v5293 = vpop.f32.mrb[0].mxu0
    %5294 = vdwg.mxu0
    %v5300 = vunpack.c.l.b16 %v3902
    %v5301 = vunpack.c.l.b16 %v3903
    %v5302 = vunpack.c.l.b16 %v3904
    %v5303 = vunpack.c.l.b16 %v3905
    %v5304 = vunpack.c.l.b16 %v3906
    %v5305 = vpack.c.b16 %v5301, %v5300
    %v5306 = vpack.c.b16 %v5303, %v5302
    %v5307 = vpack.c.b16 %v5304, %v5304
    %v5311 = vsel %vm3967, %v3782, 0
    %v5314 = vsel %vm2345, %v5307, 0
    %5316 = vmatprep.subr.bf16.mxu0 0
    %5317 = vmatpush1.bf16.msra.mxu0 %v5305
    %5318 = vmatprep.subr.bf16.mxu0 0
    %5319 = vmatpush1.bf16.msra.mxu0 %v5306
    %5320 = vmatprep.subr.bf16.mxu0 0
    %5321 = vmatpush1.bf16.msra.mxu0 %v5314
    %5322 = vmatprep.subr.bf16.mxu0 0
    %5323 = vmatpush1.bf16.msra.mxu0 0
    %5324 = vmatprep.subr.bf16.mxu0 0
    %5325 = vmatpush1.bf16.msra.mxu0 0
    %5326 = vmatprep.subr.bf16.mxu0 0
    %5327 = vmatpush1.bf16.msra.mxu0 0
    %5328 = vmatprep.subr.bf16.mxu0 0
    %5329 = vmatpush1.bf16.msra.mxu0 0
    %5330 = vmatprep.subr.bf16.mxu0 0
    %5331 = vmatpush1.bf16.msra.mxu0 0
    %5332 = vmatprep.subr.bf16.mxu0 0
    %5333 = vmatpush1.bf16.msra.mxu0 0
    %5334 = vmatprep.subr.bf16.mxu0 0
    %5335 = vmatpush1.bf16.msra.mxu0 0
    %5336 = vmatprep.subr.bf16.mxu0 0
    %5337 = vmatpush1.bf16.msra.mxu0 0
    %5338 = vmatprep.subr.bf16.mxu0 0
    %5339 = vmatpush1.bf16.msra.mxu0 0
    %5340 = vmatprep.subr.bf16.mxu0 0
    %5341 = vmatpush1.bf16.msra.mxu0 0
    %5342 = vmatprep.subr.bf16.mxu0 0
    %5343 = vmatpush1.bf16.msra.mxu0 0
    %5344 = vmatprep.subr.bf16.mxu0 0
    %5345 = vmatpush1.bf16.msra.mxu0 0
    %5346 = vmatprep.subr.bf16.mxu0 0
    %5347 = vmatpush1.bf16.msra.mxu0 0
    %5348 = vmatprep.mubr.bf16.mxu0 0
    %5349 = vmatmul.mubr.bf16.gmra.mrb[0].mxu0 %v5311
    %v5350 = vpop.f32.mrb[0].mxu0
    %v5351 = vadd.f32 0.0, %v5350
    %v5352 = vpop.f32.mrb[0].mxu0
    %v5353 = vpop.f32.mrb[0].mxu0
    %v5354 = vpop.f32.mrb[0].mxu0
    %5355 = vdwg.mxu0
    %v5361 = vunpack.c.l.b16 %v3907
    %v5362 = vunpack.c.l.b16 %v3908
    %v5363 = vunpack.c.l.b16 %v3909
    %v5364 = vunpack.c.l.b16 %v3910
    %v5365 = vunpack.c.l.b16 %v3911
    %v5366 = vpack.c.b16 %v5362, %v5361
    %v5367 = vpack.c.b16 %v5364, %v5363
    %v5368 = vpack.c.b16 %v5365, %v5365
    %v5372 = vsel %vm3967, %v3783, 0
    %v5375 = vsel %vm2345, %v5368, 0
    %5377 = vmatprep.subr.bf16.mxu0 0
    %5378 = vmatpush1.bf16.msra.mxu0 %v5366
    %5379 = vmatprep.subr.bf16.mxu0 0
    %5380 = vmatpush1.bf16.msra.mxu0 %v5367
    %5381 = vmatprep.subr.bf16.mxu0 0
    %5382 = vmatpush1.bf16.msra.mxu0 %v5375
    %5383 = vmatprep.subr.bf16.mxu0 0
    %5384 = vmatpush1.bf16.msra.mxu0 0
    %5385 = vmatprep.subr.bf16.mxu0 0
    %5386 = vmatpush1.bf16.msra.mxu0 0
    %5387 = vmatprep.subr.bf16.mxu0 0
    %5388 = vmatpush1.bf16.msra.mxu0 0
    %5389 = vmatprep.subr.bf16.mxu0 0
    %5390 = vmatpush1.bf16.msra.mxu0 0
    %5391 = vmatprep.subr.bf16.mxu0 0
    %5392 = vmatpush1.bf16.msra.mxu0 0
    %5393 = vmatprep.subr.bf16.mxu0 0
    %5394 = vmatpush1.bf16.msra.mxu0 0
    %5395 = vmatprep.subr.bf16.mxu0 0
    %5396 = vmatpush1.bf16.msra.mxu0 0
    %5397 = vmatprep.subr.bf16.mxu0 0
    %5398 = vmatpush1.bf16.msra.mxu0 0
    %5399 = vmatprep.subr.bf16.mxu0 0
    %5400 = vmatpush1.bf16.msra.mxu0 0
    %5401 = vmatprep.subr.bf16.mxu0 0
    %5402 = vmatpush1.bf16.msra.mxu0 0
    %5403 = vmatprep.subr.bf16.mxu0 0
    %5404 = vmatpush1.bf16.msra.mxu0 0
    %5405 = vmatprep.subr.bf16.mxu0 0
    %5406 = vmatpush1.bf16.msra.mxu0 0
    %5407 = vmatprep.subr.bf16.mxu0 0
    %5408 = vmatpush1.bf16.msra.mxu0 0
    %5409 = vmatprep.mubr.bf16.mxu0 0
    %5410 = vmatmul.mubr.bf16.gmra.mrb[0].mxu0 %v5372
    %v5411 = vpop.f32.mrb[0].mxu0
    %v5412 = vadd.f32 0.0, %v5411
    %v5413 = vpop.f32.mrb[0].mxu0
    %v5414 = vpop.f32.mrb[0].mxu0
    %v5415 = vpop.f32.mrb[0].mxu0
    %5416 = vdwg.mxu0
    %v5422 = vunpack.c.l.b16 %v3912
    %v5423 = vunpack.c.l.b16 %v3913
    %v5424 = vunpack.c.l.b16 %v3914
    %v5425 = vunpack.c.l.b16 %v3915
    %v5426 = vunpack.c.l.b16 %v3916
    %v5427 = vpack.c.b16 %v5423, %v5422
    %v5428 = vpack.c.b16 %v5425, %v5424
    %v5429 = vpack.c.b16 %v5426, %v5426
    %v5433 = vsel %vm3967, %v3784, 0
    %v5436 = vsel %vm2345, %v5429, 0
    %5438 = vmatprep.subr.bf16.mxu0 0
    %5439 = vmatpush1.bf16.msra.mxu0 %v5427
    %5440 = vmatprep.subr.bf16.mxu0 0
    %5441 = vmatpush1.bf16.msra.mxu0 %v5428
    %5442 = vmatprep.subr.bf16.mxu0 0
    %5443 = vmatpush1.bf16.msra.mxu0 %v5436
    %5444 = vmatprep.subr.bf16.mxu0 0
    %5445 = vmatpush1.bf16.msra.mxu0 0
    %5446 = vmatprep.subr.bf16.mxu0 0
    %5447 = vmatpush1.bf16.msra.mxu0 0
    %5448 = vmatprep.subr.bf16.mxu0 0
    %5449 = vmatpush1.bf16.msra.mxu0 0
    %5450 = vmatprep.subr.bf16.mxu0 0
    %5451 = vmatpush1.bf16.msra.mxu0 0
    %5452 = vmatprep.subr.bf16.mxu0 0
    %5453 = vmatpush1.bf16.msra.mxu0 0
    %5454 = vmatprep.subr.bf16.mxu0 0
    %5455 = vmatpush1.bf16.msra.mxu0 0
    %5456 = vmatprep.subr.bf16.mxu0 0
    %5457 = vmatpush1.bf16.msra.mxu0 0
    %5458 = vmatprep.subr.bf16.mxu0 0
    %5459 = vmatpush1.bf16.msra.mxu0 0
    %5460 = vmatprep.subr.bf16.mxu0 0
    %5461 = vmatpush1.bf16.msra.mxu0 0
    %5462 = vmatprep.subr.bf16.mxu0 0
    %5463 = vmatpush1.bf16.msra.mxu0 0
    %5464 = vmatprep.subr.bf16.mxu0 0
    %5465 = vmatpush1.bf16.msra.mxu0 0
    %5466 = vmatprep.subr.bf16.mxu0 0
    %5467 = vmatpush1.bf16.msra.mxu0 0
    %5468 = vmatprep.subr.bf16.mxu0 0
    %5469 = vmatpush1.bf16.msra.mxu0 0
    %5470 = vmatprep.mubr.bf16.mxu0 0
    %5471 = vmatmul.mubr.bf16.gmra.mrb[0].mxu0 %v5433
    %v5472 = vpop.f32.mrb[0].mxu0
    %v5473 = vadd.f32 0.0, %v5472
    %v5474 = vpop.f32.mrb[0].mxu0
    %v5475 = vpop.f32.mrb[0].mxu0
    %v5476 = vpop.f32.mrb[0].mxu0
    %5477 = vdwg.mxu0
    %v5483 = vunpack.c.l.b16 %v3917
    %v5484 = vunpack.c.l.b16 %v3918
    %v5485 = vunpack.c.l.b16 %v3919
    %v5486 = vunpack.c.l.b16 %v3920
    %v5487 = vunpack.c.l.b16 %v3921
    %v5488 = vpack.c.b16 %v5484, %v5483
    %v5489 = vpack.c.b16 %v5486, %v5485
    %v5490 = vpack.c.b16 %v5487, %v5487
    %v5494 = vsel %vm3967, %v3785, 0
    %v5497 = vsel %vm2345, %v5490, 0
    %5499 = vmatprep.subr.bf16.mxu0 0
    %5500 = vmatpush1.bf16.msra.mxu0 %v5488
    %5501 = vmatprep.subr.bf16.mxu0 0
    %5502 = vmatpush1.bf16.msra.mxu0 %v5489
    %5503 = vmatprep.subr.bf16.mxu0 0
    %5504 = vmatpush1.bf16.msra.mxu0 %v5497
    %5505 = vmatprep.subr.bf16.mxu0 0
    %5506 = vmatpush1.bf16.msra.mxu0 0
    %5507 = vmatprep.subr.bf16.mxu0 0
    %5508 = vmatpush1.bf16.msra.mxu0 0
    %5509 = vmatprep.subr.bf16.mxu0 0
    %5510 = vmatpush1.bf16.msra.mxu0 0
    %5511 = vmatprep.subr.bf16.mxu0 0
    %5512 = vmatpush1.bf16.msra.mxu0 0
    %5513 = vmatprep.subr.bf16.mxu0 0
    %5514 = vmatpush1.bf16.msra.mxu0 0
    %5515 = vmatprep.subr.bf16.mxu0 0
    %5516 = vmatpush1.bf16.msra.mxu0 0
    %5517 = vmatprep.subr.bf16.mxu0 0
    %5518 = vmatpush1.bf16.msra.mxu0 0
    %5519 = vmatprep.subr.bf16.mxu0 0
    %5520 = vmatpush1.bf16.msra.mxu0 0
    %5521 = vmatprep.subr.bf16.mxu0 0
    %5522 = vmatpush1.bf16.msra.mxu0 0
    %5523 = vmatprep.subr.bf16.mxu0 0
    %5524 = vmatpush1.bf16.msra.mxu0 0
    %5525 = vmatprep.subr.bf16.mxu0 0
    %5526 = vmatpush1.bf16.msra.mxu0 0
    %5527 = vmatprep.subr.bf16.mxu0 0
    %5528 = vmatpush1.bf16.msra.mxu0 0
    %5529 = vmatprep.subr.bf16.mxu0 0
    %5530 = vmatpush1.bf16.msra.mxu0 0
    %5531 = vmatprep.mubr.bf16.mxu0 0
    %5532 = vmatmul.mubr.bf16.gmra.mrb[0].mxu0 %v5494
    %v5533 = vpop.f32.mrb[0].mxu0
    %v5534 = vadd.f32 0.0, %v5533
    %v5535 = vpop.f32.mrb[0].mxu0
    %v5536 = vpop.f32.mrb[0].mxu0
    %v5537 = vpop.f32.mrb[0].mxu0
    %5538 = vdwg.mxu0
    %v5544 = vunpack.c.l.b16 %v3922
    %v5545 = vunpack.c.l.b16 %v3923
    %v5546 = vunpack.c.l.b16 %v3924
    %v5547 = vunpack.c.l.b16 %v3925
    %v5548 = vunpack.c.l.b16 %v3926
    %v5549 = vpack.c.b16 %v5545, %v5544
    %v5550 = vpack.c.b16 %v5547, %v5546
    %v5551 = vpack.c.b16 %v5548, %v5548
    %v5555 = vsel %vm3967, %v3786, 0
    %v5558 = vsel %vm2345, %v5551, 0
    %5560 = vmatprep.subr.bf16.mxu0 0
    %5561 = vmatpush1.bf16.msra.mxu0 %v5549
    %5562 = vmatprep.subr.bf16.mxu0 0
    %5563 = vmatpush1.bf16.msra.mxu0 %v5550
    %5564 = vmatprep.subr.bf16.mxu0 0
    %5565 = vmatpush1.bf16.msra.mxu0 %v5558
    %5566 = vmatprep.subr.bf16.mxu0 0
    %5567 = vmatpush1.bf16.msra.mxu0 0
    %5568 = vmatprep.subr.bf16.mxu0 0
    %5569 = vmatpush1.bf16.msra.mxu0 0
    %5570 = vmatprep.subr.bf16.mxu0 0
    %5571 = vmatpush1.bf16.msra.mxu0 0
    %5572 = vmatprep.subr.bf16.mxu0 0
    %5573 = vmatpush1.bf16.msra.mxu0 0
    %5574 = vmatprep.subr.bf16.mxu0 0
    %5575 = vmatpush1.bf16.msra.mxu0 0
    %5576 = vmatprep.subr.bf16.mxu0 0
    %5577 = vmatpush1.bf16.msra.mxu0 0
    %5578 = vmatprep.subr.bf16.mxu0 0
    %5579 = vmatpush1.bf16.msra.mxu0 0
    %5580 = vmatprep.subr.bf16.mxu0 0
    %5581 = vmatpush1.bf16.msra.mxu0 0
    %5582 = vmatprep.subr.bf16.mxu0 0
    %5583 = vmatpush1.bf16.msra.mxu0 0
    %5584 = vmatprep.subr.bf16.mxu0 0
    %5585 = vmatpush1.bf16.msra.mxu0 0
    %5586 = vmatprep.subr.bf16.mxu0 0
    %5587 = vmatpush1.bf16.msra.mxu0 0
    %5588 = vmatprep.subr.bf16.mxu0 0
    %5589 = vmatpush1.bf16.msra.mxu0 0
    %5590 = vmatprep.subr.bf16.mxu0 0
    %5591 = vmatpush1.bf16.msra.mxu0 0
    %5592 = vmatprep.mubr.bf16.mxu0 0
    %5593 = vmatmul.mubr.bf16.gmra.mrb[0].mxu0 %v5555
    %v5594 = vpop.f32.mrb[0].mxu0
    %v5595 = vadd.f32 0.0, %v5594
    %v5596 = vpop.f32.mrb[0].mxu0
    %v5597 = vpop.f32.mrb[0].mxu0
    %v5598 = vpop.f32.mrb[0].mxu0
    %5599 = vdwg.mxu0
    %v5605 = vunpack.c.l.b16 %v3927
    %v5606 = vunpack.c.l.b16 %v3928
    %v5607 = vunpack.c.l.b16 %v3929
    %v5608 = vunpack.c.l.b16 %v3930
    %v5609 = vunpack.c.l.b16 %v3931
    %v5610 = vpack.c.b16 %v5606, %v5605
    %v5611 = vpack.c.b16 %v5608, %v5607
    %v5612 = vpack.c.b16 %v5609, %v5609
    %v5616 = vsel %vm3967, %v3787, 0
    %v5619 = vsel %vm2345, %v5612, 0
    %5621 = vmatprep.subr.bf16.mxu0 0
    %5622 = vmatpush1.bf16.msra.mxu0 %v5610
    %5623 = vmatprep.subr.bf16.mxu0 0
    %5624 = vmatpush1.bf16.msra.mxu0 %v5611
    %5625 = vmatprep.subr.bf16.mxu0 0
    %5626 = vmatpush1.bf16.msra.mxu0 %v5619
    %5627 = vmatprep.subr.bf16.mxu0 0
    %5628 = vmatpush1.bf16.msra.mxu0 0
    %5629 = vmatprep.subr.bf16.mxu0 0
    %5630 = vmatpush1.bf16.msra.mxu0 0
    %5631 = vmatprep.subr.bf16.mxu0 0
    %5632 = vmatpush1.bf16.msra.mxu0 0
    %5633 = vmatprep.subr.bf16.mxu0 0
    %5634 = vmatpush1.bf16.msra.mxu0 0
    %5635 = vmatprep.subr.bf16.mxu0 0
    %5636 = vmatpush1.bf16.msra.mxu0 0
    %5637 = vmatprep.subr.bf16.mxu0 0
    %5638 = vmatpush1.bf16.msra.mxu0 0
    %5639 = vmatprep.subr.bf16.mxu0 0
    %5640 = vmatpush1.bf16.msra.mxu0 0
    %5641 = vmatprep.subr.bf16.mxu0 0
    %5642 = vmatpush1.bf16.msra.mxu0 0
    %5643 = vmatprep.subr.bf16.mxu0 0
    %5644 = vmatpush1.bf16.msra.mxu0 0
    %5645 = vmatprep.subr.bf16.mxu0 0
    %5646 = vmatpush1.bf16.msra.mxu0 0
    %5647 = vmatprep.subr.bf16.mxu0 0
    %5648 = vmatpush1.bf16.msra.mxu0 0
    %5649 = vmatprep.subr.bf16.mxu0 0
    %5650 = vmatpush1.bf16.msra.mxu0 0
    %5651 = vmatprep.subr.bf16.mxu0 0
    %5652 = vmatpush1.bf16.msra.mxu0 0
    %5653 = vmatprep.mubr.bf16.mxu0 0
    %5654 = vmatmul.mubr.bf16.gmra.mrb[0].mxu0 %v5616
    %v5655 = vpop.f32.mrb[0].mxu0
    %v5656 = vadd.f32 0.0, %v5655
    %v5657 = vpop.f32.mrb[0].mxu0
    %v5658 = vpop.f32.mrb[0].mxu0
    %v5659 = vpop.f32.mrb[0].mxu0
    %5660 = vdwg.mxu0
    %v5666 = vunpack.c.l.b16 %v3932
    %v5667 = vunpack.c.l.b16 %v3933
    %v5668 = vunpack.c.l.b16 %v3934
    %v5669 = vunpack.c.l.b16 %v3935
    %v5670 = vunpack.c.l.b16 %v3936
    %v5671 = vpack.c.b16 %v5667, %v5666
    %v5672 = vpack.c.b16 %v5669, %v5668
    %v5673 = vpack.c.b16 %v5670, %v5670
    %v5677 = vsel %vm3967, %v3788, 0
    %v5680 = vsel %vm2345, %v5673, 0
    %5682 = vmatprep.subr.bf16.mxu0 0
    %5683 = vmatpush1.bf16.msra.mxu0 %v5671
    %5684 = vmatprep.subr.bf16.mxu0 0
    %5685 = vmatpush1.bf16.msra.mxu0 %v5672
    %5686 = vmatprep.subr.bf16.mxu0 0
    %5687 = vmatpush1.bf16.msra.mxu0 %v5680
    %5688 = vmatprep.subr.bf16.mxu0 0
    %5689 = vmatpush1.bf16.msra.mxu0 0
    %5690 = vmatprep.subr.bf16.mxu0 0
    %5691 = vmatpush1.bf16.msra.mxu0 0
    %5692 = vmatprep.subr.bf16.mxu0 0
    %5693 = vmatpush1.bf16.msra.mxu0 0
    %5694 = vmatprep.subr.bf16.mxu0 0
    %5695 = vmatpush1.bf16.msra.mxu0 0
    %5696 = vmatprep.subr.bf16.mxu0 0
    %5697 = vmatpush1.bf16.msra.mxu0 0
    %5698 = vmatprep.subr.bf16.mxu0 0
    %5699 = vmatpush1.bf16.msra.mxu0 0
    %5700 = vmatprep.subr.bf16.mxu0 0
    %5701 = vmatpush1.bf16.msra.mxu0 0
    %5702 = vmatprep.subr.bf16.mxu0 0
    %5703 = vmatpush1.bf16.msra.mxu0 0
    %5704 = vmatprep.subr.bf16.mxu0 0
    %5705 = vmatpush1.bf16.msra.mxu0 0
    %5706 = vmatprep.subr.bf16.mxu0 0
    %5707 = vmatpush1.bf16.msra.mxu0 0
    %5708 = vmatprep.subr.bf16.mxu0 0
    %5709 = vmatpush1.bf16.msra.mxu0 0
    %5710 = vmatprep.subr.bf16.mxu0 0
    %5711 = vmatpush1.bf16.msra.mxu0 0
    %5712 = vmatprep.subr.bf16.mxu0 0
    %5713 = vmatpush1.bf16.msra.mxu0 0
    %5714 = vmatprep.mubr.bf16.mxu0 0
    %5715 = vmatmul.mubr.bf16.gmra.mrb[0].mxu0 %v5677
    %v5716 = vpop.f32.mrb[0].mxu0
    %v5717 = vadd.f32 0.0, %v5716
    %v5718 = vpop.f32.mrb[0].mxu0
    %v5719 = vpop.f32.mrb[0].mxu0
    %v5720 = vpop.f32.mrb[0].mxu0
    %5721 = vdwg.mxu0
    %v5727 = vunpack.c.l.b16 %v3937
    %v5728 = vunpack.c.l.b16 %v3938
    %v5729 = vunpack.c.l.b16 %v3939
    %v5730 = vunpack.c.l.b16 %v3940
    %v5731 = vunpack.c.l.b16 %v3941
    %v5732 = vpack.c.b16 %v5728, %v5727
    %v5733 = vpack.c.b16 %v5730, %v5729
    %v5734 = vpack.c.b16 %v5731, %v5731
    %v5738 = vsel %vm3967, %v3789, 0
    %v5741 = vsel %vm2345, %v5734, 0
    %5743 = vmatprep.subr.bf16.mxu0 0
    %5744 = vmatpush1.bf16.msra.mxu0 %v5732
    %5745 = vmatprep.subr.bf16.mxu0 0
    %5746 = vmatpush1.bf16.msra.mxu0 %v5733
    %5747 = vmatprep.subr.bf16.mxu0 0
    %5748 = vmatpush1.bf16.msra.mxu0 %v5741
    %5749 = vmatprep.subr.bf16.mxu0 0
    %5750 = vmatpush1.bf16.msra.mxu0 0
    %5751 = vmatprep.subr.bf16.mxu0 0
    %5752 = vmatpush1.bf16.msra.mxu0 0
    %5753 = vmatprep.subr.bf16.mxu0 0
    %5754 = vmatpush1.bf16.msra.mxu0 0
    %5755 = vmatprep.subr.bf16.mxu0 0
    %5756 = vmatpush1.bf16.msra.mxu0 0
    %5757 = vmatprep.subr.bf16.mxu0 0
    %5758 = vmatpush1.bf16.msra.mxu0 0
    %5759 = vmatprep.subr.bf16.mxu0 0
    %5760 = vmatpush1.bf16.msra.mxu0 0
    %5761 = vmatprep.subr.bf16.mxu0 0
    %5762 = vmatpush1.bf16.msra.mxu0 0
    %5763 = vmatprep.subr.bf16.mxu0 0
    %5764 = vmatpush1.bf16.msra.mxu0 0
    %5765 = vmatprep.subr.bf16.mxu0 0
    %5766 = vmatpush1.bf16.msra.mxu0 0
    %5767 = vmatprep.subr.bf16.mxu0 0
    %5768 = vmatpush1.bf16.msra.mxu0 0
    %5769 = vmatprep.subr.bf16.mxu0 0
    %5770 = vmatpush1.bf16.msra.mxu0 0
    %5771 = vmatprep.subr.bf16.mxu0 0
    %5772 = vmatpush1.bf16.msra.mxu0 0
    %5773 = vmatprep.subr.bf16.mxu0 0
    %5774 = vmatpush1.bf16.msra.mxu0 0
    %5775 = vmatprep.mubr.bf16.mxu0 0
    %5776 = vmatmul.mubr.bf16.gmra.mrb[0].mxu0 %v5738
    %v5777 = vpop.f32.mrb[0].mxu0
    %v5778 = vadd.f32 0.0, %v5777
    %v5779 = vpop.f32.mrb[0].mxu0
    %v5780 = vpop.f32.mrb[0].mxu0
    %v5781 = vpop.f32.mrb[0].mxu0
    %5782 = vdwg.mxu0
    %v5788 = vunpack.c.l.b16 %v3942
    %v5789 = vunpack.c.l.b16 %v3943
    %v5790 = vunpack.c.l.b16 %v3944
    %v5791 = vunpack.c.l.b16 %v3945
    %v5792 = vunpack.c.l.b16 %v3946
    %v5793 = vpack.c.b16 %v5789, %v5788
    %v5794 = vpack.c.b16 %v5791, %v5790
    %v5795 = vpack.c.b16 %v5792, %v5792
    %v5799 = vsel %vm3967, %v3790, 0
    %v5802 = vsel %vm2345, %v5795, 0
    %5804 = vmatprep.subr.bf16.mxu0 0
    %5805 = vmatpush1.bf16.msra.mxu0 %v5793
    %5806 = vmatprep.subr.bf16.mxu0 0
    %5807 = vmatpush1.bf16.msra.mxu0 %v5794
    %5808 = vmatprep.subr.bf16.mxu0 0
    %5809 = vmatpush1.bf16.msra.mxu0 %v5802
    %5810 = vmatprep.subr.bf16.mxu0 0
    %5811 = vmatpush1.bf16.msra.mxu0 0
    %5812 = vmatprep.subr.bf16.mxu0 0
    %5813 = vmatpush1.bf16.msra.mxu0 0
    %5814 = vmatprep.subr.bf16.mxu0 0
    %5815 = vmatpush1.bf16.msra.mxu0 0
    %5816 = vmatprep.subr.bf16.mxu0 0
    %5817 = vmatpush1.bf16.msra.mxu0 0
    %5818 = vmatprep.subr.bf16.mxu0 0
    %5819 = vmatpush1.bf16.msra.mxu0 0
    %5820 = vmatprep.subr.bf16.mxu0 0
    %5821 = vmatpush1.bf16.msra.mxu0 0
    %5822 = vmatprep.subr.bf16.mxu0 0
    %5823 = vmatpush1.bf16.msra.mxu0 0
    %5824 = vmatprep.subr.bf16.mxu0 0
    %5825 = vmatpush1.bf16.msra.mxu0 0
    %5826 = vmatprep.subr.bf16.mxu0 0
    %5827 = vmatpush1.bf16.msra.mxu0 0
    %5828 = vmatprep.subr.bf16.mxu0 0
    %5829 = vmatpush1.bf16.msra.mxu0 0
    %5830 = vmatprep.subr.bf16.mxu0 0
    %5831 = vmatpush1.bf16.msra.mxu0 0
    %5832 = vmatprep.subr.bf16.mxu0 0
    %5833 = vmatpush1.bf16.msra.mxu0 0
    %5834 = vmatprep.subr.bf16.mxu0 0
    %5835 = vmatpush1.bf16.msra.mxu0 0
    %5836 = vmatprep.mubr.bf16.mxu0 0
    %5837 = vmatmul.mubr.bf16.gmra.mrb[0].mxu0 %v5799
    %v5838 = vpop.f32.mrb[0].mxu0
    %v5839 = vadd.f32 0.0, %v5838
    %v5840 = vpop.f32.mrb[0].mxu0
    %v5841 = vpop.f32.mrb[0].mxu0
    %v5842 = vpop.f32.mrb[0].mxu0
    %5843 = vdwg.mxu0
    %v5849 = vunpack.c.l.b16 %v3947
    %v5850 = vunpack.c.l.b16 %v3948
    %v5851 = vunpack.c.l.b16 %v3949
    %v5852 = vunpack.c.l.b16 %v3950
    %v5853 = vunpack.c.l.b16 %v3951
    %v5854 = vpack.c.b16 %v5850, %v5849
    %v5855 = vpack.c.b16 %v5852, %v5851
    %v5856 = vpack.c.b16 %v5853, %v5853
    %v5860 = vsel %vm3967, %v3791, 0
    %v5863 = vsel %vm2345, %v5856, 0
    %5865 = vmatprep.subr.bf16.mxu0 0
    %5866 = vmatpush1.bf16.msra.mxu0 %v5854
    %5867 = vmatprep.subr.bf16.mxu0 0
    %5868 = vmatpush1.bf16.msra.mxu0 %v5855
    %5869 = vmatprep.subr.bf16.mxu0 0
    %5870 = vmatpush1.bf16.msra.mxu0 %v5863
    %5871 = vmatprep.subr.bf16.mxu0 0
    %5872 = vmatpush1.bf16.msra.mxu0 0
    %5873 = vmatprep.subr.bf16.mxu0 0
    %5874 = vmatpush1.bf16.msra.mxu0 0
    %5875 = vmatprep.subr.bf16.mxu0 0
    %5876 = vmatpush1.bf16.msra.mxu0 0
    %5877 = vmatprep.subr.bf16.mxu0 0
    %5878 = vmatpush1.bf16.msra.mxu0 0
    %5879 = vmatprep.subr.bf16.mxu0 0
    %5880 = vmatpush1.bf16.msra.mxu0 0
    %5881 = vmatprep.subr.bf16.mxu0 0
    %5882 = vmatpush1.bf16.msra.mxu0 0
    %5883 = vmatprep.subr.bf16.mxu0 0
    %5884 = vmatpush1.bf16.msra.mxu0 0
    %5885 = vmatprep.subr.bf16.mxu0 0
    %5886 = vmatpush1.bf16.msra.mxu0 0
    %5887 = vmatprep.subr.bf16.mxu0 0
    %5888 = vmatpush1.bf16.msra.mxu0 0
    %5889 = vmatprep.subr.bf16.mxu0 0
    %5890 = vmatpush1.bf16.msra.mxu0 0
    %5891 = vmatprep.subr.bf16.mxu0 0
    %5892 = vmatpush1.bf16.msra.mxu0 0
    %5893 = vmatprep.subr.bf16.mxu0 0
    %5894 = vmatpush1.bf16.msra.mxu0 0
    %5895 = vmatprep.subr.bf16.mxu0 0
    %5896 = vmatpush1.bf16.msra.mxu0 0
    %5897 = vmatprep.mubr.bf16.mxu0 0
    %5898 = vmatmul.mubr.bf16.gmra.mrb[0].mxu0 %v5860
    %v5899 = vpop.f32.mrb[0].mxu0
    %v5900 = vadd.f32 0.0, %v5899
    %v5901 = vpop.f32.mrb[0].mxu0
    %v5902 = vpop.f32.mrb[0].mxu0
    %v5903 = vpop.f32.mrb[0].mxu0
    %5904 = vdwg.mxu0
    %v5905 = vsel %vm1813, %v4009, 0.0
    %v5906 = vsel %vm1813, %v4070, 0.0
    %v5907 = vadd.f32 %v5905, %v5906
    %v5908 = vsel %vm1813, %v4131, 0.0
    %v5909 = vadd.f32 %v5907, %v5908
    %v5910 = vsel %vm1813, %v4192, 0.0
    %v5911 = vadd.f32 %v5909, %v5910
    %v5912 = vsel %vm1813, %v4253, 0.0
    %v5913 = vadd.f32 %v5911, %v5912
    %v5914 = vsel %vm1813, %v4314, 0.0
    %v5915 = vadd.f32 %v5913, %v5914
    %v5916 = vsel %vm1813, %v4375, 0.0
    %v5917 = vadd.f32 %v5915, %v5916
    %v5918 = vsel %vm1813, %v4436, 0.0
    %v5919 = vadd.f32 %v5917, %v5918
    %v5920 = vsel %vm1813, %v4497, 0.0
    %v5921 = vadd.f32 %v5919, %v5920
    %v5922 = vsel %vm1813, %v4558, 0.0
    %v5923 = vadd.f32 %v5921, %v5922
    %v5924 = vsel %vm1813, %v4619, 0.0
    %v5925 = vadd.f32 %v5923, %v5924
    %v5926 = vsel %vm1813, %v4680, 0.0
    %v5927 = vadd.f32 %v5925, %v5926
    %v5928 = vsel %vm1813, %v4741, 0.0
    %v5929 = vadd.f32 %v5927, %v5928
    %v5930 = vsel %vm1813, %v4802, 0.0
    %v5931 = vadd.f32 %v5929, %v5930
    %v5932 = vsel %vm1813, %v4863, 0.0
    %v5933 = vadd.f32 %v5931, %v5932
    %v5934 = vsel %vm1813, %v4924, 0.0
    %v5935 = vadd.f32 %v5933, %v5934
    %v5936 = vsel %vm1813, %v4985, 0.0
    %v5937 = vadd.f32 %v5935, %v5936
    %v5938 = vsel %vm1813, %v5046, 0.0
    %v5939 = vadd.f32 %v5937, %v5938
    %v5940 = vsel %vm1813, %v5107, 0.0
    %v5941 = vadd.f32 %v5939, %v5940
    %v5942 = vsel %vm1813, %v5168, 0.0
    %v5943 = vadd.f32 %v5941, %v5942
    %v5944 = vsel %vm1813, %v5229, 0.0
    %v5945 = vadd.f32 %v5943, %v5944
    %v5946 = vsel %vm1813, %v5290, 0.0
    %v5947 = vadd.f32 %v5945, %v5946
    %v5948 = vsel %vm1813, %v5351, 0.0
    %v5949 = vadd.f32 %v5947, %v5948
    %v5950 = vsel %vm1813, %v5412, 0.0
    %v5951 = vadd.f32 %v5949, %v5950
    %v5952 = vsel %vm1813, %v5473, 0.0
    %v5953 = vadd.f32 %v5951, %v5952
    %v5954 = vsel %vm1813, %v5534, 0.0
    %v5955 = vadd.f32 %v5953, %v5954
    %v5956 = vsel %vm1813, %v5595, 0.0
    %v5957 = vadd.f32 %v5955, %v5956
    %v5958 = vsel %vm1813, %v5656, 0.0
    %v5959 = vadd.f32 %v5957, %v5958
    %v5960 = vsel %vm1813, %v5717, 0.0
    %v5961 = vadd.f32 %v5959, %v5960
    %v5962 = vsel %vm1813, %v5778, 0.0
    %v5963 = vadd.f32 %v5961, %v5962
    %v5964 = vsel %vm1813, %v5839, 0.0
    %v5965 = vadd.f32 %v5963, %v5964
    %v5966 = vsel %vm1813, %v5900, 0.0
    %v5967 = vadd.f32 %v5965, %v5966
    %v5968 = vld [vmem:[%s11] sm:$0x1]
    %v5970 = vlaneseq
    %v5971 = vshrl.u32 %v5970, 7
    %v5972 = vsub.s32 0, %v5971
    %v5973 = vrot.slane %v5968, %v5972
    %v5975 = vadd.f32 %v5967, %v5973
    %v5976 = vmax.f32 %v5975, 0.0
    %v5977 = vld [vmem:[%s12] sm:$0xf]
    %v5978 = vld [vmem:[%s12 + $0x4] sm:$0xf]
    %v5979 = vld [vmem:[%s12 + $0x8] sm:$0xf]
    %v5980 = vld [vmem:[%s12 + $0xc] sm:$0xf]
    %v5981 = vld [vmem:[%s12 + $0x10] sm:$0xf]
    %v5982 = vld [vmem:[%s12 + $0x14] sm:$0xf]
    %v5983 = vld [vmem:[%s12 + $0x18] sm:$0xf]
    %v5984 = vld [vmem:[%s12 + $0x1c] sm:$0xf]
    %v5985 = vld [vmem:[%s12 + $0x20] sm:$0xf]
    %v5986 = vld [vmem:[%s12 + $0x24] sm:$0xf]
    %v5987 = vld [vmem:[%s12 + $0x28] sm:$0xf]
    %v5988 = vld [vmem:[%s12 + $0x2c] sm:$0xf]
    %v5989 = vld [vmem:[%s12 + $0x30] sm:$0xf]
    %v5990 = vld [vmem:[%s12 + $0x34] sm:$0xf]
    %v5991 = vld [vmem:[%s12 + $0x38] sm:$0xf]
    %v5992 = vld [vmem:[%s12 + $0x3c] sm:$0xf]
    %v5993 = vpack.c.bf16 %v5976, %v5976
    %v5994 = vld [vmem:[%s13] sm:$0x1]
    %v5996 = vlaneseq
    %v5997 = vshrl.u32 %v5996, 7
    %v5998 = vsub.s32 0, %v5997
    %v5999 = vrot.slane %v5994, %v5998
    %v6017 = vunpack.c.l.b16 %v5977
    %v6018 = vunpack.c.l.b16 %v5978
    %v6019 = vunpack.c.l.b16 %v5979
    %v6020 = vunpack.c.l.b16 %v5980
    %v6021 = vunpack.c.l.b16 %v5981
    %v6022 = vunpack.c.l.b16 %v5982
    %v6023 = vunpack.c.l.b16 %v5983
    %v6024 = vunpack.c.l.b16 %v5984
    %v6025 = vunpack.c.l.b16 %v5985
    %v6026 = vunpack.c.l.b16 %v5986
    %v6027 = vunpack.c.l.b16 %v5987
    %v6028 = vunpack.c.l.b16 %v5988
    %v6029 = vunpack.c.l.b16 %v5989
    %v6030 = vunpack.c.l.b16 %v5990
    %v6031 = vunpack.c.l.b16 %v5991
    %v6032 = vunpack.c.l.b16 %v5992
    %v6033 = vpack.c.b16 %v6018, %v6017
    %v6034 = vpack.c.b16 %v6020, %v6019
    %v6035 = vpack.c.b16 %v6022, %v6021
    %v6036 = vpack.c.b16 %v6024, %v6023
    %v6037 = vpack.c.b16 %v6026, %v6025
    %v6038 = vpack.c.b16 %v6028, %v6027
    %v6039 = vpack.c.b16 %v6030, %v6029
    %v6040 = vpack.c.b16 %v6032, %v6031
    %6049 = vmatprep.subr.bf16.mxu0 0
    %6050 = vmatpush1.bf16.msra.mxu0 %v6033
    %6051 = vmatprep.subr.bf16.mxu0 0
    %6052 = vmatpush1.bf16.msra.mxu0 %v6034
    %6053 = vmatprep.subr.bf16.mxu0 0
    %6054 = vmatpush1.bf16.msra.mxu0 %v6035
    %6055 = vmatprep.subr.bf16.mxu0 0
    %6056 = vmatpush1.bf16.msra.mxu0 %v6036
    %6057 = vmatprep.subr.bf16.mxu0 0
    %6058 = vmatpush1.bf16.msra.mxu0 %v6037
    %6059 = vmatprep.subr.bf16.mxu0 0
    %6060 = vmatpush1.bf16.msra.mxu0 %v6038
    %6061 = vmatprep.subr.bf16.mxu0 0
    %6062 = vmatpush1.bf16.msra.mxu0 %v6039
    %6063 = vmatprep.subr.bf16.mxu0 0
    %6064 = vmatpush1.bf16.msra.mxu0 %v6040
    %6065 = vmatprep.subr.bf16.mxu0 0
    %6066 = vmatpush1.bf16.msra.mxu0 0
    %6067 = vmatprep.subr.bf16.mxu0 0
    %6068 = vmatpush1.bf16.msra.mxu0 0
    %6069 = vmatprep.subr.bf16.mxu0 0
    %6070 = vmatpush1.bf16.msra.mxu0 0
    %6071 = vmatprep.subr.bf16.mxu0 0
    %6072 = vmatpush1.bf16.msra.mxu0 0
    %6073 = vmatprep.subr.bf16.mxu0 0
    %6074 = vmatpush1.bf16.msra.mxu0 0
    %6075 = vmatprep.subr.bf16.mxu0 0
    %6076 = vmatpush1.bf16.msra.mxu0 0
    %6077 = vmatprep.subr.bf16.mxu0 0
    %6078 = vmatpush1.bf16.msra.mxu0 0
    %6079 = vmatprep.subr.bf16.mxu0 0
    %6080 = vmatpush1.bf16.msra.mxu0 0
    %6081 = vmatprep.mubr.bf16.mxu0 0
    %6082 = vmatmul.mubr.bf16.gmra.mrb[0].mxu0 %v5993
    %v6083 = vpop.f32.mrb[0].mxu0
    %v6084 = vadd.f32 %v5999, %v6083
    %v6085 = vpop.f32.mrb[0].mxu0
    %v6086 = vpop.f32.mrb[0].mxu0
    %v6087 = vpop.f32.mrb[0].mxu0
    %6088 = vdwg.mxu0
    %6089 = vst [vmem:[#allocation2] sm:$0x3] %v6084
    // Predicated region
    $region58: #{bin_conv_lstm_forward.1} parent=1 // pred_check
      _
    $region59: #{bin_conv_lstm_forward.1} parent=1 // pred_check_branch
      %6091 = sbr.rel (0) target = $region61
    $region60: #{bin_conv_lstm_forward.1} parent=1 // pred_region
      %s6093 = ssub.s32 32, 32
      %6094 = vsyncadd [#allocation3], %s6093
      %s6096 = sshll.u32 [#allocation2], 4
      %s6097 = int_to_ptr.vmem [resolvable:$true] %s6096
      %6099 = dma.vmem_to_hbm [thread:$0]  %s6097, 32, %s14, [#allocation3]
    $region61: #{bin_conv_lstm_forward.1} parent=1 // pred_fallthru
      _
    // Predicated region
    $region62: #{bin_conv_lstm_forward.1} parent=1 // pred_check
      _
    $region63: #{bin_conv_lstm_forward.1} parent=1 // pred_check_branch
      %6101 = sbr.rel (0) target = $region65
    $region64: #{bin_conv_lstm_forward.1} parent=1 // pred_region
      %6102 = dma.done [#allocation3], 32
    $region65: #{bin_conv_lstm_forward.1} parent=1 // pred_fallthru
      _
    %6103 = vsyncpa [#allocation3], 1

</llo_original>
